<compile_context>
chip_gen: v5e
topology: v5e:2x2
jax: 0.10.0
libtpu: 0.0.40
codegen_flags: <defaults>
</compile_context>

<pallas_src>
import math
import jax
import jax.numpy as jnp
from jax.experimental import pallas as pl
from jax.experimental.pallas import tpu as pltpu


# ----------------------------------------------------------------------------
# Pallas kernels (whole operands live in VMEM as single blocks; all tiny).
# ----------------------------------------------------------------------------
def _conv1_gemm_kernel(x_ref, w_ref, b_ref, o_ref):
    # fused input normalization in f32 (VPU), matmul in bf16 (MXU), f32 acc.
    xv = x_ref[...] * (1.0 / 255.0) - 0.5
    y = jnp.dot(xv.astype(jnp.bfloat16), w_ref[...],
                preferred_element_type=jnp.float32)
    o_ref[...] = jnp.maximum(y + b_ref[...], 0.0)


def _gemm_relu_kernel(x_ref, w_ref, b_ref, o_ref):
    y = jnp.dot(x_ref[...].astype(jnp.bfloat16), w_ref[...],
                preferred_element_type=jnp.float32)
    o_ref[...] = jnp.maximum(y + b_ref[...], 0.0)


def _mlp_heads_kernel(x_ref, wf_ref, bf_ref, wh_ref, bh_ref, o_ref):
    feat = jnp.dot(x_ref[...].astype(jnp.bfloat16), wf_ref[...],
                   preferred_element_type=jnp.float32)
    feat = jnp.maximum(feat + bf_ref[...], 0.0)
    y = jnp.dot(feat.astype(jnp.bfloat16), wh_ref[...],
                preferred_element_type=jnp.float32)
    o_ref[...] = y + bh_ref[...]


def _full_spec(shape):
    nd = len(shape)
    return pl.BlockSpec(shape, lambda i, _nd=nd: (0,) * _nd)


def _call(kernel, out_shape, *args):
    return pl.pallas_call(
        kernel,
        out_shape=jax.ShapeDtypeStruct(out_shape, jnp.float32),
        grid=(1,),
        in_specs=[_full_spec(a.shape) for a in args],
        out_specs=_full_spec(out_shape),
        compiler_params=pltpu.CompilerParams(
            dimension_semantics=("arbitrary",)),
    )(*args)


# ----------------------------------------------------------------------------
# im2col glue on NHWC activations (pure slicing / stack / reshape, plain JAX).
# Rows ordered (b, oh, ow); features ordered (kh, kw, c).
# ----------------------------------------------------------------------------
def _im2col_nhwc(x, k, stride):
    B, H, W, C = x.shape
    Ho = (H - k) // stride + 1
    Wo = (W - k) // stride + 1
    cols = []
    for kh in range(k):
        for kw in range(k):
            cols.append(x[:, kh:kh + stride * Ho:stride,
                            kw:kw + stride * Wo:stride, :])
    p = jnp.stack(cols, axis=3)                       # (B, Ho, Wo, k*k, C)
    p = p.reshape(B * Ho * Wo, k * k * C)
    return p, Ho, Wo


# ----------------------------------------------------------------------------
# Deterministic parameter init (PyTorch-style uniform(-1/sqrt(fan_in), ...)),
# with the /100 applied to the head weights exactly as in __init__.
# ----------------------------------------------------------------------------
def init_params(key, action_dim, state_dim):
    keys = jax.random.split(key, 10)

    def u(k, shape, fan_in):
        bound = 1.0 / math.sqrt(fan_in)
        return jax.random.uniform(k, shape, jnp.float32, -bound, bound)

    p = {}
    p["conv1_w"] = u(keys[0], (16, state_dim, 8, 8), state_dim * 8 * 8)
    p["conv1_b"] = u(keys[1], (16,), state_dim * 8 * 8)
    p["conv2_w"] = u(keys[2], (32, 16, 4, 4), 16 * 4 * 4)
    p["conv2_b"] = u(keys[3], (32,), 16 * 4 * 4)
    p["fc_w"]    = u(keys[4], (256, 2592), 2592)
    p["fc_b"]    = u(keys[5], (256,), 2592)
    p["act_w"]   = u(keys[6], (action_dim, 256), 256) / 100.0
    p["act_b"]   = u(keys[7], (action_dim,), 256)
    p["val_w"]   = u(keys[8], (1, 256), 256) / 100.0
    p["val_b"]   = u(keys[9], (1,), 256)
    return p


# ----------------------------------------------------------------------------
# Forward pass (mirrors PPG_DQN_ARCH.forward). Input x is NCHW like PyTorch.
# ----------------------------------------------------------------------------
def ppg_dqn_forward(x, params):
    B, C, H, W = x.shape
    A = params["act_w"].shape[0]

    # NCHW -> NHWC once; activations stay NHWC from here on (no more transposes).
    x = x.transpose(0, 2, 3, 1)

    # Weight prep (one-time layout on small constants, plain JAX).
    w1 = params["conv1_w"].transpose(2, 3, 1, 0).reshape(8 * 8 * C, 16)
    w2 = params["conv2_w"].transpose(2, 3, 1, 0).reshape(4 * 4 * 16, 32)
    # fc weight columns reordered from PyTorch (c,h,w) flatten order to NHWC (h,w,c)
    wfc = params["fc_w"].reshape(256, 32, 9, 9).transpose(0, 2, 3, 1)
    wfc = wfc.reshape(256, 2592).T                     # (2592, 256)
    whead = jnp.concatenate([params["act_w"], params["val_w"]], axis=0).T  # (256, A+1)

    w1 = w1.astype(jnp.bfloat16)
    w2 = w2.astype(jnp.bfloat16)
    wfc = wfc.astype(jnp.bfloat16)
    whead = whead.astype(jnp.bfloat16)

    b1 = params["conv1_b"].reshape(1, 16).astype(jnp.float32)
    b2 = params["conv2_b"].reshape(1, 32).astype(jnp.float32)
    bfc = params["fc_b"].reshape(1, 256).astype(jnp.float32)
    bhead = jnp.concatenate([params["act_b"], params["val_b"]]).reshape(1, A + 1)
    bhead = bhead.astype(jnp.float32)

    # conv1: Conv2d(C, 16, 8, stride=4) + ReLU, with x/255 - 0.5 fused in-kernel.
    p1, H1, W1 = _im2col_nhwc(x, 8, 4)                 # (B*20*20, 64*C)
    h1 = _call(_conv1_gemm_kernel, (p1.shape[0], 16), p1, w1, b1)

    # conv2: Conv2d(16, 32, 4, stride=2) + ReLU.
    h1 = h1.reshape(B, H1, W1, 16)                     # metadata-only (NHWC)
    p2, H2, W2 = _im2col_nhwc(h1, 4, 2)                # (B*9*9, 256)
    h2 = _call(_gemm_relu_kernel, (p2.shape[0], 32), p2, w2, b2)

    # flatten (NHWC order; fc weight columns already reordered) + fc + both heads.
    flat = h2.reshape(B, H2 * W2 * 32)                 # (B, 2592), metadata-only
    out = _call(_mlp_heads_kernel, (B, A + 1), flat, wfc, bfc, whead, bhead)

    action_values = out[:, :A]
    state_values = out[:, A:]
    return action_values, state_values


if __name__ == "__main__":
    key = jax.random.PRNGKey(0)
    k_x, k_p = jax.random.split(key)

    action_dim = 6
    state_dim = 4
    batch = 2
    # Spatial size 84x84 is dictated by Linear(2592, 256): 32 * 9 * 9 = 2592.
    x = jax.random.uniform(k_x, (batch, state_dim, 84, 84),
                           jnp.float32, 0.0, 255.0)

    params = init_params(k_p, action_dim, state_dim)

    fwd = jax.jit(ppg_dqn_forward)
    action_values, state_values = fwd(x, params)
    jax.block_until_ready((action_values, state_values))

    assert action_values.shape == (batch, action_dim)
    assert state_values.shape == (batch, 1)
    print("KERNEL_OK")
</pallas_src>

<mosaic_0001>
module attributes {stable_mosaic.version = 11 : i64} {
  func.func @_conv1_gemm_kernel(%arg0: i32, %arg1: memref<800x256xf32, #tpu.memory_space<vmem>>, %arg2: memref<256x16xbf16, #tpu.memory_space<vmem>>, %arg3: memref<1x16xf32, #tpu.memory_space<vmem>>, %arg4: memref<800x16xf32, #tpu.memory_space<vmem>>) attributes {dimension_semantics = [#tpu.dimension_semantics<arbitrary>], iteration_bounds = array<i64: 1>, scalar_prefetch = 0 : i64, scratch_operands = 0 : i64, tpu.core_type = #tpu.core_type<tc>, window_params = [{pipeline_mode = #tpu.pipeline_mode<synchronous>, transform_indices = @transform_0, window_bounds = array<i64: 800, 256>}, {pipeline_mode = #tpu.pipeline_mode<synchronous>, transform_indices = @transform_1, window_bounds = array<i64: 256, 16>}, {pipeline_mode = #tpu.pipeline_mode<synchronous>, transform_indices = @transform_2, window_bounds = array<i64: 1, 16>}, {pipeline_mode = #tpu.pipeline_mode<synchronous>, transform_indices = @transform_3, window_bounds = array<i64: 800, 16>}]} {
    %c0 = arith.constant 0 : index
    %c0_0 = arith.constant 0 : index
    %0 = vector.load %arg1[%c0, %c0_0] : memref<800x256xf32, #tpu.memory_space<vmem>>, vector<800x256xf32>
    %cst = arith.constant 0.00392156886 : f32
    %1 = vector.broadcast %cst : f32 to vector<800x256xf32>
    %2 = arith.mulf %0, %1 : vector<800x256xf32>
    %cst_1 = arith.constant 5.000000e-01 : f32
    %3 = vector.broadcast %cst_1 : f32 to vector<800x256xf32>
    %4 = arith.subf %2, %3 : vector<800x256xf32>
    %5 = arith.truncf %4 : vector<800x256xf32> to vector<800x256xbf16>
    %c0_2 = arith.constant 0 : index
    %c0_3 = arith.constant 0 : index
    %6 = vector.load %arg2[%c0_2, %c0_3] : memref<256x16xbf16, #tpu.memory_space<vmem>>, vector<256x16xbf16>
    %cst_4 = arith.constant dense<0.000000e+00> : vector<800x16xf32>
    %7 = tpu.matmul %5, %6, %cst_4 {dimension_numbers = #tpu.dot_dimension_numbers<[1], [0], [0], [1], [0, 0, 1, 1], [], []>} : vector<800x256xbf16>, vector<256x16xbf16>, vector<800x16xf32> -> vector<800x16xf32>
    %c0_5 = arith.constant 0 : index
    %c0_6 = arith.constant 0 : index
    %8 = vector.load %arg3[%c0_5, %c0_6] : memref<1x16xf32, #tpu.memory_space<vmem>>, vector<1x16xf32>
    %9 = vector.broadcast %8 : vector<1x16xf32> to vector<800x16xf32>
    %10 = arith.addf %7, %9 : vector<800x16xf32>
    %cst_7 = arith.constant 0.000000e+00 : f32
    %11 = vector.broadcast %cst_7 : f32 to vector<800x16xf32>
    %12 = arith.maximumf %10, %11 : vector<800x16xf32>
    %c0_8 = arith.constant 0 : index
    %c0_9 = arith.constant 0 : index
    %13 = vector.load %arg4[%c0_8, %c0_9] : memref<800x16xf32, #tpu.memory_space<vmem>>, vector<800x16xf32>
    tpu.vector_store %arg4[%c0_8, %c0_9], %12 {strides = array<i32>} : memref<800x16xf32, #tpu.memory_space<vmem>>, vector<800x16xf32>,
    return
  }
  func.func @transform_0(%arg0: i32) -> (i32, i32) {
    %c0_i32 = arith.constant 0 : i32
    %c0_i32_0 = arith.constant 0 : i32
    %c0_i32_1 = arith.constant 0 : i32
    return %c0_i32, %c0_i32_0 : i32, i32
  }
  func.func @transform_1(%arg0: i32) -> (i32, i32) {
    %c0_i32 = arith.constant 0 : i32
    %c0_i32_0 = arith.constant 0 : i32
    %c0_i32_1 = arith.constant 0 : i32
    return %c0_i32, %c0_i32_0 : i32, i32
  }
  func.func @transform_2(%arg0: i32) -> (i32, i32) {
    %c0_i32 = arith.constant 0 : i32
    %c0_i32_0 = arith.constant 0 : i32
    %c0_i32_1 = arith.constant 0 : i32
    return %c0_i32, %c0_i32_0 : i32, i32
  }
  func.func @transform_3(%arg0: i32) -> (i32, i32) {
    %c0_i32 = arith.constant 0 : i32
    %c0_i32_0 = arith.constant 0 : i32
    %c0_i32_1 = arith.constant 0 : i32
    return %c0_i32, %c0_i32_0 : i32, i32
  }
}

module attributes {stable_mosaic.version = 11 : i64} {
  func.func @_gemm_relu_kernel(%arg0: i32, %arg1: memref<162x256xf32, #tpu.memory_space<vmem>>, %arg2: memref<256x32xbf16, #tpu.memory_space<vmem>>, %arg3: memref<1x32xf32, #tpu.memory_space<vmem>>, %arg4: memref<162x32xf32, #tpu.memory_space<vmem>>) attributes {dimension_semantics = [#tpu.dimension_semantics<arbitrary>], iteration_bounds = array<i64: 1>, scalar_prefetch = 0 : i64, scratch_operands = 0 : i64, tpu.core_type = #tpu.core_type<tc>, window_params = [{pipeline_mode = #tpu.pipeline_mode<synchronous>, transform_indices = @transform_0, window_bounds = array<i64: 162, 256>}, {pipeline_mode = #tpu.pipeline_mode<synchronous>, transform_indices = @transform_1, window_bounds = array<i64: 256, 32>}, {pipeline_mode = #tpu.pipeline_mode<synchronous>, transform_indices = @transform_2, window_bounds = array<i64: 1, 32>}, {pipeline_mode = #tpu.pipeline_mode<synchronous>, transform_indices = @transform_3, window_bounds = array<i64: 162, 32>}]} {
    %c0 = arith.constant 0 : index
    %c0_0 = arith.constant 0 : index
    %0 = vector.load %arg1[%c0, %c0_0] : memref<162x256xf32, #tpu.memory_space<vmem>>, vector<162x256xf32>
    %1 = arith.truncf %0 : vector<162x256xf32> to vector<162x256xbf16>
    %c0_1 = arith.constant 0 : index
    %c0_2 = arith.constant 0 : index
    %2 = vector.load %arg2[%c0_1, %c0_2] : memref<256x32xbf16, #tpu.memory_space<vmem>>, vector<256x32xbf16>
    %cst = arith.constant dense<0.000000e+00> : vector<162x32xf32>
    %3 = tpu.matmul %1, %2, %cst {dimension_numbers = #tpu.dot_dimension_numbers<[1], [0], [0], [1], [0, 0, 1, 1], [], []>} : vector<162x256xbf16>, vector<256x32xbf16>, vector<162x32xf32> -> vector<162x32xf32>
    %c0_3 = arith.constant 0 : index
    %c0_4 = arith.constant 0 : index
    %4 = vector.load %arg3[%c0_3, %c0_4] : memref<1x32xf32, #tpu.memory_space<vmem>>, vector<1x32xf32>
    %5 = vector.broadcast %4 : vector<1x32xf32> to vector<162x32xf32>
    %6 = arith.addf %3, %5 : vector<162x32xf32>
    %cst_5 = arith.constant 0.000000e+00 : f32
    %7 = vector.broadcast %cst_5 : f32 to vector<162x32xf32>
    %8 = arith.maximumf %6, %7 : vector<162x32xf32>
    %c0_6 = arith.constant 0 : index
    %c0_7 = arith.constant 0 : index
    %9 = vector.load %arg4[%c0_6, %c0_7] : memref<162x32xf32, #tpu.memory_space<vmem>>, vector<162x32xf32>
    tpu.vector_store %arg4[%c0_6, %c0_7], %8 {strides = array<i32>} : memref<162x32xf32, #tpu.memory_space<vmem>>, vector<162x32xf32>,
    return
  }
  func.func @transform_0(%arg0: i32) -> (i32, i32) {
    %c0_i32 = arith.constant 0 : i32
    %c0_i32_0 = arith.constant 0 : i32
    %c0_i32_1 = arith.constant 0 : i32
    return %c0_i32, %c0_i32_0 : i32, i32
  }
  func.func @transform_1(%arg0: i32) -> (i32, i32) {
    %c0_i32 = arith.constant 0 : i32
    %c0_i32_0 = arith.constant 0 : i32
    %c0_i32_1 = arith.constant 0 : i32
    return %c0_i32, %c0_i32_0 : i32, i32
  }
  func.func @transform_2(%arg0: i32) -> (i32, i32) {
    %c0_i32 = arith.constant 0 : i32
    %c0_i32_0 = arith.constant 0 : i32
    %c0_i32_1 = arith.constant 0 : i32
    return %c0_i32, %c0_i32_0 : i32, i32
  }
  func.func @transform_3(%arg0: i32) -> (i32, i32) {
    %c0_i32 = arith.constant 0 : i32
    %c0_i32_0 = arith.constant 0 : i32
    %c0_i32_1 = arith.constant 0 : i32
    return %c0_i32, %c0_i32_0 : i32, i32
  }
}

module attributes {stable_mosaic.version = 11 : i64} {
  func.func @_mlp_heads_kernel(%arg0: i32, %arg1: memref<2x2592xf32, #tpu.memory_space<vmem>>, %arg2: memref<2592x256xbf16, #tpu.memory_space<vmem>>, %arg3: memref<1x256xf32, #tpu.memory_space<vmem>>, %arg4: memref<256x7xbf16, #tpu.memory_space<vmem>>, %arg5: memref<1x7xf32, #tpu.memory_space<vmem>>, %arg6: memref<2x7xf32, #tpu.memory_space<vmem>>) attributes {dimension_semantics = [#tpu.dimension_semantics<arbitrary>], iteration_bounds = array<i64: 1>, scalar_prefetch = 0 : i64, scratch_operands = 0 : i64, tpu.core_type = #tpu.core_type<tc>, window_params = [{pipeline_mode = #tpu.pipeline_mode<synchronous>, transform_indices = @transform_0, window_bounds = array<i64: 2, 2592>}, {pipeline_mode = #tpu.pipeline_mode<synchronous>, transform_indices = @transform_1, window_bounds = array<i64: 2592, 256>}, {pipeline_mode = #tpu.pipeline_mode<synchronous>, transform_indices = @transform_2, window_bounds = array<i64: 1, 256>}, {pipeline_mode = #tpu.pipeline_mode<synchronous>, transform_indices = @transform_3, window_bounds = array<i64: 256, 7>}, {pipeline_mode = #tpu.pipeline_mode<synchronous>, transform_indices = @transform_4, window_bounds = array<i64: 1, 7>}, {pipeline_mode = #tpu.pipeline_mode<synchronous>, transform_indices = @transform_5, window_bounds = array<i64: 2, 7>}]} {
    %c0 = arith.constant 0 : index
    %c0_0 = arith.constant 0 : index
    %0 = vector.load %arg1[%c0, %c0_0] : memref<2x2592xf32, #tpu.memory_space<vmem>>, vector<2x2592xf32>
    %1 = arith.truncf %0 : vector<2x2592xf32> to vector<2x2592xbf16>
    %c0_1 = arith.constant 0 : index
    %c0_2 = arith.constant 0 : index
    %2 = vector.load %arg2[%c0_1, %c0_2] : memref<2592x256xbf16, #tpu.memory_space<vmem>>, vector<2592x256xbf16>
    %cst = arith.constant dense<0.000000e+00> : vector<2x256xf32>
    %3 = tpu.matmul %1, %2, %cst {dimension_numbers = #tpu.dot_dimension_numbers<[1], [0], [0], [1], [0, 0, 1, 1], [], []>} : vector<2x2592xbf16>, vector<2592x256xbf16>, vector<2x256xf32> -> vector<2x256xf32>
    %c0_3 = arith.constant 0 : index
    %c0_4 = arith.constant 0 : index
    %4 = vector.load %arg3[%c0_3, %c0_4] : memref<1x256xf32, #tpu.memory_space<vmem>>, vector<1x256xf32>
    %5 = vector.broadcast %4 : vector<1x256xf32> to vector<2x256xf32>
    %6 = arith.addf %3, %5 : vector<2x256xf32>
    %cst_5 = arith.constant 0.000000e+00 : f32
    %7 = vector.broadcast %cst_5 : f32 to vector<2x256xf32>
    %8 = arith.maximumf %6, %7 : vector<2x256xf32>
    %9 = arith.truncf %8 : vector<2x256xf32> to vector<2x256xbf16>
    %c0_6 = arith.constant 0 : index
    %c0_7 = arith.constant 0 : index
    %10 = vector.load %arg4[%c0_6, %c0_7] : memref<256x7xbf16, #tpu.memory_space<vmem>>, vector<256x7xbf16>
    %cst_8 = arith.constant dense<0.000000e+00> : vector<2x7xf32>
    %11 = tpu.matmul %9, %10, %cst_8 {dimension_numbers = #tpu.dot_dimension_numbers<[1], [0], [0], [1], [0, 0, 1, 1], [], []>} : vector<2x256xbf16>, vector<256x7xbf16>, vector<2x7xf32> -> vector<2x7xf32>
    %c0_9 = arith.constant 0 : index
    %c0_10 = arith.constant 0 : index
    %12 = vector.load %arg5[%c0_9, %c0_10] : memref<1x7xf32, #tpu.memory_space<vmem>>, vector<1x7xf32>
    %13 = vector.broadcast %12 : vector<1x7xf32> to vector<2x7xf32>
    %14 = arith.addf %11, %13 : vector<2x7xf32>
    %c0_11 = arith.constant 0 : index
    %c0_12 = arith.constant 0 : index
    %15 = vector.load %arg6[%c0_11, %c0_12] : memref<2x7xf32, #tpu.memory_space<vmem>>, vector<2x7xf32>
    tpu.vector_store %arg6[%c0_11, %c0_12], %14 {strides = array<i32>} : memref<2x7xf32, #tpu.memory_space<vmem>>, vector<2x7xf32>,
    return
  }
  func.func @transform_0(%arg0: i32) -> (i32, i32) {
    %c0_i32 = arith.constant 0 : i32
    %c0_i32_0 = arith.constant 0 : i32
    %c0_i32_1 = arith.constant 0 : i32
    return %c0_i32, %c0_i32_0 : i32, i32
  }
  func.func @transform_1(%arg0: i32) -> (i32, i32) {
    %c0_i32 = arith.constant 0 : i32
    %c0_i32_0 = arith.constant 0 : i32
    %c0_i32_1 = arith.constant 0 : i32
    return %c0_i32, %c0_i32_0 : i32, i32
  }
  func.func @transform_2(%arg0: i32) -> (i32, i32) {
    %c0_i32 = arith.constant 0 : i32
    %c0_i32_0 = arith.constant 0 : i32
    %c0_i32_1 = arith.constant 0 : i32
    return %c0_i32, %c0_i32_0 : i32, i32
  }
  func.func @transform_3(%arg0: i32) -> (i32, i32) {
    %c0_i32 = arith.constant 0 : i32
    %c0_i32_0 = arith.constant 0 : i32
    %c0_i32_1 = arith.constant 0 : i32
    return %c0_i32, %c0_i32_0 : i32, i32
  }
  func.func @transform_4(%arg0: i32) -> (i32, i32) {
    %c0_i32 = arith.constant 0 : i32
    %c0_i32_0 = arith.constant 0 : i32
    %c0_i32_1 = arith.constant 0 : i32
    return %c0_i32, %c0_i32_0 : i32, i32
  }
  func.func @transform_5(%arg0: i32) -> (i32, i32) {
    %c0_i32 = arith.constant 0 : i32
    %c0_i32_0 = arith.constant 0 : i32
    %c0_i32_1 = arith.constant 0 : i32
    return %c0_i32, %c0_i32_0 : i32, i32
  }
}

</mosaic_0001>

<llo_original>
// kernel: ppg_dqn_forward.3
$region0: #{ppg_dqn_forward.3}
  #allocation0 [shape = 'u32[]', space=smem, size = 0x4, offset = 0x4, fixed_abs, tag = 'smem constant byte address 0x4 - core index']
  #allocation1 [shape = 'u32[72,128]{1,0:T(1,128)}', space=vmem, size = 0x9000, scoped, tag = 'internal scratch']
  %s0 = inlined_call_operand.vmem [shape: f32[800,256], index: 0, kind: input, shape index: {}]
  %s1 = inlined_call_operand.vmem [shape: bf16[256,16], index: 1, kind: input, shape index: {}]
  %s2 = inlined_call_operand.vmem [shape: f32[1,16], index: 2, kind: input, shape index: {}]
  %s3 = inlined_call_operand.vmem [shape: f32[800,16], index: 3, kind: output, shape index: {}]
  %s4 = sld [smem:[#allocation0]]
  $region22: #{ppg_dqn_forward.3} parent=0
    _
  %s6 = ssub.s32 1, %s4
  %s7 = scalar_select 0, %s6, %s4
  // Predicated region
  $region2: #{ppg_dqn_forward.3} parent=0 // pred_check
    _
  $region3: #{ppg_dqn_forward.3} parent=0 // pred_check_branch
    %9 = sbr.rel (0) target = $region5
  $region4: #{ppg_dqn_forward.3} parent=0 // pred_region
    _
  $region5: #{ppg_dqn_forward.3} parent=0 // pred_fallthru
    _
  // Predicated region
  $region6: #{ppg_dqn_forward.3} parent=0 // pred_check
    _
  $region7: #{ppg_dqn_forward.3} parent=0 // pred_check_branch
    %11 = sbr.rel (0) target = $region9
  $region8: #{ppg_dqn_forward.3} parent=0 // pred_region
    _
  $region9: #{ppg_dqn_forward.3} parent=0 // pred_fallthru
    _
  // Predicated region
  $region10: #{ppg_dqn_forward.3} parent=0 // pred_check
    _
  $region11: #{ppg_dqn_forward.3} parent=0 // pred_check_branch
    %13 = sbr.rel (0) target = $region13
  $region12: #{ppg_dqn_forward.3} parent=0 // pred_region
    _
  $region13: #{ppg_dqn_forward.3} parent=0 // pred_fallthru
    _
  %v14 = vld [vmem:[%s0] sm:$0xff]
  %v15 = vld [vmem:[%s0 + $0x8] sm:$0xff]
  %v16 = vld [vmem:[%s0 + $0x10] sm:$0xff]
  %v17 = vld [vmem:[%s0 + $0x18] sm:$0xff]
  %v18 = vld [vmem:[%s0 + $0x20] sm:$0xff]
  %v19 = vld [vmem:[%s0 + $0x28] sm:$0xff]
  %v20 = vld [vmem:[%s0 + $0x30] sm:$0xff]
  %v21 = vld [vmem:[%s0 + $0x38] sm:$0xff]
  %v22 = vld [vmem:[%s0 + $0x40] sm:$0xff]
  %v23 = vld [vmem:[%s0 + $0x48] sm:$0xff]
  %v24 = vld [vmem:[%s0 + $0x50] sm:$0xff]
  %v25 = vld [vmem:[%s0 + $0x58] sm:$0xff]
  %v26 = vld [vmem:[%s0 + $0x60] sm:$0xff]
  %v27 = vld [vmem:[%s0 + $0x68] sm:$0xff]
  %v28 = vld [vmem:[%s0 + $0x70] sm:$0xff]
  %v29 = vld [vmem:[%s0 + $0x78] sm:$0xff]
  %v30 = vld [vmem:[%s0 + $0x80] sm:$0xff]
  %v31 = vld [vmem:[%s0 + $0x88] sm:$0xff]
  %v32 = vld [vmem:[%s0 + $0x90] sm:$0xff]
  %v33 = vld [vmem:[%s0 + $0x98] sm:$0xff]
  %v34 = vld [vmem:[%s0 + $0xa0] sm:$0xff]
  %v35 = vld [vmem:[%s0 + $0xa8] sm:$0xff]
  %v36 = vld [vmem:[%s0 + $0xb0] sm:$0xff]
  %v37 = vld [vmem:[%s0 + $0xb8] sm:$0xff]
  %v38 = vld [vmem:[%s0 + $0xc0] sm:$0xff]
  %v39 = vld [vmem:[%s0 + $0xc8] sm:$0xff]
  %v40 = vld [vmem:[%s0 + $0xd0] sm:$0xff]
  %v41 = vld [vmem:[%s0 + $0xd8] sm:$0xff]
  %v42 = vld [vmem:[%s0 + $0xe0] sm:$0xff]
  %v43 = vld [vmem:[%s0 + $0xe8] sm:$0xff]
  %v44 = vld [vmem:[%s0 + $0xf0] sm:$0xff]
  %v45 = vld [vmem:[%s0 + $0xf8] sm:$0xff]
  %v46 = vld [vmem:[%s0 + $0x100] sm:$0xff]
  %v47 = vld [vmem:[%s0 + $0x108] sm:$0xff]
  %v48 = vld [vmem:[%s0 + $0x110] sm:$0xff]
  %v49 = vld [vmem:[%s0 + $0x118] sm:$0xff]
  %v50 = vld [vmem:[%s0 + $0x120] sm:$0xff]
  %v51 = vld [vmem:[%s0 + $0x128] sm:$0xff]
  %v52 = vld [vmem:[%s0 + $0x130] sm:$0xff]
  %v53 = vld [vmem:[%s0 + $0x138] sm:$0xff]
  %v54 = vld [vmem:[%s0 + $0x140] sm:$0xff]
  %v55 = vld [vmem:[%s0 + $0x148] sm:$0xff]
  %v56 = vld [vmem:[%s0 + $0x150] sm:$0xff]
  %v57 = vld [vmem:[%s0 + $0x158] sm:$0xff]
  %v58 = vld [vmem:[%s0 + $0x160] sm:$0xff]
  %v59 = vld [vmem:[%s0 + $0x168] sm:$0xff]
  %v60 = vld [vmem:[%s0 + $0x170] sm:$0xff]
  %v61 = vld [vmem:[%s0 + $0x178] sm:$0xff]
  %v62 = vld [vmem:[%s0 + $0x180] sm:$0xff]
  %v63 = vld [vmem:[%s0 + $0x188] sm:$0xff]
  %v64 = vld [vmem:[%s0 + $0x190] sm:$0xff]
  %v65 = vld [vmem:[%s0 + $0x198] sm:$0xff]
  %v66 = vld [vmem:[%s0 + $0x1a0] sm:$0xff]
  %v67 = vld [vmem:[%s0 + $0x1a8] sm:$0xff]
  %v68 = vld [vmem:[%s0 + $0x1b0] sm:$0xff]
  %v69 = vld [vmem:[%s0 + $0x1b8] sm:$0xff]
  %v70 = vld [vmem:[%s0 + $0x1c0] sm:$0xff]
  %v71 = vld [vmem:[%s0 + $0x1c8] sm:$0xff]
  %v72 = vld [vmem:[%s0 + $0x1d0] sm:$0xff]
  %v73 = vld [vmem:[%s0 + $0x1d8] sm:$0xff]
  %v74 = vld [vmem:[%s0 + $0x1e0] sm:$0xff]
  %v75 = vld [vmem:[%s0 + $0x1e8] sm:$0xff]
  %v76 = vld [vmem:[%s0 + $0x1f0] sm:$0xff]
  %v77 = vld [vmem:[%s0 + $0x1f8] sm:$0xff]
  %v78 = vld [vmem:[%s0 + $0x200] sm:$0xff]
  %v79 = vld [vmem:[%s0 + $0x208] sm:$0xff]
  %v80 = vld [vmem:[%s0 + $0x210] sm:$0xff]
  %v81 = vld [vmem:[%s0 + $0x218] sm:$0xff]
  %v82 = vld [vmem:[%s0 + $0x220] sm:$0xff]
  %v83 = vld [vmem:[%s0 + $0x228] sm:$0xff]
  %v84 = vld [vmem:[%s0 + $0x230] sm:$0xff]
  %v85 = vld [vmem:[%s0 + $0x238] sm:$0xff]
  %v86 = vld [vmem:[%s0 + $0x240] sm:$0xff]
  %v87 = vld [vmem:[%s0 + $0x248] sm:$0xff]
  %v88 = vld [vmem:[%s0 + $0x250] sm:$0xff]
  %v89 = vld [vmem:[%s0 + $0x258] sm:$0xff]
  %v90 = vld [vmem:[%s0 + $0x260] sm:$0xff]
  %v91 = vld [vmem:[%s0 + $0x268] sm:$0xff]
  %v92 = vld [vmem:[%s0 + $0x270] sm:$0xff]
  %v93 = vld [vmem:[%s0 + $0x278] sm:$0xff]
  %v94 = vld [vmem:[%s0 + $0x280] sm:$0xff]
  %v95 = vld [vmem:[%s0 + $0x288] sm:$0xff]
  %v96 = vld [vmem:[%s0 + $0x290] sm:$0xff]
  %v97 = vld [vmem:[%s0 + $0x298] sm:$0xff]
  %v98 = vld [vmem:[%s0 + $0x2a0] sm:$0xff]
  %v99 = vld [vmem:[%s0 + $0x2a8] sm:$0xff]
  %v100 = vld [vmem:[%s0 + $0x2b0] sm:$0xff]
  %v101 = vld [vmem:[%s0 + $0x2b8] sm:$0xff]
  %v102 = vld [vmem:[%s0 + $0x2c0] sm:$0xff]
  %v103 = vld [vmem:[%s0 + $0x2c8] sm:$0xff]
  %v104 = vld [vmem:[%s0 + $0x2d0] sm:$0xff]
  %v105 = vld [vmem:[%s0 + $0x2d8] sm:$0xff]
  %v106 = vld [vmem:[%s0 + $0x2e0] sm:$0xff]
  %v107 = vld [vmem:[%s0 + $0x2e8] sm:$0xff]
  %v108 = vld [vmem:[%s0 + $0x2f0] sm:$0xff]
  %v109 = vld [vmem:[%s0 + $0x2f8] sm:$0xff]
  %v110 = vld [vmem:[%s0 + $0x300] sm:$0xff]
  %v111 = vld [vmem:[%s0 + $0x308] sm:$0xff]
  %v112 = vld [vmem:[%s0 + $0x310] sm:$0xff]
  %v113 = vld [vmem:[%s0 + $0x318] sm:$0xff]
  %v114 = vld [vmem:[%s0 + $0x320] sm:$0xff]
  %v115 = vld [vmem:[%s0 + $0x328] sm:$0xff]
  %v116 = vld [vmem:[%s0 + $0x330] sm:$0xff]
  %v117 = vld [vmem:[%s0 + $0x338] sm:$0xff]
  %v118 = vld [vmem:[%s0 + $0x340] sm:$0xff]
  %v119 = vld [vmem:[%s0 + $0x348] sm:$0xff]
  %v120 = vld [vmem:[%s0 + $0x350] sm:$0xff]
  %v121 = vld [vmem:[%s0 + $0x358] sm:$0xff]
  %v122 = vld [vmem:[%s0 + $0x360] sm:$0xff]
  %v123 = vld [vmem:[%s0 + $0x368] sm:$0xff]
  %v124 = vld [vmem:[%s0 + $0x370] sm:$0xff]
  %v125 = vld [vmem:[%s0 + $0x378] sm:$0xff]
  %v126 = vld [vmem:[%s0 + $0x380] sm:$0xff]
  %v127 = vld [vmem:[%s0 + $0x388] sm:$0xff]
  %v128 = vld [vmem:[%s0 + $0x390] sm:$0xff]
  %v129 = vld [vmem:[%s0 + $0x398] sm:$0xff]
  %v130 = vld [vmem:[%s0 + $0x3a0] sm:$0xff]
  %v131 = vld [vmem:[%s0 + $0x3a8] sm:$0xff]
  %v132 = vld [vmem:[%s0 + $0x3b0] sm:$0xff]
  %v133 = vld [vmem:[%s0 + $0x3b8] sm:$0xff]
  %v134 = vld [vmem:[%s0 + $0x3c0] sm:$0xff]
  %v135 = vld [vmem:[%s0 + $0x3c8] sm:$0xff]
  %v136 = vld [vmem:[%s0 + $0x3d0] sm:$0xff]
  %v137 = vld [vmem:[%s0 + $0x3d8] sm:$0xff]
  %v138 = vld [vmem:[%s0 + $0x3e0] sm:$0xff]
  %v139 = vld [vmem:[%s0 + $0x3e8] sm:$0xff]
  %v140 = vld [vmem:[%s0 + $0x3f0] sm:$0xff]
  %v141 = vld [vmem:[%s0 + $0x3f8] sm:$0xff]
  %v142 = vld [vmem:[%s0 + $0x400] sm:$0xff]
  %v143 = vld [vmem:[%s0 + $0x408] sm:$0xff]
  %v144 = vld [vmem:[%s0 + $0x410] sm:$0xff]
  %v145 = vld [vmem:[%s0 + $0x418] sm:$0xff]
  %v146 = vld [vmem:[%s0 + $0x420] sm:$0xff]
  %v147 = vld [vmem:[%s0 + $0x428] sm:$0xff]
  %v148 = vld [vmem:[%s0 + $0x430] sm:$0xff]
  %v149 = vld [vmem:[%s0 + $0x438] sm:$0xff]
  %v150 = vld [vmem:[%s0 + $0x440] sm:$0xff]
  %v151 = vld [vmem:[%s0 + $0x448] sm:$0xff]
  %v152 = vld [vmem:[%s0 + $0x450] sm:$0xff]
  %v153 = vld [vmem:[%s0 + $0x458] sm:$0xff]
  %v154 = vld [vmem:[%s0 + $0x460] sm:$0xff]
  %v155 = vld [vmem:[%s0 + $0x468] sm:$0xff]
  %v156 = vld [vmem:[%s0 + $0x470] sm:$0xff]
  %v157 = vld [vmem:[%s0 + $0x478] sm:$0xff]
  %v158 = vld [vmem:[%s0 + $0x480] sm:$0xff]
  %v159 = vld [vmem:[%s0 + $0x488] sm:$0xff]
  %v160 = vld [vmem:[%s0 + $0x490] sm:$0xff]
  %v161 = vld [vmem:[%s0 + $0x498] sm:$0xff]
  %v162 = vld [vmem:[%s0 + $0x4a0] sm:$0xff]
  %v163 = vld [vmem:[%s0 + $0x4a8] sm:$0xff]
  %v164 = vld [vmem:[%s0 + $0x4b0] sm:$0xff]
  %v165 = vld [vmem:[%s0 + $0x4b8] sm:$0xff]
  %v166 = vld [vmem:[%s0 + $0x4c0] sm:$0xff]
  %v167 = vld [vmem:[%s0 + $0x4c8] sm:$0xff]
  %v168 = vld [vmem:[%s0 + $0x4d0] sm:$0xff]
  %v169 = vld [vmem:[%s0 + $0x4d8] sm:$0xff]
  %v170 = vld [vmem:[%s0 + $0x4e0] sm:$0xff]
  %v171 = vld [vmem:[%s0 + $0x4e8] sm:$0xff]
  %v172 = vld [vmem:[%s0 + $0x4f0] sm:$0xff]
  %v173 = vld [vmem:[%s0 + $0x4f8] sm:$0xff]
  %v174 = vld [vmem:[%s0 + $0x500] sm:$0xff]
  %v175 = vld [vmem:[%s0 + $0x508] sm:$0xff]
  %v176 = vld [vmem:[%s0 + $0x510] sm:$0xff]
  %v177 = vld [vmem:[%s0 + $0x518] sm:$0xff]
  %v178 = vld [vmem:[%s0 + $0x520] sm:$0xff]
  %v179 = vld [vmem:[%s0 + $0x528] sm:$0xff]
  %v180 = vld [vmem:[%s0 + $0x530] sm:$0xff]
  %v181 = vld [vmem:[%s0 + $0x538] sm:$0xff]
  %v182 = vld [vmem:[%s0 + $0x540] sm:$0xff]
  %v183 = vld [vmem:[%s0 + $0x548] sm:$0xff]
  %v184 = vld [vmem:[%s0 + $0x550] sm:$0xff]
  %v185 = vld [vmem:[%s0 + $0x558] sm:$0xff]
  %v186 = vld [vmem:[%s0 + $0x560] sm:$0xff]
  %v187 = vld [vmem:[%s0 + $0x568] sm:$0xff]
  %v188 = vld [vmem:[%s0 + $0x570] sm:$0xff]
  %v189 = vld [vmem:[%s0 + $0x578] sm:$0xff]
  %v190 = vld [vmem:[%s0 + $0x580] sm:$0xff]
  %v191 = vld [vmem:[%s0 + $0x588] sm:$0xff]
  %v192 = vld [vmem:[%s0 + $0x590] sm:$0xff]
  %v193 = vld [vmem:[%s0 + $0x598] sm:$0xff]
  %v194 = vld [vmem:[%s0 + $0x5a0] sm:$0xff]
  %v195 = vld [vmem:[%s0 + $0x5a8] sm:$0xff]
  %v196 = vld [vmem:[%s0 + $0x5b0] sm:$0xff]
  %v197 = vld [vmem:[%s0 + $0x5b8] sm:$0xff]
  %v198 = vld [vmem:[%s0 + $0x5c0] sm:$0xff]
  %v199 = vld [vmem:[%s0 + $0x5c8] sm:$0xff]
  %v200 = vld [vmem:[%s0 + $0x5d0] sm:$0xff]
  %v201 = vld [vmem:[%s0 + $0x5d8] sm:$0xff]
  %v202 = vld [vmem:[%s0 + $0x5e0] sm:$0xff]
  %v203 = vld [vmem:[%s0 + $0x5e8] sm:$0xff]
  %v204 = vld [vmem:[%s0 + $0x5f0] sm:$0xff]
  %v205 = vld [vmem:[%s0 + $0x5f8] sm:$0xff]
  %v206 = vld [vmem:[%s0 + $0x600] sm:$0xff]
  %v207 = vld [vmem:[%s0 + $0x608] sm:$0xff]
  %v208 = vld [vmem:[%s0 + $0x610] sm:$0xff]
  %v209 = vld [vmem:[%s0 + $0x618] sm:$0xff]
  %v210 = vld [vmem:[%s0 + $0x620] sm:$0xff]
  %v211 = vld [vmem:[%s0 + $0x628] sm:$0xff]
  %v212 = vld [vmem:[%s0 + $0x630] sm:$0xff]
  %v213 = vld [vmem:[%s0 + $0x638] sm:$0xff]
  %v214 = vmul.f32 %v14, 0.003921569
  %v215 = vmul.f32 %v15, 0.003921569
  %v216 = vmul.f32 %v16, 0.003921569
  %v217 = vmul.f32 %v17, 0.003921569
  %v218 = vmul.f32 %v18, 0.003921569
  %v219 = vmul.f32 %v19, 0.003921569
  %v220 = vmul.f32 %v20, 0.003921569
  %v221 = vmul.f32 %v21, 0.003921569
  %v222 = vmul.f32 %v22, 0.003921569
  %v223 = vmul.f32 %v23, 0.003921569
  %v224 = vmul.f32 %v24, 0.003921569
  %v225 = vmul.f32 %v25, 0.003921569
  %v226 = vmul.f32 %v26, 0.003921569
  %v227 = vmul.f32 %v27, 0.003921569
  %v228 = vmul.f32 %v28, 0.003921569
  %v229 = vmul.f32 %v29, 0.003921569
  %v230 = vmul.f32 %v30, 0.003921569
  %v231 = vmul.f32 %v31, 0.003921569
  %v232 = vmul.f32 %v32, 0.003921569
  %v233 = vmul.f32 %v33, 0.003921569
  %v234 = vmul.f32 %v34, 0.003921569
  %v235 = vmul.f32 %v35, 0.003921569
  %v236 = vmul.f32 %v36, 0.003921569
  %v237 = vmul.f32 %v37, 0.003921569
  %v238 = vmul.f32 %v38, 0.003921569
  %v239 = vmul.f32 %v39, 0.003921569
  %v240 = vmul.f32 %v40, 0.003921569
  %v241 = vmul.f32 %v41, 0.003921569
  %v242 = vmul.f32 %v42, 0.003921569
  %v243 = vmul.f32 %v43, 0.003921569
  %v244 = vmul.f32 %v44, 0.003921569
  %v245 = vmul.f32 %v45, 0.003921569
  %v246 = vmul.f32 %v46, 0.003921569
  %v247 = vmul.f32 %v47, 0.003921569
  %v248 = vmul.f32 %v48, 0.003921569
  %v249 = vmul.f32 %v49, 0.003921569
  %v250 = vmul.f32 %v50, 0.003921569
  %v251 = vmul.f32 %v51, 0.003921569
  %v252 = vmul.f32 %v52, 0.003921569
  %v253 = vmul.f32 %v53, 0.003921569
  %v254 = vmul.f32 %v54, 0.003921569
  %v255 = vmul.f32 %v55, 0.003921569
  %v256 = vmul.f32 %v56, 0.003921569
  %v257 = vmul.f32 %v57, 0.003921569
  %v258 = vmul.f32 %v58, 0.003921569
  %v259 = vmul.f32 %v59, 0.003921569
  %v260 = vmul.f32 %v60, 0.003921569
  %v261 = vmul.f32 %v61, 0.003921569
  %v262 = vmul.f32 %v62, 0.003921569
  %v263 = vmul.f32 %v63, 0.003921569
  %v264 = vmul.f32 %v64, 0.003921569
  %v265 = vmul.f32 %v65, 0.003921569
  %v266 = vmul.f32 %v66, 0.003921569
  %v267 = vmul.f32 %v67, 0.003921569
  %v268 = vmul.f32 %v68, 0.003921569
  %v269 = vmul.f32 %v69, 0.003921569
  %v270 = vmul.f32 %v70, 0.003921569
  %v271 = vmul.f32 %v71, 0.003921569
  %v272 = vmul.f32 %v72, 0.003921569
  %v273 = vmul.f32 %v73, 0.003921569
  %v274 = vmul.f32 %v74, 0.003921569
  %v275 = vmul.f32 %v75, 0.003921569
  %v276 = vmul.f32 %v76, 0.003921569
  %v277 = vmul.f32 %v77, 0.003921569
  %v278 = vmul.f32 %v78, 0.003921569
  %v279 = vmul.f32 %v79, 0.003921569
  %v280 = vmul.f32 %v80, 0.003921569
  %v281 = vmul.f32 %v81, 0.003921569
  %v282 = vmul.f32 %v82, 0.003921569
  %v283 = vmul.f32 %v83, 0.003921569
  %v284 = vmul.f32 %v84, 0.003921569
  %v285 = vmul.f32 %v85, 0.003921569
  %v286 = vmul.f32 %v86, 0.003921569
  %v287 = vmul.f32 %v87, 0.003921569
  %v288 = vmul.f32 %v88, 0.003921569
  %v289 = vmul.f32 %v89, 0.003921569
  %v290 = vmul.f32 %v90, 0.003921569
  %v291 = vmul.f32 %v91, 0.003921569
  %v292 = vmul.f32 %v92, 0.003921569
  %v293 = vmul.f32 %v93, 0.003921569
  %v294 = vmul.f32 %v94, 0.003921569
  %v295 = vmul.f32 %v95, 0.003921569
  %v296 = vmul.f32 %v96, 0.003921569
  %v297 = vmul.f32 %v97, 0.003921569
  %v298 = vmul.f32 %v98, 0.003921569
  %v299 = vmul.f32 %v99, 0.003921569
  %v300 = vmul.f32 %v100, 0.003921569
  %v301 = vmul.f32 %v101, 0.003921569
  %v302 = vmul.f32 %v102, 0.003921569
  %v303 = vmul.f32 %v103, 0.003921569
  %v304 = vmul.f32 %v104, 0.003921569
  %v305 = vmul.f32 %v105, 0.003921569
  %v306 = vmul.f32 %v106, 0.003921569
  %v307 = vmul.f32 %v107, 0.003921569
  %v308 = vmul.f32 %v108, 0.003921569
  %v309 = vmul.f32 %v109, 0.003921569
  %v310 = vmul.f32 %v110, 0.003921569
  %v311 = vmul.f32 %v111, 0.003921569
  %v312 = vmul.f32 %v112, 0.003921569
  %v313 = vmul.f32 %v113, 0.003921569
  %v314 = vmul.f32 %v114, 0.003921569
  %v315 = vmul.f32 %v115, 0.003921569
  %v316 = vmul.f32 %v116, 0.003921569
  %v317 = vmul.f32 %v117, 0.003921569
  %v318 = vmul.f32 %v118, 0.003921569
  %v319 = vmul.f32 %v119, 0.003921569
  %v320 = vmul.f32 %v120, 0.003921569
  %v321 = vmul.f32 %v121, 0.003921569
  %v322 = vmul.f32 %v122, 0.003921569
  %v323 = vmul.f32 %v123, 0.003921569
  %v324 = vmul.f32 %v124, 0.003921569
  %v325 = vmul.f32 %v125, 0.003921569
  %v326 = vmul.f32 %v126, 0.003921569
  %v327 = vmul.f32 %v127, 0.003921569
  %v328 = vmul.f32 %v128, 0.003921569
  %v329 = vmul.f32 %v129, 0.003921569
  %v330 = vmul.f32 %v130, 0.003921569
  %v331 = vmul.f32 %v131, 0.003921569
  %v332 = vmul.f32 %v132, 0.003921569
  %v333 = vmul.f32 %v133, 0.003921569
  %v334 = vmul.f32 %v134, 0.003921569
  %v335 = vmul.f32 %v135, 0.003921569
  %v336 = vmul.f32 %v136, 0.003921569
  %v337 = vmul.f32 %v137, 0.003921569
  %v338 = vmul.f32 %v138, 0.003921569
  %v339 = vmul.f32 %v139, 0.003921569
  %v340 = vmul.f32 %v140, 0.003921569
  %v341 = vmul.f32 %v141, 0.003921569
  %v342 = vmul.f32 %v142, 0.003921569
  %v343 = vmul.f32 %v143, 0.003921569
  %v344 = vmul.f32 %v144, 0.003921569
  %v345 = vmul.f32 %v145, 0.003921569
  %v346 = vmul.f32 %v146, 0.003921569
  %v347 = vmul.f32 %v147, 0.003921569
  %v348 = vmul.f32 %v148, 0.003921569
  %v349 = vmul.f32 %v149, 0.003921569
  %v350 = vmul.f32 %v150, 0.003921569
  %v351 = vmul.f32 %v151, 0.003921569
  %v352 = vmul.f32 %v152, 0.003921569
  %v353 = vmul.f32 %v153, 0.003921569
  %v354 = vmul.f32 %v154, 0.003921569
  %v355 = vmul.f32 %v155, 0.003921569
  %v356 = vmul.f32 %v156, 0.003921569
  %v357 = vmul.f32 %v157, 0.003921569
  %v358 = vmul.f32 %v158, 0.003921569
  %v359 = vmul.f32 %v159, 0.003921569
  %v360 = vmul.f32 %v160, 0.003921569
  %v361 = vmul.f32 %v161, 0.003921569
  %v362 = vmul.f32 %v162, 0.003921569
  %v363 = vmul.f32 %v163, 0.003921569
  %v364 = vmul.f32 %v164, 0.003921569
  %v365 = vmul.f32 %v165, 0.003921569
  %v366 = vmul.f32 %v166, 0.003921569
  %v367 = vmul.f32 %v167, 0.003921569
  %v368 = vmul.f32 %v168, 0.003921569
  %v369 = vmul.f32 %v169, 0.003921569
  %v370 = vmul.f32 %v170, 0.003921569
  %v371 = vmul.f32 %v171, 0.003921569
  %v372 = vmul.f32 %v172, 0.003921569
  %v373 = vmul.f32 %v173, 0.003921569
  %v374 = vmul.f32 %v174, 0.003921569
  %v375 = vmul.f32 %v175, 0.003921569
  %v376 = vmul.f32 %v176, 0.003921569
  %v377 = vmul.f32 %v177, 0.003921569
  %v378 = vmul.f32 %v178, 0.003921569
  %v379 = vmul.f32 %v179, 0.003921569
  %v380 = vmul.f32 %v180, 0.003921569
  %v381 = vmul.f32 %v181, 0.003921569
  %v382 = vmul.f32 %v182, 0.003921569
  %v383 = vmul.f32 %v183, 0.003921569
  %v384 = vmul.f32 %v184, 0.003921569
  %v385 = vmul.f32 %v185, 0.003921569
  %v386 = vmul.f32 %v186, 0.003921569
  %v387 = vmul.f32 %v187, 0.003921569
  %v388 = vmul.f32 %v188, 0.003921569
  %v389 = vmul.f32 %v189, 0.003921569
  %v390 = vmul.f32 %v190, 0.003921569
  %v391 = vmul.f32 %v191, 0.003921569
  %v392 = vmul.f32 %v192, 0.003921569
  %v393 = vmul.f32 %v193, 0.003921569
  %v394 = vmul.f32 %v194, 0.003921569
  %v395 = vmul.f32 %v195, 0.003921569
  %v396 = vmul.f32 %v196, 0.003921569
  %v397 = vmul.f32 %v197, 0.003921569
  %v398 = vmul.f32 %v198, 0.003921569
  %v399 = vmul.f32 %v199, 0.003921569
  %v400 = vmul.f32 %v200, 0.003921569
  %v401 = vmul.f32 %v201, 0.003921569
  %v402 = vmul.f32 %v202, 0.003921569
  %v403 = vmul.f32 %v203, 0.003921569
  %v404 = vmul.f32 %v204, 0.003921569
  %v405 = vmul.f32 %v205, 0.003921569
  %v406 = vmul.f32 %v206, 0.003921569
  %v407 = vmul.f32 %v207, 0.003921569
  %v408 = vmul.f32 %v208, 0.003921569
  %v409 = vmul.f32 %v209, 0.003921569
  %v410 = vmul.f32 %v210, 0.003921569
  %v411 = vmul.f32 %v211, 0.003921569
  %v412 = vmul.f32 %v212, 0.003921569
  %v413 = vmul.f32 %v213, 0.003921569
  %v414 = vsub.f32 %v214, 0.5
  %v415 = vsub.f32 %v215, 0.5
  %v416 = vsub.f32 %v216, 0.5
  %v417 = vsub.f32 %v217, 0.5
  %v418 = vsub.f32 %v218, 0.5
  %v419 = vsub.f32 %v219, 0.5
  %v420 = vsub.f32 %v220, 0.5
  %v421 = vsub.f32 %v221, 0.5
  %v422 = vsub.f32 %v222, 0.5
  %v423 = vsub.f32 %v223, 0.5
  %v424 = vsub.f32 %v224, 0.5
  %v425 = vsub.f32 %v225, 0.5
  %v426 = vsub.f32 %v226, 0.5
  %v427 = vsub.f32 %v227, 0.5
  %v428 = vsub.f32 %v228, 0.5
  %v429 = vsub.f32 %v229, 0.5
  %v430 = vsub.f32 %v230, 0.5
  %v431 = vsub.f32 %v231, 0.5
  %v432 = vsub.f32 %v232, 0.5
  %v433 = vsub.f32 %v233, 0.5
  %v434 = vsub.f32 %v234, 0.5
  %v435 = vsub.f32 %v235, 0.5
  %v436 = vsub.f32 %v236, 0.5
  %v437 = vsub.f32 %v237, 0.5
  %v438 = vsub.f32 %v238, 0.5
  %v439 = vsub.f32 %v239, 0.5
  %v440 = vsub.f32 %v240, 0.5
  %v441 = vsub.f32 %v241, 0.5
  %v442 = vsub.f32 %v242, 0.5
  %v443 = vsub.f32 %v243, 0.5
  %v444 = vsub.f32 %v244, 0.5
  %v445 = vsub.f32 %v245, 0.5
  %v446 = vsub.f32 %v246, 0.5
  %v447 = vsub.f32 %v247, 0.5
  %v448 = vsub.f32 %v248, 0.5
  %v449 = vsub.f32 %v249, 0.5
  %v450 = vsub.f32 %v250, 0.5
  %v451 = vsub.f32 %v251, 0.5
  %v452 = vsub.f32 %v252, 0.5
  %v453 = vsub.f32 %v253, 0.5
  %v454 = vsub.f32 %v254, 0.5
  %v455 = vsub.f32 %v255, 0.5
  %v456 = vsub.f32 %v256, 0.5
  %v457 = vsub.f32 %v257, 0.5
  %v458 = vsub.f32 %v258, 0.5
  %v459 = vsub.f32 %v259, 0.5
  %v460 = vsub.f32 %v260, 0.5
  %v461 = vsub.f32 %v261, 0.5
  %v462 = vsub.f32 %v262, 0.5
  %v463 = vsub.f32 %v263, 0.5
  %v464 = vsub.f32 %v264, 0.5
  %v465 = vsub.f32 %v265, 0.5
  %v466 = vsub.f32 %v266, 0.5
  %v467 = vsub.f32 %v267, 0.5
  %v468 = vsub.f32 %v268, 0.5
  %v469 = vsub.f32 %v269, 0.5
  %v470 = vsub.f32 %v270, 0.5
  %v471 = vsub.f32 %v271, 0.5
  %v472 = vsub.f32 %v272, 0.5
  %v473 = vsub.f32 %v273, 0.5
  %v474 = vsub.f32 %v274, 0.5
  %v475 = vsub.f32 %v275, 0.5
  %v476 = vsub.f32 %v276, 0.5
  %v477 = vsub.f32 %v277, 0.5
  %v478 = vsub.f32 %v278, 0.5
  %v479 = vsub.f32 %v279, 0.5
  %v480 = vsub.f32 %v280, 0.5
  %v481 = vsub.f32 %v281, 0.5
  %v482 = vsub.f32 %v282, 0.5
  %v483 = vsub.f32 %v283, 0.5
  %v484 = vsub.f32 %v284, 0.5
  %v485 = vsub.f32 %v285, 0.5
  %v486 = vsub.f32 %v286, 0.5
  %v487 = vsub.f32 %v287, 0.5
  %v488 = vsub.f32 %v288, 0.5
  %v489 = vsub.f32 %v289, 0.5
  %v490 = vsub.f32 %v290, 0.5
  %v491 = vsub.f32 %v291, 0.5
  %v492 = vsub.f32 %v292, 0.5
  %v493 = vsub.f32 %v293, 0.5
  %v494 = vsub.f32 %v294, 0.5
  %v495 = vsub.f32 %v295, 0.5
  %v496 = vsub.f32 %v296, 0.5
  %v497 = vsub.f32 %v297, 0.5
  %v498 = vsub.f32 %v298, 0.5
  %v499 = vsub.f32 %v299, 0.5
  %v500 = vsub.f32 %v300, 0.5
  %v501 = vsub.f32 %v301, 0.5
  %v502 = vsub.f32 %v302, 0.5
  %v503 = vsub.f32 %v303, 0.5
  %v504 = vsub.f32 %v304, 0.5
  %v505 = vsub.f32 %v305, 0.5
  %v506 = vsub.f32 %v306, 0.5
  %v507 = vsub.f32 %v307, 0.5
  %v508 = vsub.f32 %v308, 0.5
  %v509 = vsub.f32 %v309, 0.5
  %v510 = vsub.f32 %v310, 0.5
  %v511 = vsub.f32 %v311, 0.5
  %v512 = vsub.f32 %v312, 0.5
  %v513 = vsub.f32 %v313, 0.5
  %v514 = vsub.f32 %v314, 0.5
  %v515 = vsub.f32 %v315, 0.5
  %v516 = vsub.f32 %v316, 0.5
  %v517 = vsub.f32 %v317, 0.5
  %v518 = vsub.f32 %v318, 0.5
  %v519 = vsub.f32 %v319, 0.5
  %v520 = vsub.f32 %v320, 0.5
  %v521 = vsub.f32 %v321, 0.5
  %v522 = vsub.f32 %v322, 0.5
  %v523 = vsub.f32 %v323, 0.5
  %v524 = vsub.f32 %v324, 0.5
  %v525 = vsub.f32 %v325, 0.5
  %v526 = vsub.f32 %v326, 0.5
  %v527 = vsub.f32 %v327, 0.5
  %v528 = vsub.f32 %v328, 0.5
  %v529 = vsub.f32 %v329, 0.5
  %v530 = vsub.f32 %v330, 0.5
  %v531 = vsub.f32 %v331, 0.5
  %v532 = vsub.f32 %v332, 0.5
  %v533 = vsub.f32 %v333, 0.5
  %v534 = vsub.f32 %v334, 0.5
  %v535 = vsub.f32 %v335, 0.5
  %v536 = vsub.f32 %v336, 0.5
  %v537 = vsub.f32 %v337, 0.5
  %v538 = vsub.f32 %v338, 0.5
  %v539 = vsub.f32 %v339, 0.5
  %v540 = vsub.f32 %v340, 0.5
  %v541 = vsub.f32 %v341, 0.5
  %v542 = vsub.f32 %v342, 0.5
  %v543 = vsub.f32 %v343, 0.5
  %v544 = vsub.f32 %v344, 0.5
  %v545 = vsub.f32 %v345, 0.5
  %v546 = vsub.f32 %v346, 0.5
  %v547 = vsub.f32 %v347, 0.5
  %v548 = vsub.f32 %v348, 0.5
  %v549 = vsub.f32 %v349, 0.5
  %v550 = vsub.f32 %v350, 0.5
  %v551 = vsub.f32 %v351, 0.5
  %v552 = vsub.f32 %v352, 0.5
  %v553 = vsub.f32 %v353, 0.5
  %v554 = vsub.f32 %v354, 0.5
  %v555 = vsub.f32 %v355, 0.5
  %v556 = vsub.f32 %v356, 0.5
  %v557 = vsub.f32 %v357, 0.5
  %v558 = vsub.f32 %v358, 0.5
  %v559 = vsub.f32 %v359, 0.5
  %v560 = vsub.f32 %v360, 0.5
  %v561 = vsub.f32 %v361, 0.5
  %v562 = vsub.f32 %v362, 0.5
  %v563 = vsub.f32 %v363, 0.5
  %v564 = vsub.f32 %v364, 0.5
  %v565 = vsub.f32 %v365, 0.5
  %v566 = vsub.f32 %v366, 0.5
  %v567 = vsub.f32 %v367, 0.5
  %v568 = vsub.f32 %v368, 0.5
  %v569 = vsub.f32 %v369, 0.5
  %v570 = vsub.f32 %v370, 0.5
  %v571 = vsub.f32 %v371, 0.5
  %v572 = vsub.f32 %v372, 0.5
  %v573 = vsub.f32 %v373, 0.5
  %v574 = vsub.f32 %v374, 0.5
  %v575 = vsub.f32 %v375, 0.5
  %v576 = vsub.f32 %v376, 0.5
  %v577 = vsub.f32 %v377, 0.5
  %v578 = vsub.f32 %v378, 0.5
  %v579 = vsub.f32 %v379, 0.5
  %v580 = vsub.f32 %v380, 0.5
  %v581 = vsub.f32 %v381, 0.5
  %v582 = vsub.f32 %v382, 0.5
  %v583 = vsub.f32 %v383, 0.5
  %v584 = vsub.f32 %v384, 0.5
  %v585 = vsub.f32 %v385, 0.5
  %v586 = vsub.f32 %v386, 0.5
  %v587 = vsub.f32 %v387, 0.5
  %v588 = vsub.f32 %v388, 0.5
  %v589 = vsub.f32 %v389, 0.5
  %v590 = vsub.f32 %v390, 0.5
  %v591 = vsub.f32 %v391, 0.5
  %v592 = vsub.f32 %v392, 0.5
  %v593 = vsub.f32 %v393, 0.5
  %v594 = vsub.f32 %v394, 0.5
  %v595 = vsub.f32 %v395, 0.5
  %v596 = vsub.f32 %v396, 0.5
  %v597 = vsub.f32 %v397, 0.5
  %v598 = vsub.f32 %v398, 0.5
  %v599 = vsub.f32 %v399, 0.5
  %v600 = vsub.f32 %v400, 0.5
  %v601 = vsub.f32 %v401, 0.5
  %v602 = vsub.f32 %v402, 0.5
  %v603 = vsub.f32 %v403, 0.5
  %v604 = vsub.f32 %v404, 0.5
  %v605 = vsub.f32 %v405, 0.5
  %v606 = vsub.f32 %v406, 0.5
  %v607 = vsub.f32 %v407, 0.5
  %v608 = vsub.f32 %v408, 0.5
  %v609 = vsub.f32 %v409, 0.5
  %v610 = vsub.f32 %v410, 0.5
  %v611 = vsub.f32 %v411, 0.5
  %v612 = vsub.f32 %v412, 0.5
  %v613 = vsub.f32 %v413, 0.5
  %v614 = vpack.c.bf16 %v416, %v414
  %v615 = vpack.c.bf16 %v417, %v415
  %v616 = vpack.c.bf16 %v420, %v418
  %v617 = vpack.c.bf16 %v421, %v419
  %v618 = vpack.c.bf16 %v424, %v422
  %v619 = vpack.c.bf16 %v425, %v423
  %v620 = vpack.c.bf16 %v428, %v426
  %v621 = vpack.c.bf16 %v429, %v427
  %v622 = vpack.c.bf16 %v432, %v430
  %v623 = vpack.c.bf16 %v433, %v431
  %v624 = vpack.c.bf16 %v436, %v434
  %v625 = vpack.c.bf16 %v437, %v435
  %v626 = vpack.c.bf16 %v440, %v438
  %v627 = vpack.c.bf16 %v441, %v439
  %v628 = vpack.c.bf16 %v444, %v442
  %v629 = vpack.c.bf16 %v445, %v443
  %v630 = vpack.c.bf16 %v448, %v446
  %v631 = vpack.c.bf16 %v449, %v447
  %v632 = vpack.c.bf16 %v452, %v450
  %v633 = vpack.c.bf16 %v453, %v451
  %v634 = vpack.c.bf16 %v456, %v454
  %v635 = vpack.c.bf16 %v457, %v455
  %v636 = vpack.c.bf16 %v460, %v458
  %v637 = vpack.c.bf16 %v461, %v459
  %v638 = vpack.c.bf16 %v464, %v462
  %v639 = vpack.c.bf16 %v465, %v463
  %v640 = vpack.c.bf16 %v468, %v466
  %v641 = vpack.c.bf16 %v469, %v467
  %v642 = vpack.c.bf16 %v472, %v470
  %v643 = vpack.c.bf16 %v473, %v471
  %v644 = vpack.c.bf16 %v476, %v474
  %v645 = vpack.c.bf16 %v477, %v475
  %v646 = vpack.c.bf16 %v480, %v478
  %v647 = vpack.c.bf16 %v481, %v479
  %v648 = vpack.c.bf16 %v484, %v482
  %v649 = vpack.c.bf16 %v485, %v483
  %v650 = vpack.c.bf16 %v488, %v486
  %v651 = vpack.c.bf16 %v489, %v487
  %v652 = vpack.c.bf16 %v492, %v490
  %v653 = vpack.c.bf16 %v493, %v491
  %v654 = vpack.c.bf16 %v496, %v494
  %v655 = vpack.c.bf16 %v497, %v495
  %v656 = vpack.c.bf16 %v500, %v498
  %v657 = vpack.c.bf16 %v501, %v499
  %v658 = vpack.c.bf16 %v504, %v502
  %v659 = vpack.c.bf16 %v505, %v503
  %v660 = vpack.c.bf16 %v508, %v506
  %v661 = vpack.c.bf16 %v509, %v507
  %v662 = vpack.c.bf16 %v512, %v510
  %v663 = vpack.c.bf16 %v513, %v511
  %v664 = vpack.c.bf16 %v516, %v514
  %v665 = vpack.c.bf16 %v517, %v515
  %v666 = vpack.c.bf16 %v520, %v518
  %v667 = vpack.c.bf16 %v521, %v519
  %v668 = vpack.c.bf16 %v524, %v522
  %v669 = vpack.c.bf16 %v525, %v523
  %v670 = vpack.c.bf16 %v528, %v526
  %v671 = vpack.c.bf16 %v529, %v527
  %v672 = vpack.c.bf16 %v532, %v530
  %v673 = vpack.c.bf16 %v533, %v531
  %v674 = vpack.c.bf16 %v536, %v534
  %v675 = vpack.c.bf16 %v537, %v535
  %v676 = vpack.c.bf16 %v540, %v538
  %v677 = vpack.c.bf16 %v541, %v539
  %v678 = vpack.c.bf16 %v544, %v542
  %v679 = vpack.c.bf16 %v545, %v543
  %v680 = vpack.c.bf16 %v548, %v546
  %v681 = vpack.c.bf16 %v549, %v547
  %v682 = vpack.c.bf16 %v552, %v550
  %v683 = vpack.c.bf16 %v553, %v551
  %v684 = vpack.c.bf16 %v556, %v554
  %v685 = vpack.c.bf16 %v557, %v555
  %v686 = vpack.c.bf16 %v560, %v558
  %v687 = vpack.c.bf16 %v561, %v559
  %v688 = vpack.c.bf16 %v564, %v562
  %v689 = vpack.c.bf16 %v565, %v563
  %v690 = vpack.c.bf16 %v568, %v566
  %v691 = vpack.c.bf16 %v569, %v567
  %v692 = vpack.c.bf16 %v572, %v570
  %v693 = vpack.c.bf16 %v573, %v571
  %v694 = vpack.c.bf16 %v576, %v574
  %v695 = vpack.c.bf16 %v577, %v575
  %v696 = vpack.c.bf16 %v580, %v578
  %v697 = vpack.c.bf16 %v581, %v579
  %v698 = vpack.c.bf16 %v584, %v582
  %v699 = vpack.c.bf16 %v585, %v583
  %v700 = vpack.c.bf16 %v588, %v586
  %v701 = vpack.c.bf16 %v589, %v587
  %v702 = vpack.c.bf16 %v592, %v590
  %v703 = vpack.c.bf16 %v593, %v591
  %v704 = vpack.c.bf16 %v596, %v594
  %v705 = vpack.c.bf16 %v597, %v595
  %v706 = vpack.c.bf16 %v600, %v598
  %v707 = vpack.c.bf16 %v601, %v599
  %v708 = vpack.c.bf16 %v604, %v602
  %v709 = vpack.c.bf16 %v605, %v603
  %v710 = vpack.c.bf16 %v608, %v606
  %v711 = vpack.c.bf16 %v609, %v607
  %v712 = vpack.c.bf16 %v612, %v610
  %v713 = vpack.c.bf16 %v613, %v611
  %v714 = vld [vmem:[%s1] sm:$0xf]
  %v715 = vld [vmem:[%s1 + $0x4] sm:$0xf]
  %v716 = vld [vmem:[%s1 + $0x8] sm:$0xf]
  %v717 = vld [vmem:[%s1 + $0xc] sm:$0xf]
  %v718 = vld [vmem:[%s1 + $0x10] sm:$0xf]
  %v719 = vld [vmem:[%s1 + $0x14] sm:$0xf]
  %v720 = vld [vmem:[%s1 + $0x18] sm:$0xf]
  %v721 = vld [vmem:[%s1 + $0x1c] sm:$0xf]
  %v722 = vld [vmem:[%s1 + $0x20] sm:$0xf]
  %v723 = vld [vmem:[%s1 + $0x24] sm:$0xf]
  %v724 = vld [vmem:[%s1 + $0x28] sm:$0xf]
  %v725 = vld [vmem:[%s1 + $0x2c] sm:$0xf]
  %v726 = vld [vmem:[%s1 + $0x30] sm:$0xf]
  %v727 = vld [vmem:[%s1 + $0x34] sm:$0xf]
  %v728 = vld [vmem:[%s1 + $0x38] sm:$0xf]
  %v729 = vld [vmem:[%s1 + $0x3c] sm:$0xf]
  %v730 = vld [vmem:[%s1 + $0x40] sm:$0xf]
  %v731 = vld [vmem:[%s1 + $0x44] sm:$0xf]
  %v732 = vld [vmem:[%s1 + $0x48] sm:$0xf]
  %v733 = vld [vmem:[%s1 + $0x4c] sm:$0xf]
  %v734 = vld [vmem:[%s1 + $0x50] sm:$0xf]
  %v735 = vld [vmem:[%s1 + $0x54] sm:$0xf]
  %v736 = vld [vmem:[%s1 + $0x58] sm:$0xf]
  %v737 = vld [vmem:[%s1 + $0x5c] sm:$0xf]
  %v738 = vld [vmem:[%s1 + $0x60] sm:$0xf]
  %v739 = vld [vmem:[%s1 + $0x64] sm:$0xf]
  %v740 = vld [vmem:[%s1 + $0x68] sm:$0xf]
  %v741 = vld [vmem:[%s1 + $0x6c] sm:$0xf]
  %v742 = vld [vmem:[%s1 + $0x70] sm:$0xf]
  %v743 = vld [vmem:[%s1 + $0x74] sm:$0xf]
  %v744 = vld [vmem:[%s1 + $0x78] sm:$0xf]
  %v745 = vld [vmem:[%s1 + $0x7c] sm:$0xf]
  %v746 = vld [vmem:[%s2] sm:$0x1]
  %v748 = vperm.slane %v746, 0
  %v782 = vunpack.c.l.b16 %v714
  %v783 = vunpack.c.l.b16 %v715
  %v784 = vunpack.c.l.b16 %v716
  %v785 = vunpack.c.l.b16 %v717
  %v786 = vunpack.c.l.b16 %v718
  %v787 = vunpack.c.l.b16 %v719
  %v788 = vunpack.c.l.b16 %v720
  %v789 = vunpack.c.l.b16 %v721
  %v790 = vunpack.c.l.b16 %v722
  %v791 = vunpack.c.l.b16 %v723
  %v792 = vunpack.c.l.b16 %v724
  %v793 = vunpack.c.l.b16 %v725
  %v794 = vunpack.c.l.b16 %v726
  %v795 = vunpack.c.l.b16 %v727
  %v796 = vunpack.c.l.b16 %v728
  %v797 = vunpack.c.l.b16 %v729
  %v798 = vunpack.c.l.b16 %v730
  %v799 = vunpack.c.l.b16 %v731
  %v800 = vunpack.c.l.b16 %v732
  %v801 = vunpack.c.l.b16 %v733
  %v802 = vunpack.c.l.b16 %v734
  %v803 = vunpack.c.l.b16 %v735
  %v804 = vunpack.c.l.b16 %v736
  %v805 = vunpack.c.l.b16 %v737
  %v806 = vunpack.c.l.b16 %v738
  %v807 = vunpack.c.l.b16 %v739
  %v808 = vunpack.c.l.b16 %v740
  %v809 = vunpack.c.l.b16 %v741
  %v810 = vunpack.c.l.b16 %v742
  %v811 = vunpack.c.l.b16 %v743
  %v812 = vunpack.c.l.b16 %v744
  %v813 = vunpack.c.l.b16 %v745
  %v814 = vpack.c.b16 %v783, %v782
  %v815 = vpack.c.b16 %v785, %v784
  %v816 = vpack.c.b16 %v787, %v786
  %v817 = vpack.c.b16 %v789, %v788
  %v818 = vpack.c.b16 %v791, %v790
  %v819 = vpack.c.b16 %v793, %v792
  %v820 = vpack.c.b16 %v795, %v794
  %v821 = vpack.c.b16 %v797, %v796
  %v822 = vpack.c.b16 %v799, %v798
  %v823 = vpack.c.b16 %v801, %v800
  %v824 = vpack.c.b16 %v803, %v802
  %v825 = vpack.c.b16 %v805, %v804
  %v826 = vpack.c.b16 %v807, %v806
  %v827 = vpack.c.b16 %v809, %v808
  %v828 = vpack.c.b16 %v811, %v810
  %v829 = vpack.c.b16 %v813, %v812
  %846 = vmatpush.bf16.msra.mxu0 %v821
  %847 = vmatpush.bf16.msra.mxu0 %v820
  %848 = vmatpush.bf16.msra.mxu0 %v819
  %849 = vmatpush.bf16.msra.mxu0 %v818
  %850 = vmatpush.bf16.msra.mxu0 %v817
  %851 = vmatpush.bf16.msra.mxu0 %v816
  %852 = vmatpush.bf16.msra.mxu0 %v815
  %853 = vmatpush.bf16.msra.mxu0 %v814
  %854 = vmatmul.bf16.gmra.mxu0 %v614
  %v855 = vpop.f32.mrf.mxu0
  %v856 = vadd.f32 %v748, %v855
  %v857 = vpop.f32.mrf.mxu0
  %v858 = vadd.f32 %v748, %v857
  %859 = vmatmul.bf16.gmra.mxu0 %v616
  %v860 = vpop.f32.mrf.mxu0
  %v861 = vadd.f32 %v748, %v860
  %v862 = vpop.f32.mrf.mxu0
  %v863 = vadd.f32 %v748, %v862
  %864 = vmatmul.bf16.gmra.mxu0 %v618
  %v865 = vpop.f32.mrf.mxu0
  %v866 = vadd.f32 %v748, %v865
  %v867 = vpop.f32.mrf.mxu0
  %v868 = vadd.f32 %v748, %v867
  %869 = vmatmul.bf16.gmra.mxu0 %v620
  %v870 = vpop.f32.mrf.mxu0
  %v871 = vadd.f32 %v748, %v870
  %v872 = vpop.f32.mrf.mxu0
  %v873 = vadd.f32 %v748, %v872
  %874 = vmatmul.bf16.gmra.mxu0 %v622
  %v875 = vpop.f32.mrf.mxu0
  %v876 = vadd.f32 %v748, %v875
  %v877 = vpop.f32.mrf.mxu0
  %v878 = vadd.f32 %v748, %v877
  %879 = vmatmul.bf16.gmra.mxu0 %v624
  %v880 = vpop.f32.mrf.mxu0
  %v881 = vadd.f32 %v748, %v880
  %v882 = vpop.f32.mrf.mxu0
  %v883 = vadd.f32 %v748, %v882
  %884 = vmatmul.bf16.gmra.mxu0 %v626
  %v885 = vpop.f32.mrf.mxu0
  %v886 = vadd.f32 %v748, %v885
  %v887 = vpop.f32.mrf.mxu0
  %v888 = vadd.f32 %v748, %v887
  %889 = vmatmul.bf16.gmra.mxu0 %v628
  %v890 = vpop.f32.mrf.mxu0
  %v891 = vadd.f32 %v748, %v890
  %v892 = vpop.f32.mrf.mxu0
  %v893 = vadd.f32 %v748, %v892
  %894 = vmatmul.bf16.gmra.mxu0 %v630
  %v895 = vpop.f32.mrf.mxu0
  %v896 = vadd.f32 %v748, %v895
  %v897 = vpop.f32.mrf.mxu0
  %v898 = vadd.f32 %v748, %v897
  %899 = vmatmul.bf16.gmra.mxu0 %v632
  %v900 = vpop.f32.mrf.mxu0
  %v901 = vadd.f32 %v748, %v900
  %v902 = vpop.f32.mrf.mxu0
  %v903 = vadd.f32 %v748, %v902
  %904 = vmatmul.bf16.gmra.mxu0 %v634
  %v905 = vpop.f32.mrf.mxu0
  %v906 = vadd.f32 %v748, %v905
  %v907 = vpop.f32.mrf.mxu0
  %v908 = vadd.f32 %v748, %v907
  %909 = vmatmul.bf16.gmra.mxu0 %v636
  %v910 = vpop.f32.mrf.mxu0
  %v911 = vadd.f32 %v748, %v910
  %v912 = vpop.f32.mrf.mxu0
  %v913 = vadd.f32 %v748, %v912
  %914 = vmatmul.bf16.gmra.mxu0 %v638
  %v915 = vpop.f32.mrf.mxu0
  %v916 = vadd.f32 %v748, %v915
  %v917 = vpop.f32.mrf.mxu0
  %v918 = vadd.f32 %v748, %v917
  %919 = vmatmul.bf16.gmra.mxu0 %v640
  %v920 = vpop.f32.mrf.mxu0
  %v921 = vadd.f32 %v748, %v920
  %v922 = vpop.f32.mrf.mxu0
  %v923 = vadd.f32 %v748, %v922
  %924 = vmatmul.bf16.gmra.mxu0 %v642
  %v925 = vpop.f32.mrf.mxu0
  %v926 = vadd.f32 %v748, %v925
  %v927 = vpop.f32.mrf.mxu0
  %v928 = vadd.f32 %v748, %v927
  %929 = vmatmul.bf16.gmra.mxu0 %v644
  %v930 = vpop.f32.mrf.mxu0
  %v931 = vadd.f32 %v748, %v930
  %v932 = vpop.f32.mrf.mxu0
  %v933 = vadd.f32 %v748, %v932
  %934 = vmatmul.bf16.gmra.mxu0 %v646
  %v935 = vpop.f32.mrf.mxu0
  %v936 = vadd.f32 %v748, %v935
  %v937 = vpop.f32.mrf.mxu0
  %v938 = vadd.f32 %v748, %v937
  %939 = vmatmul.bf16.gmra.mxu0 %v648
  %v940 = vpop.f32.mrf.mxu0
  %v941 = vadd.f32 %v748, %v940
  %v942 = vpop.f32.mrf.mxu0
  %v943 = vadd.f32 %v748, %v942
  %944 = vmatmul.bf16.gmra.mxu0 %v650
  %v945 = vpop.f32.mrf.mxu0
  %v946 = vadd.f32 %v748, %v945
  %v947 = vpop.f32.mrf.mxu0
  %v948 = vadd.f32 %v748, %v947
  %949 = vmatmul.bf16.gmra.mxu0 %v652
  %v950 = vpop.f32.mrf.mxu0
  %v951 = vadd.f32 %v748, %v950
  %v952 = vpop.f32.mrf.mxu0
  %v953 = vadd.f32 %v748, %v952
  %954 = vmatmul.bf16.gmra.mxu0 %v654
  %v955 = vpop.f32.mrf.mxu0
  %v956 = vadd.f32 %v748, %v955
  %v957 = vpop.f32.mrf.mxu0
  %v958 = vadd.f32 %v748, %v957
  %959 = vmatmul.bf16.gmra.mxu0 %v656
  %v960 = vpop.f32.mrf.mxu0
  %v961 = vadd.f32 %v748, %v960
  %v962 = vpop.f32.mrf.mxu0
  %v963 = vadd.f32 %v748, %v962
  %964 = vmatmul.bf16.gmra.mxu0 %v658
  %v965 = vpop.f32.mrf.mxu0
  %v966 = vadd.f32 %v748, %v965
  %v967 = vpop.f32.mrf.mxu0
  %v968 = vadd.f32 %v748, %v967
  %969 = vmatmul.bf16.gmra.mxu0 %v660
  %v970 = vpop.f32.mrf.mxu0
  %v971 = vadd.f32 %v748, %v970
  %v972 = vpop.f32.mrf.mxu0
  %v973 = vadd.f32 %v748, %v972
  %974 = vmatmul.bf16.gmra.mxu0 %v662
  %v975 = vpop.f32.mrf.mxu0
  %v976 = vadd.f32 %v748, %v975
  %v977 = vpop.f32.mrf.mxu0
  %v978 = vadd.f32 %v748, %v977
  %979 = vmatmul.bf16.gmra.mxu0 %v664
  %v980 = vpop.f32.mrf.mxu0
  %v981 = vadd.f32 %v748, %v980
  %v982 = vpop.f32.mrf.mxu0
  %v983 = vadd.f32 %v748, %v982
  %984 = vmatmul.bf16.gmra.mxu0 %v666
  %v985 = vpop.f32.mrf.mxu0
  %v986 = vadd.f32 %v748, %v985
  %v987 = vpop.f32.mrf.mxu0
  %v988 = vadd.f32 %v748, %v987
  %989 = vmatmul.bf16.gmra.mxu0 %v668
  %v990 = vpop.f32.mrf.mxu0
  %v991 = vadd.f32 %v748, %v990
  %v992 = vpop.f32.mrf.mxu0
  %v993 = vadd.f32 %v748, %v992
  %994 = vmatmul.bf16.gmra.mxu0 %v670
  %v995 = vpop.f32.mrf.mxu0
  %v996 = vadd.f32 %v748, %v995
  %v997 = vpop.f32.mrf.mxu0
  %v998 = vadd.f32 %v748, %v997
  %999 = vmatmul.bf16.gmra.mxu0 %v672
  %v1000 = vpop.f32.mrf.mxu0
  %v1001 = vadd.f32 %v748, %v1000
  %v1002 = vpop.f32.mrf.mxu0
  %v1003 = vadd.f32 %v748, %v1002
  %1004 = vmatmul.bf16.gmra.mxu0 %v674
  %v1005 = vpop.f32.mrf.mxu0
  %v1006 = vadd.f32 %v748, %v1005
  %v1007 = vpop.f32.mrf.mxu0
  %v1008 = vadd.f32 %v748, %v1007
  %1009 = vmatmul.bf16.gmra.mxu0 %v676
  %v1010 = vpop.f32.mrf.mxu0
  %v1011 = vadd.f32 %v748, %v1010
  %v1012 = vpop.f32.mrf.mxu0
  %v1013 = vadd.f32 %v748, %v1012
  %1014 = vmatmul.bf16.gmra.mxu0 %v678
  %v1015 = vpop.f32.mrf.mxu0
  %v1016 = vadd.f32 %v748, %v1015
  %v1017 = vpop.f32.mrf.mxu0
  %v1018 = vadd.f32 %v748, %v1017
  %1019 = vmatmul.bf16.gmra.mxu0 %v680
  %v1020 = vpop.f32.mrf.mxu0
  %v1021 = vadd.f32 %v748, %v1020
  %v1022 = vpop.f32.mrf.mxu0
  %v1023 = vadd.f32 %v748, %v1022
  %1024 = vmatmul.bf16.gmra.mxu0 %v682
  %v1025 = vpop.f32.mrf.mxu0
  %v1026 = vadd.f32 %v748, %v1025
  %v1027 = vpop.f32.mrf.mxu0
  %v1028 = vadd.f32 %v748, %v1027
  %1029 = vmatmul.bf16.gmra.mxu0 %v684
  %v1030 = vpop.f32.mrf.mxu0
  %v1031 = vadd.f32 %v748, %v1030
  %v1032 = vpop.f32.mrf.mxu0
  %v1033 = vadd.f32 %v748, %v1032
  %1034 = vmatmul.bf16.gmra.mxu0 %v686
  %v1035 = vpop.f32.mrf.mxu0
  %v1036 = vadd.f32 %v748, %v1035
  %v1037 = vpop.f32.mrf.mxu0
  %v1038 = vadd.f32 %v748, %v1037
  %1039 = vmatmul.bf16.gmra.mxu0 %v688
  %v1040 = vpop.f32.mrf.mxu0
  %v1041 = vadd.f32 %v748, %v1040
  %v1042 = vpop.f32.mrf.mxu0
  %v1043 = vadd.f32 %v748, %v1042
  %1044 = vmatmul.bf16.gmra.mxu0 %v690
  %v1045 = vpop.f32.mrf.mxu0
  %v1046 = vadd.f32 %v748, %v1045
  %v1047 = vpop.f32.mrf.mxu0
  %v1048 = vadd.f32 %v748, %v1047
  %1049 = vmatmul.bf16.gmra.mxu0 %v692
  %v1050 = vpop.f32.mrf.mxu0
  %v1051 = vadd.f32 %v748, %v1050
  %v1052 = vpop.f32.mrf.mxu0
  %v1053 = vadd.f32 %v748, %v1052
  %1054 = vmatmul.bf16.gmra.mxu0 %v694
  %v1055 = vpop.f32.mrf.mxu0
  %v1056 = vadd.f32 %v748, %v1055
  %v1057 = vpop.f32.mrf.mxu0
  %v1058 = vadd.f32 %v748, %v1057
  %1059 = vmatmul.bf16.gmra.mxu0 %v696
  %v1060 = vpop.f32.mrf.mxu0
  %v1061 = vadd.f32 %v748, %v1060
  %v1062 = vpop.f32.mrf.mxu0
  %v1063 = vadd.f32 %v748, %v1062
  %1064 = vmatmul.bf16.gmra.mxu0 %v698
  %v1065 = vpop.f32.mrf.mxu0
  %v1066 = vadd.f32 %v748, %v1065
  %v1067 = vpop.f32.mrf.mxu0
  %v1068 = vadd.f32 %v748, %v1067
  %1069 = vmatmul.bf16.gmra.mxu0 %v700
  %v1070 = vpop.f32.mrf.mxu0
  %v1071 = vadd.f32 %v748, %v1070
  %v1072 = vpop.f32.mrf.mxu0
  %v1073 = vadd.f32 %v748, %v1072
  %1074 = vmatmul.bf16.gmra.mxu0 %v702
  %v1075 = vpop.f32.mrf.mxu0
  %v1076 = vadd.f32 %v748, %v1075
  %v1077 = vpop.f32.mrf.mxu0
  %v1078 = vadd.f32 %v748, %v1077
  %1079 = vmatmul.bf16.gmra.mxu0 %v704
  %v1080 = vpop.f32.mrf.mxu0
  %v1081 = vadd.f32 %v748, %v1080
  %v1082 = vpop.f32.mrf.mxu0
  %v1083 = vadd.f32 %v748, %v1082
  %1084 = vmatmul.bf16.gmra.mxu0 %v706
  %v1085 = vpop.f32.mrf.mxu0
  %v1086 = vadd.f32 %v748, %v1085
  %v1087 = vpop.f32.mrf.mxu0
  %v1088 = vadd.f32 %v748, %v1087
  %1089 = vmatmul.bf16.gmra.mxu0 %v708
  %v1090 = vpop.f32.mrf.mxu0
  %v1091 = vadd.f32 %v748, %v1090
  %v1092 = vpop.f32.mrf.mxu0
  %v1093 = vadd.f32 %v748, %v1092
  %1094 = vmatmul.bf16.gmra.mxu0 %v710
  %v1095 = vpop.f32.mrf.mxu0
  %v1096 = vadd.f32 %v748, %v1095
  %v1097 = vpop.f32.mrf.mxu0
  %v1098 = vadd.f32 %v748, %v1097
  %1099 = vmatmul.bf16.gmra.mxu0 %v712
  %v1100 = vpop.f32.mrf.mxu0
  %v1101 = vadd.f32 %v748, %v1100
  %v1102 = vpop.f32.mrf.mxu0
  %v1103 = vadd.f32 %v748, %v1102
  %1104 = vdwg.mxu0
  %1105 = vmatpush.bf16.msra.mxu0 %v829
  %1106 = vmatpush.bf16.msra.mxu0 %v828
  %1107 = vmatpush.bf16.msra.mxu0 %v827
  %1108 = vmatpush.bf16.msra.mxu0 %v826
  %1109 = vmatpush.bf16.msra.mxu0 %v825
  %1110 = vmatpush.bf16.msra.mxu0 %v824
  %1111 = vmatpush.bf16.msra.mxu0 %v823
  %1112 = vmatpush.bf16.msra.mxu0 %v822
  %1113 = vmatmul.bf16.gmra.mxu0 %v615
  %v1114 = vpop.f32.mrf.mxu0
  %v1115 = vadd.f32 %v856, %v1114
  %v1116 = vpop.f32.mrf.mxu0
  %v1117 = vadd.f32 %v858, %v1116
  %1118 = vmatmul.bf16.gmra.mxu0 %v617
  %v1119 = vpop.f32.mrf.mxu0
  %v1120 = vadd.f32 %v861, %v1119
  %v1121 = vpop.f32.mrf.mxu0
  %v1122 = vadd.f32 %v863, %v1121
  %1123 = vmatmul.bf16.gmra.mxu0 %v619
  %v1124 = vpop.f32.mrf.mxu0
  %v1125 = vadd.f32 %v866, %v1124
  %v1126 = vpop.f32.mrf.mxu0
  %v1127 = vadd.f32 %v868, %v1126
  %1128 = vmatmul.bf16.gmra.mxu0 %v621
  %v1129 = vpop.f32.mrf.mxu0
  %v1130 = vadd.f32 %v871, %v1129
  %v1131 = vpop.f32.mrf.mxu0
  %v1132 = vadd.f32 %v873, %v1131
  %1133 = vmatmul.bf16.gmra.mxu0 %v623
  %v1134 = vpop.f32.mrf.mxu0
  %v1135 = vadd.f32 %v876, %v1134
  %v1136 = vpop.f32.mrf.mxu0
  %v1137 = vadd.f32 %v878, %v1136
  %1138 = vmatmul.bf16.gmra.mxu0 %v625
  %v1139 = vpop.f32.mrf.mxu0
  %v1140 = vadd.f32 %v881, %v1139
  %v1141 = vpop.f32.mrf.mxu0
  %v1142 = vadd.f32 %v883, %v1141
  %1143 = vmatmul.bf16.gmra.mxu0 %v627
  %v1144 = vpop.f32.mrf.mxu0
  %v1145 = vadd.f32 %v886, %v1144
  %v1146 = vpop.f32.mrf.mxu0
  %v1147 = vadd.f32 %v888, %v1146
  %1148 = vmatmul.bf16.gmra.mxu0 %v629
  %v1149 = vpop.f32.mrf.mxu0
  %v1150 = vadd.f32 %v891, %v1149
  %v1151 = vpop.f32.mrf.mxu0
  %v1152 = vadd.f32 %v893, %v1151
  %1153 = vmatmul.bf16.gmra.mxu0 %v631
  %v1154 = vpop.f32.mrf.mxu0
  %v1155 = vadd.f32 %v896, %v1154
  %v1156 = vpop.f32.mrf.mxu0
  %v1157 = vadd.f32 %v898, %v1156
  %1158 = vmatmul.bf16.gmra.mxu0 %v633
  %v1159 = vpop.f32.mrf.mxu0
  %v1160 = vadd.f32 %v901, %v1159
  %v1161 = vpop.f32.mrf.mxu0
  %v1162 = vadd.f32 %v903, %v1161
  %1163 = vmatmul.bf16.gmra.mxu0 %v635
  %v1164 = vpop.f32.mrf.mxu0
  %v1165 = vadd.f32 %v906, %v1164
  %v1166 = vpop.f32.mrf.mxu0
  %v1167 = vadd.f32 %v908, %v1166
  %1168 = vmatmul.bf16.gmra.mxu0 %v637
  %v1169 = vpop.f32.mrf.mxu0
  %v1170 = vadd.f32 %v911, %v1169
  %v1171 = vpop.f32.mrf.mxu0
  %v1172 = vadd.f32 %v913, %v1171
  %1173 = vmatmul.bf16.gmra.mxu0 %v639
  %v1174 = vpop.f32.mrf.mxu0
  %v1175 = vadd.f32 %v916, %v1174
  %v1176 = vpop.f32.mrf.mxu0
  %v1177 = vadd.f32 %v918, %v1176
  %1178 = vmatmul.bf16.gmra.mxu0 %v641
  %v1179 = vpop.f32.mrf.mxu0
  %v1180 = vadd.f32 %v921, %v1179
  %v1181 = vpop.f32.mrf.mxu0
  %v1182 = vadd.f32 %v923, %v1181
  %1183 = vmatmul.bf16.gmra.mxu0 %v643
  %v1184 = vpop.f32.mrf.mxu0
  %v1185 = vadd.f32 %v926, %v1184
  %v1186 = vpop.f32.mrf.mxu0
  %v1187 = vadd.f32 %v928, %v1186
  %1188 = vmatmul.bf16.gmra.mxu0 %v645
  %v1189 = vpop.f32.mrf.mxu0
  %v1190 = vadd.f32 %v931, %v1189
  %v1191 = vpop.f32.mrf.mxu0
  %v1192 = vadd.f32 %v933, %v1191
  %1193 = vmatmul.bf16.gmra.mxu0 %v647
  %v1194 = vpop.f32.mrf.mxu0
  %v1195 = vadd.f32 %v936, %v1194
  %v1196 = vpop.f32.mrf.mxu0
  %v1197 = vadd.f32 %v938, %v1196
  %1198 = vmatmul.bf16.gmra.mxu0 %v649
  %v1199 = vpop.f32.mrf.mxu0
  %v1200 = vadd.f32 %v941, %v1199
  %v1201 = vpop.f32.mrf.mxu0
  %v1202 = vadd.f32 %v943, %v1201
  %1203 = vmatmul.bf16.gmra.mxu0 %v651
  %v1204 = vpop.f32.mrf.mxu0
  %v1205 = vadd.f32 %v946, %v1204
  %v1206 = vpop.f32.mrf.mxu0
  %v1207 = vadd.f32 %v948, %v1206
  %1208 = vmatmul.bf16.gmra.mxu0 %v653
  %v1209 = vpop.f32.mrf.mxu0
  %v1210 = vadd.f32 %v951, %v1209
  %v1211 = vpop.f32.mrf.mxu0
  %v1212 = vadd.f32 %v953, %v1211
  %1213 = vmatmul.bf16.gmra.mxu0 %v655
  %v1214 = vpop.f32.mrf.mxu0
  %v1215 = vadd.f32 %v956, %v1214
  %v1216 = vpop.f32.mrf.mxu0
  %v1217 = vadd.f32 %v958, %v1216
  %1218 = vmatmul.bf16.gmra.mxu0 %v657
  %v1219 = vpop.f32.mrf.mxu0
  %v1220 = vadd.f32 %v961, %v1219
  %v1221 = vpop.f32.mrf.mxu0
  %v1222 = vadd.f32 %v963, %v1221
  %1223 = vmatmul.bf16.gmra.mxu0 %v659
  %v1224 = vpop.f32.mrf.mxu0
  %v1225 = vadd.f32 %v966, %v1224
  %v1226 = vpop.f32.mrf.mxu0
  %v1227 = vadd.f32 %v968, %v1226
  %1228 = vmatmul.bf16.gmra.mxu0 %v661
  %v1229 = vpop.f32.mrf.mxu0
  %v1230 = vadd.f32 %v971, %v1229
  %v1231 = vpop.f32.mrf.mxu0
  %v1232 = vadd.f32 %v973, %v1231
  %1233 = vmatmul.bf16.gmra.mxu0 %v663
  %v1234 = vpop.f32.mrf.mxu0
  %v1235 = vadd.f32 %v976, %v1234
  %v1236 = vpop.f32.mrf.mxu0
  %v1237 = vadd.f32 %v978, %v1236
  %1238 = vmatmul.bf16.gmra.mxu0 %v665
  %v1239 = vpop.f32.mrf.mxu0
  %v1240 = vadd.f32 %v981, %v1239
  %v1241 = vpop.f32.mrf.mxu0
  %v1242 = vadd.f32 %v983, %v1241
  %1243 = vmatmul.bf16.gmra.mxu0 %v667
  %v1244 = vpop.f32.mrf.mxu0
  %v1245 = vadd.f32 %v986, %v1244
  %v1246 = vpop.f32.mrf.mxu0
  %v1247 = vadd.f32 %v988, %v1246
  %1248 = vmatmul.bf16.gmra.mxu0 %v669
  %v1249 = vpop.f32.mrf.mxu0
  %v1250 = vadd.f32 %v991, %v1249
  %v1251 = vpop.f32.mrf.mxu0
  %v1252 = vadd.f32 %v993, %v1251
  %1253 = vmatmul.bf16.gmra.mxu0 %v671
  %v1254 = vpop.f32.mrf.mxu0
  %v1255 = vadd.f32 %v996, %v1254
  %v1256 = vpop.f32.mrf.mxu0
  %v1257 = vadd.f32 %v998, %v1256
  %1258 = vmatmul.bf16.gmra.mxu0 %v673
  %v1259 = vpop.f32.mrf.mxu0
  %v1260 = vadd.f32 %v1001, %v1259
  %v1261 = vpop.f32.mrf.mxu0
  %v1262 = vadd.f32 %v1003, %v1261
  %1263 = vmatmul.bf16.gmra.mxu0 %v675
  %v1264 = vpop.f32.mrf.mxu0
  %v1265 = vadd.f32 %v1006, %v1264
  %v1266 = vpop.f32.mrf.mxu0
  %v1267 = vadd.f32 %v1008, %v1266
  %1268 = vmatmul.bf16.gmra.mxu0 %v677
  %v1269 = vpop.f32.mrf.mxu0
  %v1270 = vadd.f32 %v1011, %v1269
  %v1271 = vpop.f32.mrf.mxu0
  %v1272 = vadd.f32 %v1013, %v1271
  %1273 = vmatmul.bf16.gmra.mxu0 %v679
  %v1274 = vpop.f32.mrf.mxu0
  %v1275 = vadd.f32 %v1016, %v1274
  %v1276 = vpop.f32.mrf.mxu0
  %v1277 = vadd.f32 %v1018, %v1276
  %1278 = vmatmul.bf16.gmra.mxu0 %v681
  %v1279 = vpop.f32.mrf.mxu0
  %v1280 = vadd.f32 %v1021, %v1279
  %v1281 = vpop.f32.mrf.mxu0
  %v1282 = vadd.f32 %v1023, %v1281
  %1283 = vmatmul.bf16.gmra.mxu0 %v683
  %v1284 = vpop.f32.mrf.mxu0
  %v1285 = vadd.f32 %v1026, %v1284
  %v1286 = vpop.f32.mrf.mxu0
  %v1287 = vadd.f32 %v1028, %v1286
  %1288 = vmatmul.bf16.gmra.mxu0 %v685
  %v1289 = vpop.f32.mrf.mxu0
  %v1290 = vadd.f32 %v1031, %v1289
  %v1291 = vpop.f32.mrf.mxu0
  %v1292 = vadd.f32 %v1033, %v1291
  %1293 = vmatmul.bf16.gmra.mxu0 %v687
  %v1294 = vpop.f32.mrf.mxu0
  %v1295 = vadd.f32 %v1036, %v1294
  %v1296 = vpop.f32.mrf.mxu0
  %v1297 = vadd.f32 %v1038, %v1296
  %1298 = vmatmul.bf16.gmra.mxu0 %v689
  %v1299 = vpop.f32.mrf.mxu0
  %v1300 = vadd.f32 %v1041, %v1299
  %v1301 = vpop.f32.mrf.mxu0
  %v1302 = vadd.f32 %v1043, %v1301
  %1303 = vmatmul.bf16.gmra.mxu0 %v691
  %v1304 = vpop.f32.mrf.mxu0
  %v1305 = vadd.f32 %v1046, %v1304
  %v1306 = vpop.f32.mrf.mxu0
  %v1307 = vadd.f32 %v1048, %v1306
  %1308 = vmatmul.bf16.gmra.mxu0 %v693
  %v1309 = vpop.f32.mrf.mxu0
  %v1310 = vadd.f32 %v1051, %v1309
  %v1311 = vpop.f32.mrf.mxu0
  %v1312 = vadd.f32 %v1053, %v1311
  %1313 = vmatmul.bf16.gmra.mxu0 %v695
  %v1314 = vpop.f32.mrf.mxu0
  %v1315 = vadd.f32 %v1056, %v1314
  %v1316 = vpop.f32.mrf.mxu0
  %v1317 = vadd.f32 %v1058, %v1316
  %1318 = vmatmul.bf16.gmra.mxu0 %v697
  %v1319 = vpop.f32.mrf.mxu0
  %v1320 = vadd.f32 %v1061, %v1319
  %v1321 = vpop.f32.mrf.mxu0
  %v1322 = vadd.f32 %v1063, %v1321
  %1323 = vmatmul.bf16.gmra.mxu0 %v699
  %v1324 = vpop.f32.mrf.mxu0
  %v1325 = vadd.f32 %v1066, %v1324
  %v1326 = vpop.f32.mrf.mxu0
  %v1327 = vadd.f32 %v1068, %v1326
  %1328 = vmatmul.bf16.gmra.mxu0 %v701
  %v1329 = vpop.f32.mrf.mxu0
  %v1330 = vadd.f32 %v1071, %v1329
  %v1331 = vpop.f32.mrf.mxu0
  %v1332 = vadd.f32 %v1073, %v1331
  %1333 = vmatmul.bf16.gmra.mxu0 %v703
  %v1334 = vpop.f32.mrf.mxu0
  %v1335 = vadd.f32 %v1076, %v1334
  %v1336 = vpop.f32.mrf.mxu0
  %v1337 = vadd.f32 %v1078, %v1336
  %1338 = vmatmul.bf16.gmra.mxu0 %v705
  %v1339 = vpop.f32.mrf.mxu0
  %v1340 = vadd.f32 %v1081, %v1339
  %v1341 = vpop.f32.mrf.mxu0
  %v1342 = vadd.f32 %v1083, %v1341
  %1343 = vmatmul.bf16.gmra.mxu0 %v707
  %v1344 = vpop.f32.mrf.mxu0
  %v1345 = vadd.f32 %v1086, %v1344
  %v1346 = vpop.f32.mrf.mxu0
  %v1347 = vadd.f32 %v1088, %v1346
  %1348 = vmatmul.bf16.gmra.mxu0 %v709
  %v1349 = vpop.f32.mrf.mxu0
  %v1350 = vadd.f32 %v1091, %v1349
  %v1351 = vpop.f32.mrf.mxu0
  %v1352 = vadd.f32 %v1093, %v1351
  %1353 = vmatmul.bf16.gmra.mxu0 %v711
  %v1354 = vpop.f32.mrf.mxu0
  %v1355 = vadd.f32 %v1096, %v1354
  %v1356 = vpop.f32.mrf.mxu0
  %v1357 = vadd.f32 %v1098, %v1356
  %1358 = vmatmul.bf16.gmra.mxu0 %v713
  %v1359 = vpop.f32.mrf.mxu0
  %v1360 = vadd.f32 %v1101, %v1359
  %v1361 = vpop.f32.mrf.mxu0
  %v1362 = vadd.f32 %v1103, %v1361
  %1363 = vdwg.mxu0
  %v1364 = vmax.f32 %v1115, 0.0
  %v1365 = vmax.f32 %v1117, 0.0
  %v1366 = vmax.f32 %v1120, 0.0
  %v1367 = vmax.f32 %v1122, 0.0
  %v1368 = vmax.f32 %v1125, 0.0
  %v1369 = vmax.f32 %v1127, 0.0
  %v1370 = vmax.f32 %v1130, 0.0
  %v1371 = vmax.f32 %v1132, 0.0
  %v1372 = vmax.f32 %v1135, 0.0
  %v1373 = vmax.f32 %v1137, 0.0
  %v1374 = vmax.f32 %v1140, 0.0
  %v1375 = vmax.f32 %v1142, 0.0
  %v1376 = vmax.f32 %v1145, 0.0
  %v1377 = vmax.f32 %v1147, 0.0
  %v1378 = vmax.f32 %v1150, 0.0
  %v1379 = vmax.f32 %v1152, 0.0
  %v1380 = vmax.f32 %v1155, 0.0
  %v1381 = vmax.f32 %v1157, 0.0
  %v1382 = vmax.f32 %v1160, 0.0
  %v1383 = vmax.f32 %v1162, 0.0
  %v1384 = vmax.f32 %v1165, 0.0
  %v1385 = vmax.f32 %v1167, 0.0
  %v1386 = vmax.f32 %v1170, 0.0
  %v1387 = vmax.f32 %v1172, 0.0
  %v1388 = vmax.f32 %v1175, 0.0
  %v1389 = vmax.f32 %v1177, 0.0
  %v1390 = vmax.f32 %v1180, 0.0
  %v1391 = vmax.f32 %v1182, 0.0
  %v1392 = vmax.f32 %v1185, 0.0
  %v1393 = vmax.f32 %v1187, 0.0
  %v1394 = vmax.f32 %v1190, 0.0
  %v1395 = vmax.f32 %v1192, 0.0
  %v1396 = vmax.f32 %v1195, 0.0
  %v1397 = vmax.f32 %v1197, 0.0
  %v1398 = vmax.f32 %v1200, 0.0
  %v1399 = vmax.f32 %v1202, 0.0
  %v1400 = vmax.f32 %v1205, 0.0
  %v1401 = vmax.f32 %v1207, 0.0
  %v1402 = vmax.f32 %v1210, 0.0
  %v1403 = vmax.f32 %v1212, 0.0
  %v1404 = vmax.f32 %v1215, 0.0
  %v1405 = vmax.f32 %v1217, 0.0
  %v1406 = vmax.f32 %v1220, 0.0
  %v1407 = vmax.f32 %v1222, 0.0
  %v1408 = vmax.f32 %v1225, 0.0
  %v1409 = vmax.f32 %v1227, 0.0
  %v1410 = vmax.f32 %v1230, 0.0
  %v1411 = vmax.f32 %v1232, 0.0
  %v1412 = vmax.f32 %v1235, 0.0
  %v1413 = vmax.f32 %v1237, 0.0
  %v1414 = vmax.f32 %v1240, 0.0
  %v1415 = vmax.f32 %v1242, 0.0
  %v1416 = vmax.f32 %v1245, 0.0
  %v1417 = vmax.f32 %v1247, 0.0
  %v1418 = vmax.f32 %v1250, 0.0
  %v1419 = vmax.f32 %v1252, 0.0
  %v1420 = vmax.f32 %v1255, 0.0
  %v1421 = vmax.f32 %v1257, 0.0
  %v1422 = vmax.f32 %v1260, 0.0
  %v1423 = vmax.f32 %v1262, 0.0
  %v1424 = vmax.f32 %v1265, 0.0
  %v1425 = vmax.f32 %v1267, 0.0
  %v1426 = vmax.f32 %v1270, 0.0
  %v1427 = vmax.f32 %v1272, 0.0
  %v1428 = vmax.f32 %v1275, 0.0
  %v1429 = vmax.f32 %v1277, 0.0
  %v1430 = vmax.f32 %v1280, 0.0
  %v1431 = vmax.f32 %v1282, 0.0
  %v1432 = vmax.f32 %v1285, 0.0
  %v1433 = vmax.f32 %v1287, 0.0
  %v1434 = vmax.f32 %v1290, 0.0
  %v1435 = vmax.f32 %v1292, 0.0
  %v1436 = vmax.f32 %v1295, 0.0
  %v1437 = vmax.f32 %v1297, 0.0
  %v1438 = vmax.f32 %v1300, 0.0
  %v1439 = vmax.f32 %v1302, 0.0
  %v1440 = vmax.f32 %v1305, 0.0
  %v1441 = vmax.f32 %v1307, 0.0
  %v1442 = vmax.f32 %v1310, 0.0
  %v1443 = vmax.f32 %v1312, 0.0
  %v1444 = vmax.f32 %v1315, 0.0
  %v1445 = vmax.f32 %v1317, 0.0
  %v1446 = vmax.f32 %v1320, 0.0
  %v1447 = vmax.f32 %v1322, 0.0
  %v1448 = vmax.f32 %v1325, 0.0
  %v1449 = vmax.f32 %v1327, 0.0
  %v1450 = vmax.f32 %v1330, 0.0
  %v1451 = vmax.f32 %v1332, 0.0
  %v1452 = vmax.f32 %v1335, 0.0
  %v1453 = vmax.f32 %v1337, 0.0
  %v1454 = vmax.f32 %v1340, 0.0
  %v1455 = vmax.f32 %v1342, 0.0
  %v1456 = vmax.f32 %v1345, 0.0
  %v1457 = vmax.f32 %v1347, 0.0
  %v1458 = vmax.f32 %v1350, 0.0
  %v1459 = vmax.f32 %v1352, 0.0
  %v1460 = vmax.f32 %v1355, 0.0
  %v1461 = vmax.f32 %v1357, 0.0
  %v1462 = vmax.f32 %v1360, 0.0
  %v1463 = vmax.f32 %v1362, 0.0
  %vm1464 = vcmask 130048
  %1465 = vst.msk [vmem:[%s3] sm:$0xff] %vm1464, %v1364
  %1466 = vst.msk [vmem:[%s3 + $0x8] sm:$0xff] %vm1464, %v1365
  %1467 = vst.msk [vmem:[%s3 + $0x10] sm:$0xff] %vm1464, %v1366
  %1468 = vst.msk [vmem:[%s3 + $0x18] sm:$0xff] %vm1464, %v1367
  %1469 = vst.msk [vmem:[%s3 + $0x20] sm:$0xff] %vm1464, %v1368
  %1470 = vst.msk [vmem:[%s3 + $0x28] sm:$0xff] %vm1464, %v1369
  %1471 = vst.msk [vmem:[%s3 + $0x30] sm:$0xff] %vm1464, %v1370
  %1472 = vst.msk [vmem:[%s3 + $0x38] sm:$0xff] %vm1464, %v1371
  %1473 = vst.msk [vmem:[%s3 + $0x40] sm:$0xff] %vm1464, %v1372
  %1474 = vst.msk [vmem:[%s3 + $0x48] sm:$0xff] %vm1464, %v1373
  %1475 = vst.msk [vmem:[%s3 + $0x50] sm:$0xff] %vm1464, %v1374
  %1476 = vst.msk [vmem:[%s3 + $0x58] sm:$0xff] %vm1464, %v1375
  %1477 = vst.msk [vmem:[%s3 + $0x60] sm:$0xff] %vm1464, %v1376
  %1478 = vst.msk [vmem:[%s3 + $0x68] sm:$0xff] %vm1464, %v1377
  %1479 = vst.msk [vmem:[%s3 + $0x70] sm:$0xff] %vm1464, %v1378
  %1480 = vst.msk [vmem:[%s3 + $0x78] sm:$0xff] %vm1464, %v1379
  %1481 = vst.msk [vmem:[%s3 + $0x80] sm:$0xff] %vm1464, %v1380
  %1482 = vst.msk [vmem:[%s3 + $0x88] sm:$0xff] %vm1464, %v1381
  %1483 = vst.msk [vmem:[%s3 + $0x90] sm:$0xff] %vm1464, %v1382
  %1484 = vst.msk [vmem:[%s3 + $0x98] sm:$0xff] %vm1464, %v1383
  %1485 = vst.msk [vmem:[%s3 + $0xa0] sm:$0xff] %vm1464, %v1384
  %1486 = vst.msk [vmem:[%s3 + $0xa8] sm:$0xff] %vm1464, %v1385
  %1487 = vst.msk [vmem:[%s3 + $0xb0] sm:$0xff] %vm1464, %v1386
  %1488 = vst.msk [vmem:[%s3 + $0xb8] sm:$0xff] %vm1464, %v1387
  %1489 = vst.msk [vmem:[%s3 + $0xc0] sm:$0xff] %vm1464, %v1388
  %1490 = vst.msk [vmem:[%s3 + $0xc8] sm:$0xff] %vm1464, %v1389
  %1491 = vst.msk [vmem:[%s3 + $0xd0] sm:$0xff] %vm1464, %v1390
  %1492 = vst.msk [vmem:[%s3 + $0xd8] sm:$0xff] %vm1464, %v1391
  %1493 = vst.msk [vmem:[%s3 + $0xe0] sm:$0xff] %vm1464, %v1392
  %1494 = vst.msk [vmem:[%s3 + $0xe8] sm:$0xff] %vm1464, %v1393
  %1495 = vst.msk [vmem:[%s3 + $0xf0] sm:$0xff] %vm1464, %v1394
  %1496 = vst.msk [vmem:[%s3 + $0xf8] sm:$0xff] %vm1464, %v1395
  %1497 = vst.msk [vmem:[%s3 + $0x100] sm:$0xff] %vm1464, %v1396
  %1498 = vst.msk [vmem:[%s3 + $0x108] sm:$0xff] %vm1464, %v1397
  %1499 = vst.msk [vmem:[%s3 + $0x110] sm:$0xff] %vm1464, %v1398
  %1500 = vst.msk [vmem:[%s3 + $0x118] sm:$0xff] %vm1464, %v1399
  %1501 = vst.msk [vmem:[%s3 + $0x120] sm:$0xff] %vm1464, %v1400
  %1502 = vst.msk [vmem:[%s3 + $0x128] sm:$0xff] %vm1464, %v1401
  %1503 = vst.msk [vmem:[%s3 + $0x130] sm:$0xff] %vm1464, %v1402
  %1504 = vst.msk [vmem:[%s3 + $0x138] sm:$0xff] %vm1464, %v1403
  %1505 = vst.msk [vmem:[%s3 + $0x140] sm:$0xff] %vm1464, %v1404
  %1506 = vst.msk [vmem:[%s3 + $0x148] sm:$0xff] %vm1464, %v1405
  %1507 = vst.msk [vmem:[%s3 + $0x150] sm:$0xff] %vm1464, %v1406
  %1508 = vst.msk [vmem:[%s3 + $0x158] sm:$0xff] %vm1464, %v1407
  %1509 = vst.msk [vmem:[%s3 + $0x160] sm:$0xff] %vm1464, %v1408
  %1510 = vst.msk [vmem:[%s3 + $0x168] sm:$0xff] %vm1464, %v1409
  %1511 = vst.msk [vmem:[%s3 + $0x170] sm:$0xff] %vm1464, %v1410
  %1512 = vst.msk [vmem:[%s3 + $0x178] sm:$0xff] %vm1464, %v1411
  %1513 = vst.msk [vmem:[%s3 + $0x180] sm:$0xff] %vm1464, %v1412
  %1514 = vst.msk [vmem:[%s3 + $0x188] sm:$0xff] %vm1464, %v1413
  %1515 = vst.msk [vmem:[%s3 + $0x190] sm:$0xff] %vm1464, %v1414
  %1516 = vst.msk [vmem:[%s3 + $0x198] sm:$0xff] %vm1464, %v1415
  %1517 = vst.msk [vmem:[%s3 + $0x1a0] sm:$0xff] %vm1464, %v1416
  %1518 = vst.msk [vmem:[%s3 + $0x1a8] sm:$0xff] %vm1464, %v1417
  %1519 = vst.msk [vmem:[%s3 + $0x1b0] sm:$0xff] %vm1464, %v1418
  %1520 = vst.msk [vmem:[%s3 + $0x1b8] sm:$0xff] %vm1464, %v1419
  %1521 = vst.msk [vmem:[%s3 + $0x1c0] sm:$0xff] %vm1464, %v1420
  %1522 = vst.msk [vmem:[%s3 + $0x1c8] sm:$0xff] %vm1464, %v1421
  %1523 = vst.msk [vmem:[%s3 + $0x1d0] sm:$0xff] %vm1464, %v1422
  %1524 = vst.msk [vmem:[%s3 + $0x1d8] sm:$0xff] %vm1464, %v1423
  %1525 = vst.msk [vmem:[%s3 + $0x1e0] sm:$0xff] %vm1464, %v1424
  %1526 = vst.msk [vmem:[%s3 + $0x1e8] sm:$0xff] %vm1464, %v1425
  %1527 = vst.msk [vmem:[%s3 + $0x1f0] sm:$0xff] %vm1464, %v1426
  %1528 = vst.msk [vmem:[%s3 + $0x1f8] sm:$0xff] %vm1464, %v1427
  %1529 = vst.msk [vmem:[%s3 + $0x200] sm:$0xff] %vm1464, %v1428
  %1530 = vst.msk [vmem:[%s3 + $0x208] sm:$0xff] %vm1464, %v1429
  %1531 = vst.msk [vmem:[%s3 + $0x210] sm:$0xff] %vm1464, %v1430
  %1532 = vst.msk [vmem:[%s3 + $0x218] sm:$0xff] %vm1464, %v1431
  %1533 = vst.msk [vmem:[%s3 + $0x220] sm:$0xff] %vm1464, %v1432
  %1534 = vst.msk [vmem:[%s3 + $0x228] sm:$0xff] %vm1464, %v1433
  %1535 = vst.msk [vmem:[%s3 + $0x230] sm:$0xff] %vm1464, %v1434
  %1536 = vst.msk [vmem:[%s3 + $0x238] sm:$0xff] %vm1464, %v1435
  %1537 = vst.msk [vmem:[%s3 + $0x240] sm:$0xff] %vm1464, %v1436
  %1538 = vst.msk [vmem:[%s3 + $0x248] sm:$0xff] %vm1464, %v1437
  %1539 = vst.msk [vmem:[%s3 + $0x250] sm:$0xff] %vm1464, %v1438
  %1540 = vst.msk [vmem:[%s3 + $0x258] sm:$0xff] %vm1464, %v1439
  %1541 = vst.msk [vmem:[%s3 + $0x260] sm:$0xff] %vm1464, %v1440
  %1542 = vst.msk [vmem:[%s3 + $0x268] sm:$0xff] %vm1464, %v1441
  %1543 = vst.msk [vmem:[%s3 + $0x270] sm:$0xff] %vm1464, %v1442
  %1544 = vst.msk [vmem:[%s3 + $0x278] sm:$0xff] %vm1464, %v1443
  %1545 = vst.msk [vmem:[%s3 + $0x280] sm:$0xff] %vm1464, %v1444
  %1546 = vst.msk [vmem:[%s3 + $0x288] sm:$0xff] %vm1464, %v1445
  %1547 = vst.msk [vmem:[%s3 + $0x290] sm:$0xff] %vm1464, %v1446
  %1548 = vst.msk [vmem:[%s3 + $0x298] sm:$0xff] %vm1464, %v1447
  %1549 = vst.msk [vmem:[%s3 + $0x2a0] sm:$0xff] %vm1464, %v1448
  %1550 = vst.msk [vmem:[%s3 + $0x2a8] sm:$0xff] %vm1464, %v1449
  %1551 = vst.msk [vmem:[%s3 + $0x2b0] sm:$0xff] %vm1464, %v1450
  %1552 = vst.msk [vmem:[%s3 + $0x2b8] sm:$0xff] %vm1464, %v1451
  %1553 = vst.msk [vmem:[%s3 + $0x2c0] sm:$0xff] %vm1464, %v1452
  %1554 = vst.msk [vmem:[%s3 + $0x2c8] sm:$0xff] %vm1464, %v1453
  %1555 = vst.msk [vmem:[%s3 + $0x2d0] sm:$0xff] %vm1464, %v1454
  %1556 = vst.msk [vmem:[%s3 + $0x2d8] sm:$0xff] %vm1464, %v1455
  %1557 = vst.msk [vmem:[%s3 + $0x2e0] sm:$0xff] %vm1464, %v1456
  %1558 = vst.msk [vmem:[%s3 + $0x2e8] sm:$0xff] %vm1464, %v1457
  %1559 = vst.msk [vmem:[%s3 + $0x2f0] sm:$0xff] %vm1464, %v1458
  %1560 = vst.msk [vmem:[%s3 + $0x2f8] sm:$0xff] %vm1464, %v1459
  %1561 = vst.msk [vmem:[%s3 + $0x300] sm:$0xff] %vm1464, %v1460
  %1562 = vst.msk [vmem:[%s3 + $0x308] sm:$0xff] %vm1464, %v1461
  %1563 = vst.msk [vmem:[%s3 + $0x310] sm:$0xff] %vm1464, %v1462
  %1564 = vst.msk [vmem:[%s3 + $0x318] sm:$0xff] %vm1464, %v1463
  // Predicated region
  $region14: #{ppg_dqn_forward.3} parent=0 // pred_check
    _
  $region15: #{ppg_dqn_forward.3} parent=0 // pred_check_branch
    %1566 = sbr.rel (0) target = $region17
  $region16: #{ppg_dqn_forward.3} parent=0 // pred_region
    _
  $region17: #{ppg_dqn_forward.3} parent=0 // pred_fallthru
    _
  // Predicated region
  $region18: #{ppg_dqn_forward.3} parent=0 // pred_check
    _
  $region19: #{ppg_dqn_forward.3} parent=0 // pred_check_branch
    %1568 = sbr.rel (0) target = $region21
  $region20: #{ppg_dqn_forward.3} parent=0 // pred_region
    _
  $region21: #{ppg_dqn_forward.3} parent=0 // pred_fallthru
    _

// kernel: ppg_dqn_forward.4
$region0: #{ppg_dqn_forward.4}
  #allocation0 [shape = 'u32[]', space=smem, size = 0x4, offset = 0x4, fixed_abs, tag = 'smem constant byte address 0x4 - core index']
  #allocation1 [shape = 'u32[72,128]{1,0:T(1,128)}', space=vmem, size = 0x9000, scoped, tag = 'internal scratch']
  %s0 = inlined_call_operand.vmem [shape: f32[162,256], index: 0, kind: input, shape index: {}]
  %s1 = inlined_call_operand.vmem [shape: bf16[256,32], index: 1, kind: input, shape index: {}]
  %s2 = inlined_call_operand.vmem [shape: f32[1,32], index: 2, kind: input, shape index: {}]
  %s3 = inlined_call_operand.vmem [shape: f32[162,32], index: 3, kind: output, shape index: {}]
  %s4 = sld [smem:[#allocation0]]
  $region22: #{ppg_dqn_forward.4} parent=0
    _
  %s6 = ssub.s32 1, %s4
  %s7 = scalar_select 0, %s6, %s4
  // Predicated region
  $region2: #{ppg_dqn_forward.4} parent=0 // pred_check
    _
  $region3: #{ppg_dqn_forward.4} parent=0 // pred_check_branch
    %9 = sbr.rel (0) target = $region5
  $region4: #{ppg_dqn_forward.4} parent=0 // pred_region
    _
  $region5: #{ppg_dqn_forward.4} parent=0 // pred_fallthru
    _
  // Predicated region
  $region6: #{ppg_dqn_forward.4} parent=0 // pred_check
    _
  $region7: #{ppg_dqn_forward.4} parent=0 // pred_check_branch
    %11 = sbr.rel (0) target = $region9
  $region8: #{ppg_dqn_forward.4} parent=0 // pred_region
    _
  $region9: #{ppg_dqn_forward.4} parent=0 // pred_fallthru
    _
  // Predicated region
  $region10: #{ppg_dqn_forward.4} parent=0 // pred_check
    _
  $region11: #{ppg_dqn_forward.4} parent=0 // pred_check_branch
    %13 = sbr.rel (0) target = $region13
  $region12: #{ppg_dqn_forward.4} parent=0 // pred_region
    _
  $region13: #{ppg_dqn_forward.4} parent=0 // pred_fallthru
    _
  %v14 = vld [vmem:[%s0] sm:$0xff]
  %v15 = vld [vmem:[%s0 + $0x8] sm:$0xff]
  %v16 = vld [vmem:[%s0 + $0x10] sm:$0xff]
  %v17 = vld [vmem:[%s0 + $0x18] sm:$0xff]
  %v18 = vld [vmem:[%s0 + $0x20] sm:$0xff]
  %v19 = vld [vmem:[%s0 + $0x28] sm:$0xff]
  %v20 = vld [vmem:[%s0 + $0x30] sm:$0xff]
  %v21 = vld [vmem:[%s0 + $0x38] sm:$0xff]
  %v22 = vld [vmem:[%s0 + $0x40] sm:$0xff]
  %v23 = vld [vmem:[%s0 + $0x48] sm:$0xff]
  %v24 = vld [vmem:[%s0 + $0x50] sm:$0xff]
  %v25 = vld [vmem:[%s0 + $0x58] sm:$0xff]
  %v26 = vld [vmem:[%s0 + $0x60] sm:$0xff]
  %v27 = vld [vmem:[%s0 + $0x68] sm:$0xff]
  %v28 = vld [vmem:[%s0 + $0x70] sm:$0xff]
  %v29 = vld [vmem:[%s0 + $0x78] sm:$0xff]
  %v30 = vld [vmem:[%s0 + $0x80] sm:$0xff]
  %v31 = vld [vmem:[%s0 + $0x88] sm:$0xff]
  %v32 = vld [vmem:[%s0 + $0x90] sm:$0xff]
  %v33 = vld [vmem:[%s0 + $0x98] sm:$0xff]
  %v34 = vld [vmem:[%s0 + $0xa0] sm:$0xff]
  %v35 = vld [vmem:[%s0 + $0xa8] sm:$0xff]
  %v36 = vld [vmem:[%s0 + $0xb0] sm:$0xff]
  %v37 = vld [vmem:[%s0 + $0xb8] sm:$0xff]
  %v38 = vld [vmem:[%s0 + $0xc0] sm:$0xff]
  %v39 = vld [vmem:[%s0 + $0xc8] sm:$0xff]
  %v40 = vld [vmem:[%s0 + $0xd0] sm:$0xff]
  %v41 = vld [vmem:[%s0 + $0xd8] sm:$0xff]
  %v42 = vld [vmem:[%s0 + $0xe0] sm:$0xff]
  %v43 = vld [vmem:[%s0 + $0xe8] sm:$0xff]
  %v44 = vld [vmem:[%s0 + $0xf0] sm:$0xff]
  %v45 = vld [vmem:[%s0 + $0xf8] sm:$0xff]
  %v46 = vld [vmem:[%s0 + $0x100] sm:$0xff]
  %v47 = vld [vmem:[%s0 + $0x108] sm:$0xff]
  %v48 = vld [vmem:[%s0 + $0x110] sm:$0xff]
  %v49 = vld [vmem:[%s0 + $0x118] sm:$0xff]
  %v50 = vld [vmem:[%s0 + $0x120] sm:$0xff]
  %v51 = vld [vmem:[%s0 + $0x128] sm:$0xff]
  %v52 = vld [vmem:[%s0 + $0x130] sm:$0xff]
  %v53 = vld [vmem:[%s0 + $0x138] sm:$0xff]
  %v54 = vld [vmem:[%s0 + $0x140] sm:$0x3]
  %v55 = vld [vmem:[%s0 + $0x148] sm:$0x3]
  %v56 = vpack.c.bf16 %v16, %v14
  %v57 = vpack.c.bf16 %v17, %v15
  %v58 = vpack.c.bf16 %v20, %v18
  %v59 = vpack.c.bf16 %v21, %v19
  %v60 = vpack.c.bf16 %v24, %v22
  %v61 = vpack.c.bf16 %v25, %v23
  %v62 = vpack.c.bf16 %v28, %v26
  %v63 = vpack.c.bf16 %v29, %v27
  %v64 = vpack.c.bf16 %v32, %v30
  %v65 = vpack.c.bf16 %v33, %v31
  %v66 = vpack.c.bf16 %v36, %v34
  %v67 = vpack.c.bf16 %v37, %v35
  %v68 = vpack.c.bf16 %v40, %v38
  %v69 = vpack.c.bf16 %v41, %v39
  %v70 = vpack.c.bf16 %v44, %v42
  %v71 = vpack.c.bf16 %v45, %v43
  %v72 = vpack.c.bf16 %v48, %v46
  %v73 = vpack.c.bf16 %v49, %v47
  %v74 = vpack.c.bf16 %v52, %v50
  %v75 = vpack.c.bf16 %v53, %v51
  %v76 = vpack.c.bf16 %v54, %v54
  %v77 = vpack.c.bf16 %v55, %v55
  %v78 = vld [vmem:[%s1] sm:$0xf]
  %v79 = vld [vmem:[%s1 + $0x4] sm:$0xf]
  %v80 = vld [vmem:[%s1 + $0x8] sm:$0xf]
  %v81 = vld [vmem:[%s1 + $0xc] sm:$0xf]
  %v82 = vld [vmem:[%s1 + $0x10] sm:$0xf]
  %v83 = vld [vmem:[%s1 + $0x14] sm:$0xf]
  %v84 = vld [vmem:[%s1 + $0x18] sm:$0xf]
  %v85 = vld [vmem:[%s1 + $0x1c] sm:$0xf]
  %v86 = vld [vmem:[%s1 + $0x20] sm:$0xf]
  %v87 = vld [vmem:[%s1 + $0x24] sm:$0xf]
  %v88 = vld [vmem:[%s1 + $0x28] sm:$0xf]
  %v89 = vld [vmem:[%s1 + $0x2c] sm:$0xf]
  %v90 = vld [vmem:[%s1 + $0x30] sm:$0xf]
  %v91 = vld [vmem:[%s1 + $0x34] sm:$0xf]
  %v92 = vld [vmem:[%s1 + $0x38] sm:$0xf]
  %v93 = vld [vmem:[%s1 + $0x3c] sm:$0xf]
  %v94 = vld [vmem:[%s1 + $0x40] sm:$0xf]
  %v95 = vld [vmem:[%s1 + $0x44] sm:$0xf]
  %v96 = vld [vmem:[%s1 + $0x48] sm:$0xf]
  %v97 = vld [vmem:[%s1 + $0x4c] sm:$0xf]
  %v98 = vld [vmem:[%s1 + $0x50] sm:$0xf]
  %v99 = vld [vmem:[%s1 + $0x54] sm:$0xf]
  %v100 = vld [vmem:[%s1 + $0x58] sm:$0xf]
  %v101 = vld [vmem:[%s1 + $0x5c] sm:$0xf]
  %v102 = vld [vmem:[%s1 + $0x60] sm:$0xf]
  %v103 = vld [vmem:[%s1 + $0x64] sm:$0xf]
  %v104 = vld [vmem:[%s1 + $0x68] sm:$0xf]
  %v105 = vld [vmem:[%s1 + $0x6c] sm:$0xf]
  %v106 = vld [vmem:[%s1 + $0x70] sm:$0xf]
  %v107 = vld [vmem:[%s1 + $0x74] sm:$0xf]
  %v108 = vld [vmem:[%s1 + $0x78] sm:$0xf]
  %v109 = vld [vmem:[%s1 + $0x7c] sm:$0xf]
  %v110 = vld [vmem:[%s2] sm:$0x1]
  %v112 = vperm.slane %v110, 0
  %v146 = vunpack.c.l.b16 %v78
  %v147 = vunpack.c.l.b16 %v79
  %v148 = vunpack.c.l.b16 %v80
  %v149 = vunpack.c.l.b16 %v81
  %v150 = vunpack.c.l.b16 %v82
  %v151 = vunpack.c.l.b16 %v83
  %v152 = vunpack.c.l.b16 %v84
  %v153 = vunpack.c.l.b16 %v85
  %v154 = vunpack.c.l.b16 %v86
  %v155 = vunpack.c.l.b16 %v87
  %v156 = vunpack.c.l.b16 %v88
  %v157 = vunpack.c.l.b16 %v89
  %v158 = vunpack.c.l.b16 %v90
  %v159 = vunpack.c.l.b16 %v91
  %v160 = vunpack.c.l.b16 %v92
  %v161 = vunpack.c.l.b16 %v93
  %v162 = vunpack.c.l.b16 %v94
  %v163 = vunpack.c.l.b16 %v95
  %v164 = vunpack.c.l.b16 %v96
  %v165 = vunpack.c.l.b16 %v97
  %v166 = vunpack.c.l.b16 %v98
  %v167 = vunpack.c.l.b16 %v99
  %v168 = vunpack.c.l.b16 %v100
  %v169 = vunpack.c.l.b16 %v101
  %v170 = vunpack.c.l.b16 %v102
  %v171 = vunpack.c.l.b16 %v103
  %v172 = vunpack.c.l.b16 %v104
  %v173 = vunpack.c.l.b16 %v105
  %v174 = vunpack.c.l.b16 %v106
  %v175 = vunpack.c.l.b16 %v107
  %v176 = vunpack.c.l.b16 %v108
  %v177 = vunpack.c.l.b16 %v109
  %v178 = vpack.c.b16 %v147, %v146
  %v179 = vpack.c.b16 %v149, %v148
  %v180 = vpack.c.b16 %v151, %v150
  %v181 = vpack.c.b16 %v153, %v152
  %v182 = vpack.c.b16 %v155, %v154
  %v183 = vpack.c.b16 %v157, %v156
  %v184 = vpack.c.b16 %v159, %v158
  %v185 = vpack.c.b16 %v161, %v160
  %v186 = vpack.c.b16 %v163, %v162
  %v187 = vpack.c.b16 %v165, %v164
  %v188 = vpack.c.b16 %v167, %v166
  %v189 = vpack.c.b16 %v169, %v168
  %v190 = vpack.c.b16 %v171, %v170
  %v191 = vpack.c.b16 %v173, %v172
  %v192 = vpack.c.b16 %v175, %v174
  %v193 = vpack.c.b16 %v177, %v176
  %210 = vmatpush.bf16.msra.mxu0 %v185
  %211 = vmatpush.bf16.msra.mxu0 %v184
  %212 = vmatpush.bf16.msra.mxu0 %v183
  %213 = vmatpush.bf16.msra.mxu0 %v182
  %214 = vmatpush.bf16.msra.mxu0 %v181
  %215 = vmatpush.bf16.msra.mxu0 %v180
  %216 = vmatpush.bf16.msra.mxu0 %v179
  %217 = vmatpush.bf16.msra.mxu0 %v178
  %218 = vmatmul.bf16.gmra.mxu0 %v56
  %v219 = vpop.f32.mrf.mxu0
  %v220 = vadd.f32 %v112, %v219
  %v221 = vpop.f32.mrf.mxu0
  %v222 = vadd.f32 %v112, %v221
  %223 = vmatmul.bf16.gmra.mxu0 %v58
  %v224 = vpop.f32.mrf.mxu0
  %v225 = vadd.f32 %v112, %v224
  %v226 = vpop.f32.mrf.mxu0
  %v227 = vadd.f32 %v112, %v226
  %228 = vmatmul.bf16.gmra.mxu0 %v60
  %v229 = vpop.f32.mrf.mxu0
  %v230 = vadd.f32 %v112, %v229
  %v231 = vpop.f32.mrf.mxu0
  %v232 = vadd.f32 %v112, %v231
  %233 = vmatmul.bf16.gmra.mxu0 %v62
  %v234 = vpop.f32.mrf.mxu0
  %v235 = vadd.f32 %v112, %v234
  %v236 = vpop.f32.mrf.mxu0
  %v237 = vadd.f32 %v112, %v236
  %238 = vmatmul.bf16.gmra.mxu0 %v64
  %v239 = vpop.f32.mrf.mxu0
  %v240 = vadd.f32 %v112, %v239
  %v241 = vpop.f32.mrf.mxu0
  %v242 = vadd.f32 %v112, %v241
  %243 = vmatmul.bf16.gmra.mxu0 %v66
  %v244 = vpop.f32.mrf.mxu0
  %v245 = vadd.f32 %v112, %v244
  %v246 = vpop.f32.mrf.mxu0
  %v247 = vadd.f32 %v112, %v246
  %248 = vmatmul.bf16.gmra.mxu0 %v68
  %v249 = vpop.f32.mrf.mxu0
  %v250 = vadd.f32 %v112, %v249
  %v251 = vpop.f32.mrf.mxu0
  %v252 = vadd.f32 %v112, %v251
  %253 = vmatmul.bf16.gmra.mxu0 %v70
  %v254 = vpop.f32.mrf.mxu0
  %v255 = vadd.f32 %v112, %v254
  %v256 = vpop.f32.mrf.mxu0
  %v257 = vadd.f32 %v112, %v256
  %258 = vmatmul.bf16.gmra.mxu0 %v72
  %v259 = vpop.f32.mrf.mxu0
  %v260 = vadd.f32 %v112, %v259
  %v261 = vpop.f32.mrf.mxu0
  %v262 = vadd.f32 %v112, %v261
  %263 = vmatmul.bf16.gmra.mxu0 %v74
  %v264 = vpop.f32.mrf.mxu0
  %v265 = vadd.f32 %v112, %v264
  %v266 = vpop.f32.mrf.mxu0
  %v267 = vadd.f32 %v112, %v266
  %268 = vmatmul.bf16.gmra.mxu0 %v76
  %v269 = vpop.f32.mrf.mxu0
  %v270 = vadd.f32 %v112, %v269
  %v271 = vpop.f32.mrf.mxu0
  %272 = vdwg.mxu0
  %273 = vmatpush.bf16.msra.mxu0 %v193
  %274 = vmatpush.bf16.msra.mxu0 %v192
  %275 = vmatpush.bf16.msra.mxu0 %v191
  %276 = vmatpush.bf16.msra.mxu0 %v190
  %277 = vmatpush.bf16.msra.mxu0 %v189
  %278 = vmatpush.bf16.msra.mxu0 %v188
  %279 = vmatpush.bf16.msra.mxu0 %v187
  %280 = vmatpush.bf16.msra.mxu0 %v186
  %281 = vmatmul.bf16.gmra.mxu0 %v57
  %v282 = vpop.f32.mrf.mxu0
  %v283 = vadd.f32 %v220, %v282
  %v284 = vpop.f32.mrf.mxu0
  %v285 = vadd.f32 %v222, %v284
  %286 = vmatmul.bf16.gmra.mxu0 %v59
  %v287 = vpop.f32.mrf.mxu0
  %v288 = vadd.f32 %v225, %v287
  %v289 = vpop.f32.mrf.mxu0
  %v290 = vadd.f32 %v227, %v289
  %291 = vmatmul.bf16.gmra.mxu0 %v61
  %v292 = vpop.f32.mrf.mxu0
  %v293 = vadd.f32 %v230, %v292
  %v294 = vpop.f32.mrf.mxu0
  %v295 = vadd.f32 %v232, %v294
  %296 = vmatmul.bf16.gmra.mxu0 %v63
  %v297 = vpop.f32.mrf.mxu0
  %v298 = vadd.f32 %v235, %v297
  %v299 = vpop.f32.mrf.mxu0
  %v300 = vadd.f32 %v237, %v299
  %301 = vmatmul.bf16.gmra.mxu0 %v65
  %v302 = vpop.f32.mrf.mxu0
  %v303 = vadd.f32 %v240, %v302
  %v304 = vpop.f32.mrf.mxu0
  %v305 = vadd.f32 %v242, %v304
  %306 = vmatmul.bf16.gmra.mxu0 %v67
  %v307 = vpop.f32.mrf.mxu0
  %v308 = vadd.f32 %v245, %v307
  %v309 = vpop.f32.mrf.mxu0
  %v310 = vadd.f32 %v247, %v309
  %311 = vmatmul.bf16.gmra.mxu0 %v69
  %v312 = vpop.f32.mrf.mxu0
  %v313 = vadd.f32 %v250, %v312
  %v314 = vpop.f32.mrf.mxu0
  %v315 = vadd.f32 %v252, %v314
  %316 = vmatmul.bf16.gmra.mxu0 %v71
  %v317 = vpop.f32.mrf.mxu0
  %v318 = vadd.f32 %v255, %v317
  %v319 = vpop.f32.mrf.mxu0
  %v320 = vadd.f32 %v257, %v319
  %321 = vmatmul.bf16.gmra.mxu0 %v73
  %v322 = vpop.f32.mrf.mxu0
  %v323 = vadd.f32 %v260, %v322
  %v324 = vpop.f32.mrf.mxu0
  %v325 = vadd.f32 %v262, %v324
  %326 = vmatmul.bf16.gmra.mxu0 %v75
  %v327 = vpop.f32.mrf.mxu0
  %v328 = vadd.f32 %v265, %v327
  %v329 = vpop.f32.mrf.mxu0
  %v330 = vadd.f32 %v267, %v329
  %331 = vmatmul.bf16.gmra.mxu0 %v77
  %v332 = vpop.f32.mrf.mxu0
  %v333 = vadd.f32 %v270, %v332
  %v334 = vpop.f32.mrf.mxu0
  %335 = vdwg.mxu0
  %v336 = vmax.f32 %v283, 0.0
  %v337 = vmax.f32 %v285, 0.0
  %v338 = vmax.f32 %v288, 0.0
  %v339 = vmax.f32 %v290, 0.0
  %v340 = vmax.f32 %v293, 0.0
  %v341 = vmax.f32 %v295, 0.0
  %v342 = vmax.f32 %v298, 0.0
  %v343 = vmax.f32 %v300, 0.0
  %v344 = vmax.f32 %v303, 0.0
  %v345 = vmax.f32 %v305, 0.0
  %v346 = vmax.f32 %v308, 0.0
  %v347 = vmax.f32 %v310, 0.0
  %v348 = vmax.f32 %v313, 0.0
  %v349 = vmax.f32 %v315, 0.0
  %v350 = vmax.f32 %v318, 0.0
  %v351 = vmax.f32 %v320, 0.0
  %v352 = vmax.f32 %v323, 0.0
  %v353 = vmax.f32 %v325, 0.0
  %v354 = vmax.f32 %v328, 0.0
  %v355 = vmax.f32 %v330, 0.0
  %v356 = vmax.f32 %v333, 0.0
  %vm357 = vcmask 261120
  %358 = vst.msk [vmem:[%s3] sm:$0xff] %vm357, %v336
  %359 = vst.msk [vmem:[%s3 + $0x8] sm:$0xff] %vm357, %v337
  %360 = vst.msk [vmem:[%s3 + $0x10] sm:$0xff] %vm357, %v338
  %361 = vst.msk [vmem:[%s3 + $0x18] sm:$0xff] %vm357, %v339
  %362 = vst.msk [vmem:[%s3 + $0x20] sm:$0xff] %vm357, %v340
  %363 = vst.msk [vmem:[%s3 + $0x28] sm:$0xff] %vm357, %v341
  %364 = vst.msk [vmem:[%s3 + $0x30] sm:$0xff] %vm357, %v342
  %365 = vst.msk [vmem:[%s3 + $0x38] sm:$0xff] %vm357, %v343
  %366 = vst.msk [vmem:[%s3 + $0x40] sm:$0xff] %vm357, %v344
  %367 = vst.msk [vmem:[%s3 + $0x48] sm:$0xff] %vm357, %v345
  %368 = vst.msk [vmem:[%s3 + $0x50] sm:$0xff] %vm357, %v346
  %369 = vst.msk [vmem:[%s3 + $0x58] sm:$0xff] %vm357, %v347
  %370 = vst.msk [vmem:[%s3 + $0x60] sm:$0xff] %vm357, %v348
  %371 = vst.msk [vmem:[%s3 + $0x68] sm:$0xff] %vm357, %v349
  %372 = vst.msk [vmem:[%s3 + $0x70] sm:$0xff] %vm357, %v350
  %373 = vst.msk [vmem:[%s3 + $0x78] sm:$0xff] %vm357, %v351
  %374 = vst.msk [vmem:[%s3 + $0x80] sm:$0xff] %vm357, %v352
  %375 = vst.msk [vmem:[%s3 + $0x88] sm:$0xff] %vm357, %v353
  %376 = vst.msk [vmem:[%s3 + $0x90] sm:$0xff] %vm357, %v354
  %377 = vst.msk [vmem:[%s3 + $0x98] sm:$0xff] %vm357, %v355
  %vm378 = vcmask 254976
  %379 = vst.msk [vmem:[%s3 + $0xa0] sm:$0x3] %vm378, %v356
  // Predicated region
  $region14: #{ppg_dqn_forward.4} parent=0 // pred_check
    _
  $region15: #{ppg_dqn_forward.4} parent=0 // pred_check_branch
    %381 = sbr.rel (0) target = $region17
  $region16: #{ppg_dqn_forward.4} parent=0 // pred_region
    _
  $region17: #{ppg_dqn_forward.4} parent=0 // pred_fallthru
    _
  // Predicated region
  $region18: #{ppg_dqn_forward.4} parent=0 // pred_check
    _
  $region19: #{ppg_dqn_forward.4} parent=0 // pred_check_branch
    %383 = sbr.rel (0) target = $region21
  $region20: #{ppg_dqn_forward.4} parent=0 // pred_region
    _
  $region21: #{ppg_dqn_forward.4} parent=0 // pred_fallthru
    _

// kernel: ppg_dqn_forward.5
$region0: #{ppg_dqn_forward.5}
  #allocation0 [shape = 'u32[]', space=smem, size = 0x4, offset = 0x4, fixed_abs, tag = 'smem constant byte address 0x4 - core index']
  #allocation1 [shape = 'u32[72,128]{1,0:T(1,128)}', space=vmem, size = 0x9000, scoped, tag = 'internal scratch']
  %s0 = inlined_call_operand.vmem [shape: f32[2,2592], index: 0, kind: input, shape index: {}]
  %s1 = inlined_call_operand.vmem [shape: bf16[2592,256], index: 1, kind: input, shape index: {}]
  %s2 = inlined_call_operand.vmem [shape: f32[1,256], index: 2, kind: input, shape index: {}]
  %s3 = inlined_call_operand.vmem [shape: bf16[256,7], index: 3, kind: input, shape index: {}]
  %s4 = inlined_call_operand.vmem [shape: f32[1,7], index: 4, kind: input, shape index: {}]
  %s5 = inlined_call_operand.vmem [shape: f32[2,7], index: 5, kind: output, shape index: {}]
  %s6 = sld [smem:[#allocation0]]
  $region30: #{ppg_dqn_forward.5} parent=0
    _
  %s8 = ssub.s32 1, %s6
  %s9 = scalar_select 0, %s8, %s6
  // Predicated region
  $region2: #{ppg_dqn_forward.5} parent=0 // pred_check
    _
  $region3: #{ppg_dqn_forward.5} parent=0 // pred_check_branch
    %11 = sbr.rel (0) target = $region5
  $region4: #{ppg_dqn_forward.5} parent=0 // pred_region
    _
  $region5: #{ppg_dqn_forward.5} parent=0 // pred_fallthru
    _
  // Predicated region
  $region6: #{ppg_dqn_forward.5} parent=0 // pred_check
    _
  $region7: #{ppg_dqn_forward.5} parent=0 // pred_check_branch
    %13 = sbr.rel (0) target = $region9
  $region8: #{ppg_dqn_forward.5} parent=0 // pred_region
    _
  $region9: #{ppg_dqn_forward.5} parent=0 // pred_fallthru
    _
  // Predicated region
  $region10: #{ppg_dqn_forward.5} parent=0 // pred_check
    _
  $region11: #{ppg_dqn_forward.5} parent=0 // pred_check_branch
    %15 = sbr.rel (0) target = $region13
  $region12: #{ppg_dqn_forward.5} parent=0 // pred_region
    _
  $region13: #{ppg_dqn_forward.5} parent=0 // pred_fallthru
    _
  // Predicated region
  $region14: #{ppg_dqn_forward.5} parent=0 // pred_check
    _
  $region15: #{ppg_dqn_forward.5} parent=0 // pred_check_branch
    %17 = sbr.rel (0) target = $region17
  $region16: #{ppg_dqn_forward.5} parent=0 // pred_region
    _
  $region17: #{ppg_dqn_forward.5} parent=0 // pred_fallthru
    _
  // Predicated region
  $region18: #{ppg_dqn_forward.5} parent=0 // pred_check
    _
  $region19: #{ppg_dqn_forward.5} parent=0 // pred_check_branch
    %19 = sbr.rel (0) target = $region21
  $region20: #{ppg_dqn_forward.5} parent=0 // pred_region
    _
  $region21: #{ppg_dqn_forward.5} parent=0 // pred_fallthru
    _
  %v21 = vld [vmem:[%s0] sm:$0xff]
  %v22 = vld [vmem:[%s0 + $0x8] sm:$0xff]
  %v23 = vld [vmem:[%s0 + $0x10] sm:$0xff]
  %v24 = vld [vmem:[%s0 + $0x18] sm:$0xff]
  %v25 = vld [vmem:[%s0 + $0x20] sm:$0xff]
  %v26 = vld [vmem:[%s0 + $0x28] sm:$0x3]
  %33 = vst [vmem:[#allocation1] ss:$4 sm:$0xff] %v21
  %s34 = scalar_lea.vmem [#allocation1], 32
  %35 = vst [vmem:[%s34] ss:$4 sm:$0xff] %v22
  %v36 = vld.sshfl [vmem:[#allocation1] sm:$0xff pattern:$0x73625140]
  %v37 = vld.sshfl [vmem:[#allocation1 + $0x8] sm:$0xff pattern:$0x73625140]
  %v38 = vld.sshfl [vmem:[#allocation1 + $0x10] sm:$0xff pattern:$0x73625140]
  %v39 = vld.sshfl [vmem:[#allocation1 + $0x18] sm:$0xff pattern:$0x73625140]
  %v40 = vld.sshfl [vmem:[#allocation1 + $0x20] sm:$0xff pattern:$0x73625140]
  %v41 = vld.sshfl [vmem:[#allocation1 + $0x28] sm:$0xff pattern:$0x73625140]
  %v42 = vld.sshfl [vmem:[#allocation1 + $0x30] sm:$0xff pattern:$0x73625140]
  %v43 = vld.sshfl [vmem:[#allocation1 + $0x38] sm:$0xff pattern:$0x73625140]
  %44 = vst [vmem:[#allocation1] ss:$4 sm:$0xff] %v23
  %45 = vst [vmem:[%s34] ss:$4 sm:$0xff] %v24
  %v46 = vld.sshfl [vmem:[#allocation1] sm:$0xff pattern:$0x73625140]
  %v47 = vld.sshfl [vmem:[#allocation1 + $0x8] sm:$0xff pattern:$0x73625140]
  %v48 = vld.sshfl [vmem:[#allocation1 + $0x10] sm:$0xff pattern:$0x73625140]
  %v49 = vld.sshfl [vmem:[#allocation1 + $0x18] sm:$0xff pattern:$0x73625140]
  %v50 = vld.sshfl [vmem:[#allocation1 + $0x20] sm:$0xff pattern:$0x73625140]
  %v51 = vld.sshfl [vmem:[#allocation1 + $0x28] sm:$0xff pattern:$0x73625140]
  %v52 = vld.sshfl [vmem:[#allocation1 + $0x30] sm:$0xff pattern:$0x73625140]
  %v53 = vld.sshfl [vmem:[#allocation1 + $0x38] sm:$0xff pattern:$0x73625140]
  %54 = vst [vmem:[#allocation1] ss:$4 sm:$0xff] %v25
  %55 = vst [vmem:[%s34] ss:$4 sm:$0xff] %v26
  %v56 = vld.sshfl [vmem:[#allocation1] sm:$0xff pattern:$0x73625140]
  %v57 = vld.sshfl [vmem:[#allocation1 + $0x8] sm:$0xff pattern:$0x73625140]
  %v58 = vld.sshfl [vmem:[#allocation1 + $0x10] sm:$0xff pattern:$0x73625140]
  %v59 = vld.sshfl [vmem:[#allocation1 + $0x18] sm:$0xff pattern:$0x73625140]
  %v60 = vld.sshfl [vmem:[#allocation1 + $0x20] sm:$0xff pattern:$0x73625140]
  %v82 = vpack.c.bf16 %v36, %v36
  %v83 = vpack.c.bf16 %v37, %v37
  %v84 = vpack.c.bf16 %v38, %v38
  %v85 = vpack.c.bf16 %v39, %v39
  %v86 = vpack.c.bf16 %v40, %v40
  %v87 = vpack.c.bf16 %v41, %v41
  %v88 = vpack.c.bf16 %v42, %v42
  %v89 = vpack.c.bf16 %v43, %v43
  %v90 = vpack.c.bf16 %v46, %v46
  %v91 = vpack.c.bf16 %v47, %v47
  %v92 = vpack.c.bf16 %v48, %v48
  %v93 = vpack.c.bf16 %v49, %v49
  %v94 = vpack.c.bf16 %v50, %v50
  %v95 = vpack.c.bf16 %v51, %v51
  %v96 = vpack.c.bf16 %v52, %v52
  %v97 = vpack.c.bf16 %v53, %v53
  %v98 = vpack.c.bf16 %v56, %v56
  %v99 = vpack.c.bf16 %v57, %v57
  %v100 = vpack.c.bf16 %v58, %v58
  %v101 = vpack.c.bf16 %v59, %v59
  %v102 = vpack.c.bf16 %v60, %v60
  %v103 = vld [vmem:[%s1] sm:$0xff]
  %v104 = vld [vmem:[%s1 + $0x8] sm:$0xff]
  %v105 = vld [vmem:[%s1 + $0x10] sm:$0xff]
  %v106 = vld [vmem:[%s1 + $0x18] sm:$0xff]
  %v107 = vld [vmem:[%s1 + $0x20] sm:$0xff]
  %v108 = vld [vmem:[%s1 + $0x28] sm:$0xff]
  %v109 = vld [vmem:[%s1 + $0x30] sm:$0xff]
  %v110 = vld [vmem:[%s1 + $0x38] sm:$0xff]
  %v111 = vld [vmem:[%s1 + $0x40] sm:$0xff]
  %v112 = vld [vmem:[%s1 + $0x48] sm:$0xff]
  %v113 = vld [vmem:[%s1 + $0x50] sm:$0xff]
  %v114 = vld [vmem:[%s1 + $0x58] sm:$0xff]
  %v115 = vld [vmem:[%s1 + $0x60] sm:$0xff]
  %v116 = vld [vmem:[%s1 + $0x68] sm:$0xff]
  %v117 = vld [vmem:[%s1 + $0x70] sm:$0xff]
  %v118 = vld [vmem:[%s1 + $0x78] sm:$0xff]
  %v119 = vld [vmem:[%s1 + $0x80] sm:$0xff]
  %v120 = vld [vmem:[%s1 + $0x88] sm:$0xff]
  %v121 = vld [vmem:[%s1 + $0x90] sm:$0xff]
  %v122 = vld [vmem:[%s1 + $0x98] sm:$0xff]
  %v123 = vld [vmem:[%s1 + $0xa0] sm:$0xff]
  %v124 = vld [vmem:[%s1 + $0xa8] sm:$0xff]
  %v125 = vld [vmem:[%s1 + $0xb0] sm:$0xff]
  %v126 = vld [vmem:[%s1 + $0xb8] sm:$0xff]
  %v127 = vld [vmem:[%s1 + $0xc0] sm:$0xff]
  %v128 = vld [vmem:[%s1 + $0xc8] sm:$0xff]
  %v129 = vld [vmem:[%s1 + $0xd0] sm:$0xff]
  %v130 = vld [vmem:[%s1 + $0xd8] sm:$0xff]
  %v131 = vld [vmem:[%s1 + $0xe0] sm:$0xff]
  %v132 = vld [vmem:[%s1 + $0xe8] sm:$0xff]
  %v133 = vld [vmem:[%s1 + $0xf0] sm:$0xff]
  %v134 = vld [vmem:[%s1 + $0xf8] sm:$0xff]
  %v135 = vld [vmem:[%s1 + $0x100] sm:$0xff]
  %v136 = vld [vmem:[%s1 + $0x108] sm:$0xff]
  %v137 = vld [vmem:[%s1 + $0x110] sm:$0xff]
  %v138 = vld [vmem:[%s1 + $0x118] sm:$0xff]
  %v139 = vld [vmem:[%s1 + $0x120] sm:$0xff]
  %v140 = vld [vmem:[%s1 + $0x128] sm:$0xff]
  %v141 = vld [vmem:[%s1 + $0x130] sm:$0xff]
  %v142 = vld [vmem:[%s1 + $0x138] sm:$0xff]
  %v143 = vld [vmem:[%s1 + $0x140] sm:$0xff]
  %v144 = vld [vmem:[%s1 + $0x148] sm:$0xff]
  %v145 = vld [vmem:[%s1 + $0x150] sm:$0xff]
  %v146 = vld [vmem:[%s1 + $0x158] sm:$0xff]
  %v147 = vld [vmem:[%s1 + $0x160] sm:$0xff]
  %v148 = vld [vmem:[%s1 + $0x168] sm:$0xff]
  %v149 = vld [vmem:[%s1 + $0x170] sm:$0xff]
  %v150 = vld [vmem:[%s1 + $0x178] sm:$0xff]
  %v151 = vld [vmem:[%s1 + $0x180] sm:$0xff]
  %v152 = vld [vmem:[%s1 + $0x188] sm:$0xff]
  %v153 = vld [vmem:[%s1 + $0x190] sm:$0xff]
  %v154 = vld [vmem:[%s1 + $0x198] sm:$0xff]
  %v155 = vld [vmem:[%s1 + $0x1a0] sm:$0xff]
  %v156 = vld [vmem:[%s1 + $0x1a8] sm:$0xff]
  %v157 = vld [vmem:[%s1 + $0x1b0] sm:$0xff]
  %v158 = vld [vmem:[%s1 + $0x1b8] sm:$0xff]
  %v159 = vld [vmem:[%s1 + $0x1c0] sm:$0xff]
  %v160 = vld [vmem:[%s1 + $0x1c8] sm:$0xff]
  %v161 = vld [vmem:[%s1 + $0x1d0] sm:$0xff]
  %v162 = vld [vmem:[%s1 + $0x1d8] sm:$0xff]
  %v163 = vld [vmem:[%s1 + $0x1e0] sm:$0xff]
  %v164 = vld [vmem:[%s1 + $0x1e8] sm:$0xff]
  %v165 = vld [vmem:[%s1 + $0x1f0] sm:$0xff]
  %v166 = vld [vmem:[%s1 + $0x1f8] sm:$0xff]
  %v167 = vld [vmem:[%s1 + $0x200] sm:$0xff]
  %v168 = vld [vmem:[%s1 + $0x208] sm:$0xff]
  %v169 = vld [vmem:[%s1 + $0x210] sm:$0xff]
  %v170 = vld [vmem:[%s1 + $0x218] sm:$0xff]
  %v171 = vld [vmem:[%s1 + $0x220] sm:$0xff]
  %v172 = vld [vmem:[%s1 + $0x228] sm:$0xff]
  %v173 = vld [vmem:[%s1 + $0x230] sm:$0xff]
  %v174 = vld [vmem:[%s1 + $0x238] sm:$0xff]
  %v175 = vld [vmem:[%s1 + $0x240] sm:$0xff]
  %v176 = vld [vmem:[%s1 + $0x248] sm:$0xff]
  %v177 = vld [vmem:[%s1 + $0x250] sm:$0xff]
  %v178 = vld [vmem:[%s1 + $0x258] sm:$0xff]
  %v179 = vld [vmem:[%s1 + $0x260] sm:$0xff]
  %v180 = vld [vmem:[%s1 + $0x268] sm:$0xff]
  %v181 = vld [vmem:[%s1 + $0x270] sm:$0xff]
  %v182 = vld [vmem:[%s1 + $0x278] sm:$0xff]
  %v183 = vld [vmem:[%s1 + $0x280] sm:$0xff]
  %v184 = vld [vmem:[%s1 + $0x288] sm:$0xff]
  %v185 = vld [vmem:[%s1 + $0x290] sm:$0xff]
  %v186 = vld [vmem:[%s1 + $0x298] sm:$0xff]
  %v187 = vld [vmem:[%s1 + $0x2a0] sm:$0xff]
  %v188 = vld [vmem:[%s1 + $0x2a8] sm:$0xff]
  %v189 = vld [vmem:[%s1 + $0x2b0] sm:$0xff]
  %v190 = vld [vmem:[%s1 + $0x2b8] sm:$0xff]
  %v191 = vld [vmem:[%s1 + $0x2c0] sm:$0xff]
  %v192 = vld [vmem:[%s1 + $0x2c8] sm:$0xff]
  %v193 = vld [vmem:[%s1 + $0x2d0] sm:$0xff]
  %v194 = vld [vmem:[%s1 + $0x2d8] sm:$0xff]
  %v195 = vld [vmem:[%s1 + $0x2e0] sm:$0xff]
  %v196 = vld [vmem:[%s1 + $0x2e8] sm:$0xff]
  %v197 = vld [vmem:[%s1 + $0x2f0] sm:$0xff]
  %v198 = vld [vmem:[%s1 + $0x2f8] sm:$0xff]
  %v199 = vld [vmem:[%s1 + $0x300] sm:$0xff]
  %v200 = vld [vmem:[%s1 + $0x308] sm:$0xff]
  %v201 = vld [vmem:[%s1 + $0x310] sm:$0xff]
  %v202 = vld [vmem:[%s1 + $0x318] sm:$0xff]
  %v203 = vld [vmem:[%s1 + $0x320] sm:$0xff]
  %v204 = vld [vmem:[%s1 + $0x328] sm:$0xff]
  %v205 = vld [vmem:[%s1 + $0x330] sm:$0xff]
  %v206 = vld [vmem:[%s1 + $0x338] sm:$0xff]
  %v207 = vld [vmem:[%s1 + $0x340] sm:$0xff]
  %v208 = vld [vmem:[%s1 + $0x348] sm:$0xff]
  %v209 = vld [vmem:[%s1 + $0x350] sm:$0xff]
  %v210 = vld [vmem:[%s1 + $0x358] sm:$0xff]
  %v211 = vld [vmem:[%s1 + $0x360] sm:$0xff]
  %v212 = vld [vmem:[%s1 + $0x368] sm:$0xff]
  %v213 = vld [vmem:[%s1 + $0x370] sm:$0xff]
  %v214 = vld [vmem:[%s1 + $0x378] sm:$0xff]
  %v215 = vld [vmem:[%s1 + $0x380] sm:$0xff]
  %v216 = vld [vmem:[%s1 + $0x388] sm:$0xff]
  %v217 = vld [vmem:[%s1 + $0x390] sm:$0xff]
  %v218 = vld [vmem:[%s1 + $0x398] sm:$0xff]
  %v219 = vld [vmem:[%s1 + $0x3a0] sm:$0xff]
  %v220 = vld [vmem:[%s1 + $0x3a8] sm:$0xff]
  %v221 = vld [vmem:[%s1 + $0x3b0] sm:$0xff]
  %v222 = vld [vmem:[%s1 + $0x3b8] sm:$0xff]
  %v223 = vld [vmem:[%s1 + $0x3c0] sm:$0xff]
  %v224 = vld [vmem:[%s1 + $0x3c8] sm:$0xff]
  %v225 = vld [vmem:[%s1 + $0x3d0] sm:$0xff]
  %v226 = vld [vmem:[%s1 + $0x3d8] sm:$0xff]
  %v227 = vld [vmem:[%s1 + $0x3e0] sm:$0xff]
  %v228 = vld [vmem:[%s1 + $0x3e8] sm:$0xff]
  %v229 = vld [vmem:[%s1 + $0x3f0] sm:$0xff]
  %v230 = vld [vmem:[%s1 + $0x3f8] sm:$0xff]
  %v231 = vld [vmem:[%s1 + $0x400] sm:$0xff]
  %v232 = vld [vmem:[%s1 + $0x408] sm:$0xff]
  %v233 = vld [vmem:[%s1 + $0x410] sm:$0xff]
  %v234 = vld [vmem:[%s1 + $0x418] sm:$0xff]
  %v235 = vld [vmem:[%s1 + $0x420] sm:$0xff]
  %v236 = vld [vmem:[%s1 + $0x428] sm:$0xff]
  %v237 = vld [vmem:[%s1 + $0x430] sm:$0xff]
  %v238 = vld [vmem:[%s1 + $0x438] sm:$0xff]
  %v239 = vld [vmem:[%s1 + $0x440] sm:$0xff]
  %v240 = vld [vmem:[%s1 + $0x448] sm:$0xff]
  %v241 = vld [vmem:[%s1 + $0x450] sm:$0xff]
  %v242 = vld [vmem:[%s1 + $0x458] sm:$0xff]
  %v243 = vld [vmem:[%s1 + $0x460] sm:$0xff]
  %v244 = vld [vmem:[%s1 + $0x468] sm:$0xff]
  %v245 = vld [vmem:[%s1 + $0x470] sm:$0xff]
  %v246 = vld [vmem:[%s1 + $0x478] sm:$0xff]
  %v247 = vld [vmem:[%s1 + $0x480] sm:$0xff]
  %v248 = vld [vmem:[%s1 + $0x488] sm:$0xff]
  %v249 = vld [vmem:[%s1 + $0x490] sm:$0xff]
  %v250 = vld [vmem:[%s1 + $0x498] sm:$0xff]
  %v251 = vld [vmem:[%s1 + $0x4a0] sm:$0xff]
  %v252 = vld [vmem:[%s1 + $0x4a8] sm:$0xff]
  %v253 = vld [vmem:[%s1 + $0x4b0] sm:$0xff]
  %v254 = vld [vmem:[%s1 + $0x4b8] sm:$0xff]
  %v255 = vld [vmem:[%s1 + $0x4c0] sm:$0xff]
  %v256 = vld [vmem:[%s1 + $0x4c8] sm:$0xff]
  %v257 = vld [vmem:[%s1 + $0x4d0] sm:$0xff]
  %v258 = vld [vmem:[%s1 + $0x4d8] sm:$0xff]
  %v259 = vld [vmem:[%s1 + $0x4e0] sm:$0xff]
  %v260 = vld [vmem:[%s1 + $0x4e8] sm:$0xff]
  %v261 = vld [vmem:[%s1 + $0x4f0] sm:$0xff]
  %v262 = vld [vmem:[%s1 + $0x4f8] sm:$0xff]
  %v263 = vld [vmem:[%s1 + $0x500] sm:$0xff]
  %v264 = vld [vmem:[%s1 + $0x508] sm:$0xff]
  %v265 = vld [vmem:[%s1 + $0x510] sm:$0xff]
  %v266 = vld [vmem:[%s1 + $0x518] sm:$0xff]
  %v267 = vld [vmem:[%s1 + $0x520] sm:$0xff]
  %v268 = vld [vmem:[%s1 + $0x528] sm:$0xff]
  %v269 = vld [vmem:[%s1 + $0x530] sm:$0xff]
  %v270 = vld [vmem:[%s1 + $0x538] sm:$0xff]
  %v271 = vld [vmem:[%s1 + $0x540] sm:$0xff]
  %v272 = vld [vmem:[%s1 + $0x548] sm:$0xff]
  %v273 = vld [vmem:[%s1 + $0x550] sm:$0xff]
  %v274 = vld [vmem:[%s1 + $0x558] sm:$0xff]
  %v275 = vld [vmem:[%s1 + $0x560] sm:$0xff]
  %v276 = vld [vmem:[%s1 + $0x568] sm:$0xff]
  %v277 = vld [vmem:[%s1 + $0x570] sm:$0xff]
  %v278 = vld [vmem:[%s1 + $0x578] sm:$0xff]
  %v279 = vld [vmem:[%s1 + $0x580] sm:$0xff]
  %v280 = vld [vmem:[%s1 + $0x588] sm:$0xff]
  %v281 = vld [vmem:[%s1 + $0x590] sm:$0xff]
  %v282 = vld [vmem:[%s1 + $0x598] sm:$0xff]
  %v283 = vld [vmem:[%s1 + $0x5a0] sm:$0xff]
  %v284 = vld [vmem:[%s1 + $0x5a8] sm:$0xff]
  %v285 = vld [vmem:[%s1 + $0x5b0] sm:$0xff]
  %v286 = vld [vmem:[%s1 + $0x5b8] sm:$0xff]
  %v287 = vld [vmem:[%s1 + $0x5c0] sm:$0xff]
  %v288 = vld [vmem:[%s1 + $0x5c8] sm:$0xff]
  %v289 = vld [vmem:[%s1 + $0x5d0] sm:$0xff]
  %v290 = vld [vmem:[%s1 + $0x5d8] sm:$0xff]
  %v291 = vld [vmem:[%s1 + $0x5e0] sm:$0xff]
  %v292 = vld [vmem:[%s1 + $0x5e8] sm:$0xff]
  %v293 = vld [vmem:[%s1 + $0x5f0] sm:$0xff]
  %v294 = vld [vmem:[%s1 + $0x5f8] sm:$0xff]
  %v295 = vld [vmem:[%s1 + $0x600] sm:$0xff]
  %v296 = vld [vmem:[%s1 + $0x608] sm:$0xff]
  %v297 = vld [vmem:[%s1 + $0x610] sm:$0xff]
  %v298 = vld [vmem:[%s1 + $0x618] sm:$0xff]
  %v299 = vld [vmem:[%s1 + $0x620] sm:$0xff]
  %v300 = vld [vmem:[%s1 + $0x628] sm:$0xff]
  %v301 = vld [vmem:[%s1 + $0x630] sm:$0xff]
  %v302 = vld [vmem:[%s1 + $0x638] sm:$0xff]
  %v303 = vld [vmem:[%s1 + $0x640] sm:$0xff]
  %v304 = vld [vmem:[%s1 + $0x648] sm:$0xff]
  %v305 = vld [vmem:[%s1 + $0x650] sm:$0xff]
  %v306 = vld [vmem:[%s1 + $0x658] sm:$0xff]
  %v307 = vld [vmem:[%s1 + $0x660] sm:$0xff]
  %v308 = vld [vmem:[%s1 + $0x668] sm:$0xff]
  %v309 = vld [vmem:[%s1 + $0x670] sm:$0xff]
  %v310 = vld [vmem:[%s1 + $0x678] sm:$0xff]
  %v311 = vld [vmem:[%s1 + $0x680] sm:$0xff]
  %v312 = vld [vmem:[%s1 + $0x688] sm:$0xff]
  %v313 = vld [vmem:[%s1 + $0x690] sm:$0xff]
  %v314 = vld [vmem:[%s1 + $0x698] sm:$0xff]
  %v315 = vld [vmem:[%s1 + $0x6a0] sm:$0xff]
  %v316 = vld [vmem:[%s1 + $0x6a8] sm:$0xff]
  %v317 = vld [vmem:[%s1 + $0x6b0] sm:$0xff]
  %v318 = vld [vmem:[%s1 + $0x6b8] sm:$0xff]
  %v319 = vld [vmem:[%s1 + $0x6c0] sm:$0xff]
  %v320 = vld [vmem:[%s1 + $0x6c8] sm:$0xff]
  %v321 = vld [vmem:[%s1 + $0x6d0] sm:$0xff]
  %v322 = vld [vmem:[%s1 + $0x6d8] sm:$0xff]
  %v323 = vld [vmem:[%s1 + $0x6e0] sm:$0xff]
  %v324 = vld [vmem:[%s1 + $0x6e8] sm:$0xff]
  %v325 = vld [vmem:[%s1 + $0x6f0] sm:$0xff]
  %v326 = vld [vmem:[%s1 + $0x6f8] sm:$0xff]
  %v327 = vld [vmem:[%s1 + $0x700] sm:$0xff]
  %v328 = vld [vmem:[%s1 + $0x708] sm:$0xff]
  %v329 = vld [vmem:[%s1 + $0x710] sm:$0xff]
  %v330 = vld [vmem:[%s1 + $0x718] sm:$0xff]
  %v331 = vld [vmem:[%s1 + $0x720] sm:$0xff]
  %v332 = vld [vmem:[%s1 + $0x728] sm:$0xff]
  %v333 = vld [vmem:[%s1 + $0x730] sm:$0xff]
  %v334 = vld [vmem:[%s1 + $0x738] sm:$0xff]
  %v335 = vld [vmem:[%s1 + $0x740] sm:$0xff]
  %v336 = vld [vmem:[%s1 + $0x748] sm:$0xff]
  %v337 = vld [vmem:[%s1 + $0x750] sm:$0xff]
  %v338 = vld [vmem:[%s1 + $0x758] sm:$0xff]
  %v339 = vld [vmem:[%s1 + $0x760] sm:$0xff]
  %v340 = vld [vmem:[%s1 + $0x768] sm:$0xff]
  %v341 = vld [vmem:[%s1 + $0x770] sm:$0xff]
  %v342 = vld [vmem:[%s1 + $0x778] sm:$0xff]
  %v343 = vld [vmem:[%s1 + $0x780] sm:$0xff]
  %v344 = vld [vmem:[%s1 + $0x788] sm:$0xff]
  %v345 = vld [vmem:[%s1 + $0x790] sm:$0xff]
  %v346 = vld [vmem:[%s1 + $0x798] sm:$0xff]
  %v347 = vld [vmem:[%s1 + $0x7a0] sm:$0xff]
  %v348 = vld [vmem:[%s1 + $0x7a8] sm:$0xff]
  %v349 = vld [vmem:[%s1 + $0x7b0] sm:$0xff]
  %v350 = vld [vmem:[%s1 + $0x7b8] sm:$0xff]
  %v351 = vld [vmem:[%s1 + $0x7c0] sm:$0xff]
  %v352 = vld [vmem:[%s1 + $0x7c8] sm:$0xff]
  %v353 = vld [vmem:[%s1 + $0x7d0] sm:$0xff]
  %v354 = vld [vmem:[%s1 + $0x7d8] sm:$0xff]
  %v355 = vld [vmem:[%s1 + $0x7e0] sm:$0xff]
  %v356 = vld [vmem:[%s1 + $0x7e8] sm:$0xff]
  %v357 = vld [vmem:[%s1 + $0x7f0] sm:$0xff]
  %v358 = vld [vmem:[%s1 + $0x7f8] sm:$0xff]
  %v359 = vld [vmem:[%s1 + $0x800] sm:$0xff]
  %v360 = vld [vmem:[%s1 + $0x808] sm:$0xff]
  %v361 = vld [vmem:[%s1 + $0x810] sm:$0xff]
  %v362 = vld [vmem:[%s1 + $0x818] sm:$0xff]
  %v363 = vld [vmem:[%s1 + $0x820] sm:$0xff]
  %v364 = vld [vmem:[%s1 + $0x828] sm:$0xff]
  %v365 = vld [vmem:[%s1 + $0x830] sm:$0xff]
  %v366 = vld [vmem:[%s1 + $0x838] sm:$0xff]
  %v367 = vld [vmem:[%s1 + $0x840] sm:$0xff]
  %v368 = vld [vmem:[%s1 + $0x848] sm:$0xff]
  %v369 = vld [vmem:[%s1 + $0x850] sm:$0xff]
  %v370 = vld [vmem:[%s1 + $0x858] sm:$0xff]
  %v371 = vld [vmem:[%s1 + $0x860] sm:$0xff]
  %v372 = vld [vmem:[%s1 + $0x868] sm:$0xff]
  %v373 = vld [vmem:[%s1 + $0x870] sm:$0xff]
  %v374 = vld [vmem:[%s1 + $0x878] sm:$0xff]
  %v375 = vld [vmem:[%s1 + $0x880] sm:$0xff]
  %v376 = vld [vmem:[%s1 + $0x888] sm:$0xff]
  %v377 = vld [vmem:[%s1 + $0x890] sm:$0xff]
  %v378 = vld [vmem:[%s1 + $0x898] sm:$0xff]
  %v379 = vld [vmem:[%s1 + $0x8a0] sm:$0xff]
  %v380 = vld [vmem:[%s1 + $0x8a8] sm:$0xff]
  %v381 = vld [vmem:[%s1 + $0x8b0] sm:$0xff]
  %v382 = vld [vmem:[%s1 + $0x8b8] sm:$0xff]
  %v383 = vld [vmem:[%s1 + $0x8c0] sm:$0xff]
  %v384 = vld [vmem:[%s1 + $0x8c8] sm:$0xff]
  %v385 = vld [vmem:[%s1 + $0x8d0] sm:$0xff]
  %v386 = vld [vmem:[%s1 + $0x8d8] sm:$0xff]
  %v387 = vld [vmem:[%s1 + $0x8e0] sm:$0xff]
  %v388 = vld [vmem:[%s1 + $0x8e8] sm:$0xff]
  %v389 = vld [vmem:[%s1 + $0x8f0] sm:$0xff]
  %v390 = vld [vmem:[%s1 + $0x8f8] sm:$0xff]
  %v391 = vld [vmem:[%s1 + $0x900] sm:$0xff]
  %v392 = vld [vmem:[%s1 + $0x908] sm:$0xff]
  %v393 = vld [vmem:[%s1 + $0x910] sm:$0xff]
  %v394 = vld [vmem:[%s1 + $0x918] sm:$0xff]
  %v395 = vld [vmem:[%s1 + $0x920] sm:$0xff]
  %v396 = vld [vmem:[%s1 + $0x928] sm:$0xff]
  %v397 = vld [vmem:[%s1 + $0x930] sm:$0xff]
  %v398 = vld [vmem:[%s1 + $0x938] sm:$0xff]
  %v399 = vld [vmem:[%s1 + $0x940] sm:$0xff]
  %v400 = vld [vmem:[%s1 + $0x948] sm:$0xff]
  %v401 = vld [vmem:[%s1 + $0x950] sm:$0xff]
  %v402 = vld [vmem:[%s1 + $0x958] sm:$0xff]
  %v403 = vld [vmem:[%s1 + $0x960] sm:$0xff]
  %v404 = vld [vmem:[%s1 + $0x968] sm:$0xff]
  %v405 = vld [vmem:[%s1 + $0x970] sm:$0xff]
  %v406 = vld [vmem:[%s1 + $0x978] sm:$0xff]
  %v407 = vld [vmem:[%s1 + $0x980] sm:$0xff]
  %v408 = vld [vmem:[%s1 + $0x988] sm:$0xff]
  %v409 = vld [vmem:[%s1 + $0x990] sm:$0xff]
  %v410 = vld [vmem:[%s1 + $0x998] sm:$0xff]
  %v411 = vld [vmem:[%s1 + $0x9a0] sm:$0xff]
  %v412 = vld [vmem:[%s1 + $0x9a8] sm:$0xff]
  %v413 = vld [vmem:[%s1 + $0x9b0] sm:$0xff]
  %v414 = vld [vmem:[%s1 + $0x9b8] sm:$0xff]
  %v415 = vld [vmem:[%s1 + $0x9c0] sm:$0xff]
  %v416 = vld [vmem:[%s1 + $0x9c8] sm:$0xff]
  %v417 = vld [vmem:[%s1 + $0x9d0] sm:$0xff]
  %v418 = vld [vmem:[%s1 + $0x9d8] sm:$0xff]
  %v419 = vld [vmem:[%s1 + $0x9e0] sm:$0xff]
  %v420 = vld [vmem:[%s1 + $0x9e8] sm:$0xff]
  %v421 = vld [vmem:[%s1 + $0x9f0] sm:$0xff]
  %v422 = vld [vmem:[%s1 + $0x9f8] sm:$0xff]
  %v423 = vld [vmem:[%s1 + $0xa00] sm:$0xff]
  %v424 = vld [vmem:[%s1 + $0xa08] sm:$0xff]
  %v425 = vld [vmem:[%s1 + $0xa10] sm:$0xff]
  %v426 = vld [vmem:[%s1 + $0xa18] sm:$0xff]
  %v427 = vld [vmem:[%s2] sm:$0x3]
  %v429 = vperm.slane %v427, 0
  %v430 = vperm.slane %v427, 1
  %v757 = vunpack.c.l.b16 %v103
  %v758 = vunpack.c.h.b16 %v103
  %v759 = vunpack.c.l.b16 %v104
  %v760 = vunpack.c.h.b16 %v104
  %v761 = vunpack.c.l.b16 %v105
  %v762 = vunpack.c.h.b16 %v105
  %v763 = vunpack.c.l.b16 %v106
  %v764 = vunpack.c.h.b16 %v106
  %v765 = vunpack.c.l.b16 %v107
  %v766 = vunpack.c.h.b16 %v107
  %v767 = vunpack.c.l.b16 %v108
  %v768 = vunpack.c.h.b16 %v108
  %v769 = vunpack.c.l.b16 %v109
  %v770 = vunpack.c.h.b16 %v109
  %v771 = vunpack.c.l.b16 %v110
  %v772 = vunpack.c.h.b16 %v110
  %v773 = vunpack.c.l.b16 %v111
  %v774 = vunpack.c.h.b16 %v111
  %v775 = vunpack.c.l.b16 %v112
  %v776 = vunpack.c.h.b16 %v112
  %v777 = vunpack.c.l.b16 %v113
  %v778 = vunpack.c.h.b16 %v113
  %v779 = vunpack.c.l.b16 %v114
  %v780 = vunpack.c.h.b16 %v114
  %v781 = vunpack.c.l.b16 %v115
  %v782 = vunpack.c.h.b16 %v115
  %v783 = vunpack.c.l.b16 %v116
  %v784 = vunpack.c.h.b16 %v116
  %v785 = vunpack.c.l.b16 %v117
  %v786 = vunpack.c.h.b16 %v117
  %v787 = vunpack.c.l.b16 %v118
  %v788 = vunpack.c.h.b16 %v118
  %v789 = vunpack.c.l.b16 %v119
  %v790 = vunpack.c.h.b16 %v119
  %v791 = vunpack.c.l.b16 %v120
  %v792 = vunpack.c.h.b16 %v120
  %v793 = vunpack.c.l.b16 %v121
  %v794 = vunpack.c.h.b16 %v121
  %v795 = vunpack.c.l.b16 %v122
  %v796 = vunpack.c.h.b16 %v122
  %v797 = vunpack.c.l.b16 %v123
  %v798 = vunpack.c.h.b16 %v123
  %v799 = vunpack.c.l.b16 %v124
  %v800 = vunpack.c.h.b16 %v124
  %v801 = vunpack.c.l.b16 %v125
  %v802 = vunpack.c.h.b16 %v125
  %v803 = vunpack.c.l.b16 %v126
  %v804 = vunpack.c.h.b16 %v126
  %v805 = vunpack.c.l.b16 %v127
  %v806 = vunpack.c.h.b16 %v127
  %v807 = vunpack.c.l.b16 %v128
  %v808 = vunpack.c.h.b16 %v128
  %v809 = vunpack.c.l.b16 %v129
  %v810 = vunpack.c.h.b16 %v129
  %v811 = vunpack.c.l.b16 %v130
  %v812 = vunpack.c.h.b16 %v130
  %v813 = vunpack.c.l.b16 %v131
  %v814 = vunpack.c.h.b16 %v131
  %v815 = vunpack.c.l.b16 %v132
  %v816 = vunpack.c.h.b16 %v132
  %v817 = vunpack.c.l.b16 %v133
  %v818 = vunpack.c.h.b16 %v133
  %v819 = vunpack.c.l.b16 %v134
  %v820 = vunpack.c.h.b16 %v134
  %v821 = vunpack.c.l.b16 %v135
  %v822 = vunpack.c.h.b16 %v135
  %v823 = vunpack.c.l.b16 %v136
  %v824 = vunpack.c.h.b16 %v136
  %v825 = vunpack.c.l.b16 %v137
  %v826 = vunpack.c.h.b16 %v137
  %v827 = vunpack.c.l.b16 %v138
  %v828 = vunpack.c.h.b16 %v138
  %v829 = vunpack.c.l.b16 %v139
  %v830 = vunpack.c.h.b16 %v139
  %v831 = vunpack.c.l.b16 %v140
  %v832 = vunpack.c.h.b16 %v140
  %v833 = vunpack.c.l.b16 %v141
  %v834 = vunpack.c.h.b16 %v141
  %v835 = vunpack.c.l.b16 %v142
  %v836 = vunpack.c.h.b16 %v142
  %v837 = vunpack.c.l.b16 %v143
  %v838 = vunpack.c.h.b16 %v143
  %v839 = vunpack.c.l.b16 %v144
  %v840 = vunpack.c.h.b16 %v144
  %v841 = vunpack.c.l.b16 %v145
  %v842 = vunpack.c.h.b16 %v145
  %v843 = vunpack.c.l.b16 %v146
  %v844 = vunpack.c.h.b16 %v146
  %v845 = vunpack.c.l.b16 %v147
  %v846 = vunpack.c.h.b16 %v147
  %v847 = vunpack.c.l.b16 %v148
  %v848 = vunpack.c.h.b16 %v148
  %v849 = vunpack.c.l.b16 %v149
  %v850 = vunpack.c.h.b16 %v149
  %v851 = vunpack.c.l.b16 %v150
  %v852 = vunpack.c.h.b16 %v150
  %v853 = vunpack.c.l.b16 %v151
  %v854 = vunpack.c.h.b16 %v151
  %v855 = vunpack.c.l.b16 %v152
  %v856 = vunpack.c.h.b16 %v152
  %v857 = vunpack.c.l.b16 %v153
  %v858 = vunpack.c.h.b16 %v153
  %v859 = vunpack.c.l.b16 %v154
  %v860 = vunpack.c.h.b16 %v154
  %v861 = vunpack.c.l.b16 %v155
  %v862 = vunpack.c.h.b16 %v155
  %v863 = vunpack.c.l.b16 %v156
  %v864 = vunpack.c.h.b16 %v156
  %v865 = vunpack.c.l.b16 %v157
  %v866 = vunpack.c.h.b16 %v157
  %v867 = vunpack.c.l.b16 %v158
  %v868 = vunpack.c.h.b16 %v158
  %v869 = vunpack.c.l.b16 %v159
  %v870 = vunpack.c.h.b16 %v159
  %v871 = vunpack.c.l.b16 %v160
  %v872 = vunpack.c.h.b16 %v160
  %v873 = vunpack.c.l.b16 %v161
  %v874 = vunpack.c.h.b16 %v161
  %v875 = vunpack.c.l.b16 %v162
  %v876 = vunpack.c.h.b16 %v162
  %v877 = vunpack.c.l.b16 %v163
  %v878 = vunpack.c.h.b16 %v163
  %v879 = vunpack.c.l.b16 %v164
  %v880 = vunpack.c.h.b16 %v164
  %v881 = vunpack.c.l.b16 %v165
  %v882 = vunpack.c.h.b16 %v165
  %v883 = vunpack.c.l.b16 %v166
  %v884 = vunpack.c.h.b16 %v166
  %v885 = vunpack.c.l.b16 %v167
  %v886 = vunpack.c.h.b16 %v167
  %v887 = vunpack.c.l.b16 %v168
  %v888 = vunpack.c.h.b16 %v168
  %v889 = vunpack.c.l.b16 %v169
  %v890 = vunpack.c.h.b16 %v169
  %v891 = vunpack.c.l.b16 %v170
  %v892 = vunpack.c.h.b16 %v170
  %v893 = vunpack.c.l.b16 %v171
  %v894 = vunpack.c.h.b16 %v171
  %v895 = vunpack.c.l.b16 %v172
  %v896 = vunpack.c.h.b16 %v172
  %v897 = vunpack.c.l.b16 %v173
  %v898 = vunpack.c.h.b16 %v173
  %v899 = vunpack.c.l.b16 %v174
  %v900 = vunpack.c.h.b16 %v174
  %v901 = vunpack.c.l.b16 %v175
  %v902 = vunpack.c.h.b16 %v175
  %v903 = vunpack.c.l.b16 %v176
  %v904 = vunpack.c.h.b16 %v176
  %v905 = vunpack.c.l.b16 %v177
  %v906 = vunpack.c.h.b16 %v177
  %v907 = vunpack.c.l.b16 %v178
  %v908 = vunpack.c.h.b16 %v178
  %v909 = vunpack.c.l.b16 %v179
  %v910 = vunpack.c.h.b16 %v179
  %v911 = vunpack.c.l.b16 %v180
  %v912 = vunpack.c.h.b16 %v180
  %v913 = vunpack.c.l.b16 %v181
  %v914 = vunpack.c.h.b16 %v181
  %v915 = vunpack.c.l.b16 %v182
  %v916 = vunpack.c.h.b16 %v182
  %v917 = vunpack.c.l.b16 %v183
  %v918 = vunpack.c.h.b16 %v183
  %v919 = vunpack.c.l.b16 %v184
  %v920 = vunpack.c.h.b16 %v184
  %v921 = vunpack.c.l.b16 %v185
  %v922 = vunpack.c.h.b16 %v185
  %v923 = vunpack.c.l.b16 %v186
  %v924 = vunpack.c.h.b16 %v186
  %v925 = vunpack.c.l.b16 %v187
  %v926 = vunpack.c.h.b16 %v187
  %v927 = vunpack.c.l.b16 %v188
  %v928 = vunpack.c.h.b16 %v188
  %v929 = vunpack.c.l.b16 %v189
  %v930 = vunpack.c.h.b16 %v189
  %v931 = vunpack.c.l.b16 %v190
  %v932 = vunpack.c.h.b16 %v190
  %v933 = vunpack.c.l.b16 %v191
  %v934 = vunpack.c.h.b16 %v191
  %v935 = vunpack.c.l.b16 %v192
  %v936 = vunpack.c.h.b16 %v192
  %v937 = vunpack.c.l.b16 %v193
  %v938 = vunpack.c.h.b16 %v193
  %v939 = vunpack.c.l.b16 %v194
  %v940 = vunpack.c.h.b16 %v194
  %v941 = vunpack.c.l.b16 %v195
  %v942 = vunpack.c.h.b16 %v195
  %v943 = vunpack.c.l.b16 %v196
  %v944 = vunpack.c.h.b16 %v196
  %v945 = vunpack.c.l.b16 %v197
  %v946 = vunpack.c.h.b16 %v197
  %v947 = vunpack.c.l.b16 %v198
  %v948 = vunpack.c.h.b16 %v198
  %v949 = vunpack.c.l.b16 %v199
  %v950 = vunpack.c.h.b16 %v199
  %v951 = vunpack.c.l.b16 %v200
  %v952 = vunpack.c.h.b16 %v200
  %v953 = vunpack.c.l.b16 %v201
  %v954 = vunpack.c.h.b16 %v201
  %v955 = vunpack.c.l.b16 %v202
  %v956 = vunpack.c.h.b16 %v202
  %v957 = vunpack.c.l.b16 %v203
  %v958 = vunpack.c.h.b16 %v203
  %v959 = vunpack.c.l.b16 %v204
  %v960 = vunpack.c.h.b16 %v204
  %v961 = vunpack.c.l.b16 %v205
  %v962 = vunpack.c.h.b16 %v205
  %v963 = vunpack.c.l.b16 %v206
  %v964 = vunpack.c.h.b16 %v206
  %v965 = vunpack.c.l.b16 %v207
  %v966 = vunpack.c.h.b16 %v207
  %v967 = vunpack.c.l.b16 %v208
  %v968 = vunpack.c.h.b16 %v208
  %v969 = vunpack.c.l.b16 %v209
  %v970 = vunpack.c.h.b16 %v209
  %v971 = vunpack.c.l.b16 %v210
  %v972 = vunpack.c.h.b16 %v210
  %v973 = vunpack.c.l.b16 %v211
  %v974 = vunpack.c.h.b16 %v211
  %v975 = vunpack.c.l.b16 %v212
  %v976 = vunpack.c.h.b16 %v212
  %v977 = vunpack.c.l.b16 %v213
  %v978 = vunpack.c.h.b16 %v213
  %v979 = vunpack.c.l.b16 %v214
  %v980 = vunpack.c.h.b16 %v214
  %v981 = vunpack.c.l.b16 %v215
  %v982 = vunpack.c.h.b16 %v215
  %v983 = vunpack.c.l.b16 %v216
  %v984 = vunpack.c.h.b16 %v216
  %v985 = vunpack.c.l.b16 %v217
  %v986 = vunpack.c.h.b16 %v217
  %v987 = vunpack.c.l.b16 %v218
  %v988 = vunpack.c.h.b16 %v218
  %v989 = vunpack.c.l.b16 %v219
  %v990 = vunpack.c.h.b16 %v219
  %v991 = vunpack.c.l.b16 %v220
  %v992 = vunpack.c.h.b16 %v220
  %v993 = vunpack.c.l.b16 %v221
  %v994 = vunpack.c.h.b16 %v221
  %v995 = vunpack.c.l.b16 %v222
  %v996 = vunpack.c.h.b16 %v222
  %v997 = vunpack.c.l.b16 %v223
  %v998 = vunpack.c.h.b16 %v223
  %v999 = vunpack.c.l.b16 %v224
  %v1000 = vunpack.c.h.b16 %v224
  %v1001 = vunpack.c.l.b16 %v225
  %v1002 = vunpack.c.h.b16 %v225
  %v1003 = vunpack.c.l.b16 %v226
  %v1004 = vunpack.c.h.b16 %v226
  %v1005 = vunpack.c.l.b16 %v227
  %v1006 = vunpack.c.h.b16 %v227
  %v1007 = vunpack.c.l.b16 %v228
  %v1008 = vunpack.c.h.b16 %v228
  %v1009 = vunpack.c.l.b16 %v229
  %v1010 = vunpack.c.h.b16 %v229
  %v1011 = vunpack.c.l.b16 %v230
  %v1012 = vunpack.c.h.b16 %v230
  %v1013 = vunpack.c.l.b16 %v231
  %v1014 = vunpack.c.h.b16 %v231
  %v1015 = vunpack.c.l.b16 %v232
  %v1016 = vunpack.c.h.b16 %v232
  %v1017 = vunpack.c.l.b16 %v233
  %v1018 = vunpack.c.h.b16 %v233
  %v1019 = vunpack.c.l.b16 %v234
  %v1020 = vunpack.c.h.b16 %v234
  %v1021 = vunpack.c.l.b16 %v235
  %v1022 = vunpack.c.h.b16 %v235
  %v1023 = vunpack.c.l.b16 %v236
  %v1024 = vunpack.c.h.b16 %v236
  %v1025 = vunpack.c.l.b16 %v237
  %v1026 = vunpack.c.h.b16 %v237
  %v1027 = vunpack.c.l.b16 %v238
  %v1028 = vunpack.c.h.b16 %v238
  %v1029 = vunpack.c.l.b16 %v239
  %v1030 = vunpack.c.h.b16 %v239
  %v1031 = vunpack.c.l.b16 %v240
  %v1032 = vunpack.c.h.b16 %v240
  %v1033 = vunpack.c.l.b16 %v241
  %v1034 = vunpack.c.h.b16 %v241
  %v1035 = vunpack.c.l.b16 %v242
  %v1036 = vunpack.c.h.b16 %v242
  %v1037 = vunpack.c.l.b16 %v243
  %v1038 = vunpack.c.h.b16 %v243
  %v1039 = vunpack.c.l.b16 %v244
  %v1040 = vunpack.c.h.b16 %v244
  %v1041 = vunpack.c.l.b16 %v245
  %v1042 = vunpack.c.h.b16 %v245
  %v1043 = vunpack.c.l.b16 %v246
  %v1044 = vunpack.c.h.b16 %v246
  %v1045 = vunpack.c.l.b16 %v247
  %v1046 = vunpack.c.h.b16 %v247
  %v1047 = vunpack.c.l.b16 %v248
  %v1048 = vunpack.c.h.b16 %v248
  %v1049 = vunpack.c.l.b16 %v249
  %v1050 = vunpack.c.h.b16 %v249
  %v1051 = vunpack.c.l.b16 %v250
  %v1052 = vunpack.c.h.b16 %v250
  %v1053 = vunpack.c.l.b16 %v251
  %v1054 = vunpack.c.h.b16 %v251
  %v1055 = vunpack.c.l.b16 %v252
  %v1056 = vunpack.c.h.b16 %v252
  %v1057 = vunpack.c.l.b16 %v253
  %v1058 = vunpack.c.h.b16 %v253
  %v1059 = vunpack.c.l.b16 %v254
  %v1060 = vunpack.c.h.b16 %v254
  %v1061 = vunpack.c.l.b16 %v255
  %v1062 = vunpack.c.h.b16 %v255
  %v1063 = vunpack.c.l.b16 %v256
  %v1064 = vunpack.c.h.b16 %v256
  %v1065 = vunpack.c.l.b16 %v257
  %v1066 = vunpack.c.h.b16 %v257
  %v1067 = vunpack.c.l.b16 %v258
  %v1068 = vunpack.c.h.b16 %v258
  %v1069 = vunpack.c.l.b16 %v259
  %v1070 = vunpack.c.h.b16 %v259
  %v1071 = vunpack.c.l.b16 %v260
  %v1072 = vunpack.c.h.b16 %v260
  %v1073 = vunpack.c.l.b16 %v261
  %v1074 = vunpack.c.h.b16 %v261
  %v1075 = vunpack.c.l.b16 %v262
  %v1076 = vunpack.c.h.b16 %v262
  %v1077 = vunpack.c.l.b16 %v263
  %v1078 = vunpack.c.h.b16 %v263
  %v1079 = vunpack.c.l.b16 %v264
  %v1080 = vunpack.c.h.b16 %v264
  %v1081 = vunpack.c.l.b16 %v265
  %v1082 = vunpack.c.h.b16 %v265
  %v1083 = vunpack.c.l.b16 %v266
  %v1084 = vunpack.c.h.b16 %v266
  %v1085 = vunpack.c.l.b16 %v267
  %v1086 = vunpack.c.h.b16 %v267
  %v1087 = vunpack.c.l.b16 %v268
  %v1088 = vunpack.c.h.b16 %v268
  %v1089 = vunpack.c.l.b16 %v269
  %v1090 = vunpack.c.h.b16 %v269
  %v1091 = vunpack.c.l.b16 %v270
  %v1092 = vunpack.c.h.b16 %v270
  %v1093 = vunpack.c.l.b16 %v271
  %v1094 = vunpack.c.h.b16 %v271
  %v1095 = vunpack.c.l.b16 %v272
  %v1096 = vunpack.c.h.b16 %v272
  %v1097 = vunpack.c.l.b16 %v273
  %v1098 = vunpack.c.h.b16 %v273
  %v1099 = vunpack.c.l.b16 %v274
  %v1100 = vunpack.c.h.b16 %v274
  %v1101 = vunpack.c.l.b16 %v275
  %v1102 = vunpack.c.h.b16 %v275
  %v1103 = vunpack.c.l.b16 %v276
  %v1104 = vunpack.c.h.b16 %v276
  %v1105 = vunpack.c.l.b16 %v277
  %v1106 = vunpack.c.h.b16 %v277
  %v1107 = vunpack.c.l.b16 %v278
  %v1108 = vunpack.c.h.b16 %v278
  %v1109 = vunpack.c.l.b16 %v279
  %v1110 = vunpack.c.h.b16 %v279
  %v1111 = vunpack.c.l.b16 %v280
  %v1112 = vunpack.c.h.b16 %v280
  %v1113 = vunpack.c.l.b16 %v281
  %v1114 = vunpack.c.h.b16 %v281
  %v1115 = vunpack.c.l.b16 %v282
  %v1116 = vunpack.c.h.b16 %v282
  %v1117 = vunpack.c.l.b16 %v283
  %v1118 = vunpack.c.h.b16 %v283
  %v1119 = vunpack.c.l.b16 %v284
  %v1120 = vunpack.c.h.b16 %v284
  %v1121 = vunpack.c.l.b16 %v285
  %v1122 = vunpack.c.h.b16 %v285
  %v1123 = vunpack.c.l.b16 %v286
  %v1124 = vunpack.c.h.b16 %v286
  %v1125 = vunpack.c.l.b16 %v287
  %v1126 = vunpack.c.h.b16 %v287
  %v1127 = vunpack.c.l.b16 %v288
  %v1128 = vunpack.c.h.b16 %v288
  %v1129 = vunpack.c.l.b16 %v289
  %v1130 = vunpack.c.h.b16 %v289
  %v1131 = vunpack.c.l.b16 %v290
  %v1132 = vunpack.c.h.b16 %v290
  %v1133 = vunpack.c.l.b16 %v291
  %v1134 = vunpack.c.h.b16 %v291
  %v1135 = vunpack.c.l.b16 %v292
  %v1136 = vunpack.c.h.b16 %v292
  %v1137 = vunpack.c.l.b16 %v293
  %v1138 = vunpack.c.h.b16 %v293
  %v1139 = vunpack.c.l.b16 %v294
  %v1140 = vunpack.c.h.b16 %v294
  %v1141 = vunpack.c.l.b16 %v295
  %v1142 = vunpack.c.h.b16 %v295
  %v1143 = vunpack.c.l.b16 %v296
  %v1144 = vunpack.c.h.b16 %v296
  %v1145 = vunpack.c.l.b16 %v297
  %v1146 = vunpack.c.h.b16 %v297
  %v1147 = vunpack.c.l.b16 %v298
  %v1148 = vunpack.c.h.b16 %v298
  %v1149 = vunpack.c.l.b16 %v299
  %v1150 = vunpack.c.h.b16 %v299
  %v1151 = vunpack.c.l.b16 %v300
  %v1152 = vunpack.c.h.b16 %v300
  %v1153 = vunpack.c.l.b16 %v301
  %v1154 = vunpack.c.h.b16 %v301
  %v1155 = vunpack.c.l.b16 %v302
  %v1156 = vunpack.c.h.b16 %v302
  %v1157 = vunpack.c.l.b16 %v303
  %v1158 = vunpack.c.h.b16 %v303
  %v1159 = vunpack.c.l.b16 %v304
  %v1160 = vunpack.c.h.b16 %v304
  %v1161 = vunpack.c.l.b16 %v305
  %v1162 = vunpack.c.h.b16 %v305
  %v1163 = vunpack.c.l.b16 %v306
  %v1164 = vunpack.c.h.b16 %v306
  %v1165 = vunpack.c.l.b16 %v307
  %v1166 = vunpack.c.h.b16 %v307
  %v1167 = vunpack.c.l.b16 %v308
  %v1168 = vunpack.c.h.b16 %v308
  %v1169 = vunpack.c.l.b16 %v309
  %v1170 = vunpack.c.h.b16 %v309
  %v1171 = vunpack.c.l.b16 %v310
  %v1172 = vunpack.c.h.b16 %v310
  %v1173 = vunpack.c.l.b16 %v311
  %v1174 = vunpack.c.h.b16 %v311
  %v1175 = vunpack.c.l.b16 %v312
  %v1176 = vunpack.c.h.b16 %v312
  %v1177 = vunpack.c.l.b16 %v313
  %v1178 = vunpack.c.h.b16 %v313
  %v1179 = vunpack.c.l.b16 %v314
  %v1180 = vunpack.c.h.b16 %v314
  %v1181 = vunpack.c.l.b16 %v315
  %v1182 = vunpack.c.h.b16 %v315
  %v1183 = vunpack.c.l.b16 %v316
  %v1184 = vunpack.c.h.b16 %v316
  %v1185 = vunpack.c.l.b16 %v317
  %v1186 = vunpack.c.h.b16 %v317
  %v1187 = vunpack.c.l.b16 %v318
  %v1188 = vunpack.c.h.b16 %v318
  %v1189 = vunpack.c.l.b16 %v319
  %v1190 = vunpack.c.h.b16 %v319
  %v1191 = vunpack.c.l.b16 %v320
  %v1192 = vunpack.c.h.b16 %v320
  %v1193 = vunpack.c.l.b16 %v321
  %v1194 = vunpack.c.h.b16 %v321
  %v1195 = vunpack.c.l.b16 %v322
  %v1196 = vunpack.c.h.b16 %v322
  %v1197 = vunpack.c.l.b16 %v323
  %v1198 = vunpack.c.h.b16 %v323
  %v1199 = vunpack.c.l.b16 %v324
  %v1200 = vunpack.c.h.b16 %v324
  %v1201 = vunpack.c.l.b16 %v325
  %v1202 = vunpack.c.h.b16 %v325
  %v1203 = vunpack.c.l.b16 %v326
  %v1204 = vunpack.c.h.b16 %v326
  %v1205 = vunpack.c.l.b16 %v327
  %v1206 = vunpack.c.h.b16 %v327
  %v1207 = vunpack.c.l.b16 %v328
  %v1208 = vunpack.c.h.b16 %v328
  %v1209 = vunpack.c.l.b16 %v329
  %v1210 = vunpack.c.h.b16 %v329
  %v1211 = vunpack.c.l.b16 %v330
  %v1212 = vunpack.c.h.b16 %v330
  %v1213 = vunpack.c.l.b16 %v331
  %v1214 = vunpack.c.h.b16 %v331
  %v1215 = vunpack.c.l.b16 %v332
  %v1216 = vunpack.c.h.b16 %v332
  %v1217 = vunpack.c.l.b16 %v333
  %v1218 = vunpack.c.h.b16 %v333
  %v1219 = vunpack.c.l.b16 %v334
  %v1220 = vunpack.c.h.b16 %v334
  %v1221 = vunpack.c.l.b16 %v335
  %v1222 = vunpack.c.h.b16 %v335
  %v1223 = vunpack.c.l.b16 %v336
  %v1224 = vunpack.c.h.b16 %v336
  %v1225 = vunpack.c.l.b16 %v337
  %v1226 = vunpack.c.h.b16 %v337
  %v1227 = vunpack.c.l.b16 %v338
  %v1228 = vunpack.c.h.b16 %v338
  %v1229 = vunpack.c.l.b16 %v339
  %v1230 = vunpack.c.h.b16 %v339
  %v1231 = vunpack.c.l.b16 %v340
  %v1232 = vunpack.c.h.b16 %v340
  %v1233 = vunpack.c.l.b16 %v341
  %v1234 = vunpack.c.h.b16 %v341
  %v1235 = vunpack.c.l.b16 %v342
  %v1236 = vunpack.c.h.b16 %v342
  %v1237 = vunpack.c.l.b16 %v343
  %v1238 = vunpack.c.h.b16 %v343
  %v1239 = vunpack.c.l.b16 %v344
  %v1240 = vunpack.c.h.b16 %v344
  %v1241 = vunpack.c.l.b16 %v345
  %v1242 = vunpack.c.h.b16 %v345
  %v1243 = vunpack.c.l.b16 %v346
  %v1244 = vunpack.c.h.b16 %v346
  %v1245 = vunpack.c.l.b16 %v347
  %v1246 = vunpack.c.h.b16 %v347
  %v1247 = vunpack.c.l.b16 %v348
  %v1248 = vunpack.c.h.b16 %v348
  %v1249 = vunpack.c.l.b16 %v349
  %v1250 = vunpack.c.h.b16 %v349
  %v1251 = vunpack.c.l.b16 %v350
  %v1252 = vunpack.c.h.b16 %v350
  %v1253 = vunpack.c.l.b16 %v351
  %v1254 = vunpack.c.h.b16 %v351
  %v1255 = vunpack.c.l.b16 %v352
  %v1256 = vunpack.c.h.b16 %v352
  %v1257 = vunpack.c.l.b16 %v353
  %v1258 = vunpack.c.h.b16 %v353
  %v1259 = vunpack.c.l.b16 %v354
  %v1260 = vunpack.c.h.b16 %v354
  %v1261 = vunpack.c.l.b16 %v355
  %v1262 = vunpack.c.h.b16 %v355
  %v1263 = vunpack.c.l.b16 %v356
  %v1264 = vunpack.c.h.b16 %v356
  %v1265 = vunpack.c.l.b16 %v357
  %v1266 = vunpack.c.h.b16 %v357
  %v1267 = vunpack.c.l.b16 %v358
  %v1268 = vunpack.c.h.b16 %v358
  %v1269 = vunpack.c.l.b16 %v359
  %v1270 = vunpack.c.h.b16 %v359
  %v1271 = vunpack.c.l.b16 %v360
  %v1272 = vunpack.c.h.b16 %v360
  %v1273 = vunpack.c.l.b16 %v361
  %v1274 = vunpack.c.h.b16 %v361
  %v1275 = vunpack.c.l.b16 %v362
  %v1276 = vunpack.c.h.b16 %v362
  %v1277 = vunpack.c.l.b16 %v363
  %v1278 = vunpack.c.h.b16 %v363
  %v1279 = vunpack.c.l.b16 %v364
  %v1280 = vunpack.c.h.b16 %v364
  %v1281 = vunpack.c.l.b16 %v365
  %v1282 = vunpack.c.h.b16 %v365
  %v1283 = vunpack.c.l.b16 %v366
  %v1284 = vunpack.c.h.b16 %v366
  %v1285 = vunpack.c.l.b16 %v367
  %v1286 = vunpack.c.h.b16 %v367
  %v1287 = vunpack.c.l.b16 %v368
  %v1288 = vunpack.c.h.b16 %v368
  %v1289 = vunpack.c.l.b16 %v369
  %v1290 = vunpack.c.h.b16 %v369
  %v1291 = vunpack.c.l.b16 %v370
  %v1292 = vunpack.c.h.b16 %v370
  %v1293 = vunpack.c.l.b16 %v371
  %v1294 = vunpack.c.h.b16 %v371
  %v1295 = vunpack.c.l.b16 %v372
  %v1296 = vunpack.c.h.b16 %v372
  %v1297 = vunpack.c.l.b16 %v373
  %v1298 = vunpack.c.h.b16 %v373
  %v1299 = vunpack.c.l.b16 %v374
  %v1300 = vunpack.c.h.b16 %v374
  %v1301 = vunpack.c.l.b16 %v375
  %v1302 = vunpack.c.h.b16 %v375
  %v1303 = vunpack.c.l.b16 %v376
  %v1304 = vunpack.c.h.b16 %v376
  %v1305 = vunpack.c.l.b16 %v377
  %v1306 = vunpack.c.h.b16 %v377
  %v1307 = vunpack.c.l.b16 %v378
  %v1308 = vunpack.c.h.b16 %v378
  %v1309 = vunpack.c.l.b16 %v379
  %v1310 = vunpack.c.h.b16 %v379
  %v1311 = vunpack.c.l.b16 %v380
  %v1312 = vunpack.c.h.b16 %v380
  %v1313 = vunpack.c.l.b16 %v381
  %v1314 = vunpack.c.h.b16 %v381
  %v1315 = vunpack.c.l.b16 %v382
  %v1316 = vunpack.c.h.b16 %v382
  %v1317 = vunpack.c.l.b16 %v383
  %v1318 = vunpack.c.h.b16 %v383
  %v1319 = vunpack.c.l.b16 %v384
  %v1320 = vunpack.c.h.b16 %v384
  %v1321 = vunpack.c.l.b16 %v385
  %v1322 = vunpack.c.h.b16 %v385
  %v1323 = vunpack.c.l.b16 %v386
  %v1324 = vunpack.c.h.b16 %v386
  %v1325 = vunpack.c.l.b16 %v387
  %v1326 = vunpack.c.h.b16 %v387
  %v1327 = vunpack.c.l.b16 %v388
  %v1328 = vunpack.c.h.b16 %v388
  %v1329 = vunpack.c.l.b16 %v389
  %v1330 = vunpack.c.h.b16 %v389
  %v1331 = vunpack.c.l.b16 %v390
  %v1332 = vunpack.c.h.b16 %v390
  %v1333 = vunpack.c.l.b16 %v391
  %v1334 = vunpack.c.h.b16 %v391
  %v1335 = vunpack.c.l.b16 %v392
  %v1336 = vunpack.c.h.b16 %v392
  %v1337 = vunpack.c.l.b16 %v393
  %v1338 = vunpack.c.h.b16 %v393
  %v1339 = vunpack.c.l.b16 %v394
  %v1340 = vunpack.c.h.b16 %v394
  %v1341 = vunpack.c.l.b16 %v395
  %v1342 = vunpack.c.h.b16 %v395
  %v1343 = vunpack.c.l.b16 %v396
  %v1344 = vunpack.c.h.b16 %v396
  %v1345 = vunpack.c.l.b16 %v397
  %v1346 = vunpack.c.h.b16 %v397
  %v1347 = vunpack.c.l.b16 %v398
  %v1348 = vunpack.c.h.b16 %v398
  %v1349 = vunpack.c.l.b16 %v399
  %v1350 = vunpack.c.h.b16 %v399
  %v1351 = vunpack.c.l.b16 %v400
  %v1352 = vunpack.c.h.b16 %v400
  %v1353 = vunpack.c.l.b16 %v401
  %v1354 = vunpack.c.h.b16 %v401
  %v1355 = vunpack.c.l.b16 %v402
  %v1356 = vunpack.c.h.b16 %v402
  %v1357 = vunpack.c.l.b16 %v403
  %v1358 = vunpack.c.h.b16 %v403
  %v1359 = vunpack.c.l.b16 %v404
  %v1360 = vunpack.c.h.b16 %v404
  %v1361 = vunpack.c.l.b16 %v405
  %v1362 = vunpack.c.h.b16 %v405
  %v1363 = vunpack.c.l.b16 %v406
  %v1364 = vunpack.c.h.b16 %v406
  %v1365 = vunpack.c.l.b16 %v407
  %v1366 = vunpack.c.h.b16 %v407
  %v1367 = vunpack.c.l.b16 %v408
  %v1368 = vunpack.c.h.b16 %v408
  %v1369 = vunpack.c.l.b16 %v409
  %v1370 = vunpack.c.h.b16 %v409
  %v1371 = vunpack.c.l.b16 %v410
  %v1372 = vunpack.c.h.b16 %v410
  %v1373 = vunpack.c.l.b16 %v411
  %v1374 = vunpack.c.h.b16 %v411
  %v1375 = vunpack.c.l.b16 %v412
  %v1376 = vunpack.c.h.b16 %v412
  %v1377 = vunpack.c.l.b16 %v413
  %v1378 = vunpack.c.h.b16 %v413
  %v1379 = vunpack.c.l.b16 %v414
  %v1380 = vunpack.c.h.b16 %v414
  %v1381 = vunpack.c.l.b16 %v415
  %v1382 = vunpack.c.h.b16 %v415
  %v1383 = vunpack.c.l.b16 %v416
  %v1384 = vunpack.c.h.b16 %v416
  %v1385 = vunpack.c.l.b16 %v417
  %v1386 = vunpack.c.h.b16 %v417
  %v1387 = vunpack.c.l.b16 %v418
  %v1388 = vunpack.c.h.b16 %v418
  %v1389 = vunpack.c.l.b16 %v419
  %v1390 = vunpack.c.h.b16 %v419
  %v1391 = vunpack.c.l.b16 %v420
  %v1392 = vunpack.c.h.b16 %v420
  %v1393 = vunpack.c.l.b16 %v421
  %v1394 = vunpack.c.h.b16 %v421
  %v1395 = vunpack.c.l.b16 %v422
  %v1396 = vunpack.c.h.b16 %v422
  %v1397 = vunpack.c.l.b16 %v423
  %v1398 = vunpack.c.h.b16 %v423
  %v1399 = vunpack.c.l.b16 %v424
  %v1400 = vunpack.c.h.b16 %v424
  %v1401 = vunpack.c.l.b16 %v425
  %v1402 = vunpack.c.h.b16 %v425
  %v1403 = vunpack.c.l.b16 %v426
  %v1404 = vunpack.c.h.b16 %v426
  %v1405 = vpack.c.b16 %v759, %v757
  %v1406 = vpack.c.b16 %v760, %v758
  %v1407 = vpack.c.b16 %v763, %v761
  %v1408 = vpack.c.b16 %v764, %v762
  %v1409 = vpack.c.b16 %v767, %v765
  %v1410 = vpack.c.b16 %v768, %v766
  %v1411 = vpack.c.b16 %v771, %v769
  %v1412 = vpack.c.b16 %v772, %v770
  %v1413 = vpack.c.b16 %v775, %v773
  %v1414 = vpack.c.b16 %v776, %v774
  %v1415 = vpack.c.b16 %v779, %v777
  %v1416 = vpack.c.b16 %v780, %v778
  %v1417 = vpack.c.b16 %v783, %v781
  %v1418 = vpack.c.b16 %v784, %v782
  %v1419 = vpack.c.b16 %v787, %v785
  %v1420 = vpack.c.b16 %v788, %v786
  %v1421 = vpack.c.b16 %v791, %v789
  %v1422 = vpack.c.b16 %v792, %v790
  %v1423 = vpack.c.b16 %v795, %v793
  %v1424 = vpack.c.b16 %v796, %v794
  %v1425 = vpack.c.b16 %v799, %v797
  %v1426 = vpack.c.b16 %v800, %v798
  %v1427 = vpack.c.b16 %v803, %v801
  %v1428 = vpack.c.b16 %v804, %v802
  %v1429 = vpack.c.b16 %v807, %v805
  %v1430 = vpack.c.b16 %v808, %v806
  %v1431 = vpack.c.b16 %v811, %v809
  %v1432 = vpack.c.b16 %v812, %v810
  %v1433 = vpack.c.b16 %v815, %v813
  %v1434 = vpack.c.b16 %v816, %v814
  %v1435 = vpack.c.b16 %v819, %v817
  %v1436 = vpack.c.b16 %v820, %v818
  %v1437 = vpack.c.b16 %v823, %v821
  %v1438 = vpack.c.b16 %v824, %v822
  %v1439 = vpack.c.b16 %v827, %v825
  %v1440 = vpack.c.b16 %v828, %v826
  %v1441 = vpack.c.b16 %v831, %v829
  %v1442 = vpack.c.b16 %v832, %v830
  %v1443 = vpack.c.b16 %v835, %v833
  %v1444 = vpack.c.b16 %v836, %v834
  %v1445 = vpack.c.b16 %v839, %v837
  %v1446 = vpack.c.b16 %v840, %v838
  %v1447 = vpack.c.b16 %v843, %v841
  %v1448 = vpack.c.b16 %v844, %v842
  %v1449 = vpack.c.b16 %v847, %v845
  %v1450 = vpack.c.b16 %v848, %v846
  %v1451 = vpack.c.b16 %v851, %v849
  %v1452 = vpack.c.b16 %v852, %v850
  %v1453 = vpack.c.b16 %v855, %v853
  %v1454 = vpack.c.b16 %v856, %v854
  %v1455 = vpack.c.b16 %v859, %v857
  %v1456 = vpack.c.b16 %v860, %v858
  %v1457 = vpack.c.b16 %v863, %v861
  %v1458 = vpack.c.b16 %v864, %v862
  %v1459 = vpack.c.b16 %v867, %v865
  %v1460 = vpack.c.b16 %v868, %v866
  %v1461 = vpack.c.b16 %v871, %v869
  %v1462 = vpack.c.b16 %v872, %v870
  %v1463 = vpack.c.b16 %v875, %v873
  %v1464 = vpack.c.b16 %v876, %v874
  %v1465 = vpack.c.b16 %v879, %v877
  %v1466 = vpack.c.b16 %v880, %v878
  %v1467 = vpack.c.b16 %v883, %v881
  %v1468 = vpack.c.b16 %v884, %v882
  %v1469 = vpack.c.b16 %v887, %v885
  %v1470 = vpack.c.b16 %v888, %v886
  %v1471 = vpack.c.b16 %v891, %v889
  %v1472 = vpack.c.b16 %v892, %v890
  %v1473 = vpack.c.b16 %v895, %v893
  %v1474 = vpack.c.b16 %v896, %v894
  %v1475 = vpack.c.b16 %v899, %v897
  %v1476 = vpack.c.b16 %v900, %v898
  %v1477 = vpack.c.b16 %v903, %v901
  %v1478 = vpack.c.b16 %v904, %v902
  %v1479 = vpack.c.b16 %v907, %v905
  %v1480 = vpack.c.b16 %v908, %v906
  %v1481 = vpack.c.b16 %v911, %v909
  %v1482 = vpack.c.b16 %v912, %v910
  %v1483 = vpack.c.b16 %v915, %v913
  %v1484 = vpack.c.b16 %v916, %v914
  %v1485 = vpack.c.b16 %v919, %v917
  %v1486 = vpack.c.b16 %v920, %v918
  %v1487 = vpack.c.b16 %v923, %v921
  %v1488 = vpack.c.b16 %v924, %v922
  %v1489 = vpack.c.b16 %v927, %v925
  %v1490 = vpack.c.b16 %v928, %v926
  %v1491 = vpack.c.b16 %v931, %v929
  %v1492 = vpack.c.b16 %v932, %v930
  %v1493 = vpack.c.b16 %v935, %v933
  %v1494 = vpack.c.b16 %v936, %v934
  %v1495 = vpack.c.b16 %v939, %v937
  %v1496 = vpack.c.b16 %v940, %v938
  %v1497 = vpack.c.b16 %v943, %v941
  %v1498 = vpack.c.b16 %v944, %v942
  %v1499 = vpack.c.b16 %v947, %v945
  %v1500 = vpack.c.b16 %v948, %v946
  %v1501 = vpack.c.b16 %v951, %v949
  %v1502 = vpack.c.b16 %v952, %v950
  %v1503 = vpack.c.b16 %v955, %v953
  %v1504 = vpack.c.b16 %v956, %v954
  %v1505 = vpack.c.b16 %v959, %v957
  %v1506 = vpack.c.b16 %v960, %v958
  %v1507 = vpack.c.b16 %v963, %v961
  %v1508 = vpack.c.b16 %v964, %v962
  %v1509 = vpack.c.b16 %v967, %v965
  %v1510 = vpack.c.b16 %v968, %v966
  %v1511 = vpack.c.b16 %v971, %v969
  %v1512 = vpack.c.b16 %v972, %v970
  %v1513 = vpack.c.b16 %v975, %v973
  %v1514 = vpack.c.b16 %v976, %v974
  %v1515 = vpack.c.b16 %v979, %v977
  %v1516 = vpack.c.b16 %v980, %v978
  %v1517 = vpack.c.b16 %v983, %v981
  %v1518 = vpack.c.b16 %v984, %v982
  %v1519 = vpack.c.b16 %v987, %v985
  %v1520 = vpack.c.b16 %v988, %v986
  %v1521 = vpack.c.b16 %v991, %v989
  %v1522 = vpack.c.b16 %v992, %v990
  %v1523 = vpack.c.b16 %v995, %v993
  %v1524 = vpack.c.b16 %v996, %v994
  %v1525 = vpack.c.b16 %v999, %v997
  %v1526 = vpack.c.b16 %v1000, %v998
  %v1527 = vpack.c.b16 %v1003, %v1001
  %v1528 = vpack.c.b16 %v1004, %v1002
  %v1529 = vpack.c.b16 %v1007, %v1005
  %v1530 = vpack.c.b16 %v1008, %v1006
  %v1531 = vpack.c.b16 %v1011, %v1009
  %v1532 = vpack.c.b16 %v1012, %v1010
  %v1533 = vpack.c.b16 %v1015, %v1013
  %v1534 = vpack.c.b16 %v1016, %v1014
  %v1535 = vpack.c.b16 %v1019, %v1017
  %v1536 = vpack.c.b16 %v1020, %v1018
  %v1537 = vpack.c.b16 %v1023, %v1021
  %v1538 = vpack.c.b16 %v1024, %v1022
  %v1539 = vpack.c.b16 %v1027, %v1025
  %v1540 = vpack.c.b16 %v1028, %v1026
  %v1541 = vpack.c.b16 %v1031, %v1029
  %v1542 = vpack.c.b16 %v1032, %v1030
  %v1543 = vpack.c.b16 %v1035, %v1033
  %v1544 = vpack.c.b16 %v1036, %v1034
  %v1545 = vpack.c.b16 %v1039, %v1037
  %v1546 = vpack.c.b16 %v1040, %v1038
  %v1547 = vpack.c.b16 %v1043, %v1041
  %v1548 = vpack.c.b16 %v1044, %v1042
  %v1549 = vpack.c.b16 %v1047, %v1045
  %v1550 = vpack.c.b16 %v1048, %v1046
  %v1551 = vpack.c.b16 %v1051, %v1049
  %v1552 = vpack.c.b16 %v1052, %v1050
  %v1553 = vpack.c.b16 %v1055, %v1053
  %v1554 = vpack.c.b16 %v1056, %v1054
  %v1555 = vpack.c.b16 %v1059, %v1057
  %v1556 = vpack.c.b16 %v1060, %v1058
  %v1557 = vpack.c.b16 %v1063, %v1061
  %v1558 = vpack.c.b16 %v1064, %v1062
  %v1559 = vpack.c.b16 %v1067, %v1065
  %v1560 = vpack.c.b16 %v1068, %v1066
  %v1561 = vpack.c.b16 %v1071, %v1069
  %v1562 = vpack.c.b16 %v1072, %v1070
  %v1563 = vpack.c.b16 %v1075, %v1073
  %v1564 = vpack.c.b16 %v1076, %v1074
  %v1565 = vpack.c.b16 %v1079, %v1077
  %v1566 = vpack.c.b16 %v1080, %v1078
  %v1567 = vpack.c.b16 %v1083, %v1081
  %v1568 = vpack.c.b16 %v1084, %v1082
  %v1569 = vpack.c.b16 %v1087, %v1085
  %v1570 = vpack.c.b16 %v1088, %v1086
  %v1571 = vpack.c.b16 %v1091, %v1089
  %v1572 = vpack.c.b16 %v1092, %v1090
  %v1573 = vpack.c.b16 %v1095, %v1093
  %v1574 = vpack.c.b16 %v1096, %v1094
  %v1575 = vpack.c.b16 %v1099, %v1097
  %v1576 = vpack.c.b16 %v1100, %v1098
  %v1577 = vpack.c.b16 %v1103, %v1101
  %v1578 = vpack.c.b16 %v1104, %v1102
  %v1579 = vpack.c.b16 %v1107, %v1105
  %v1580 = vpack.c.b16 %v1108, %v1106
  %v1581 = vpack.c.b16 %v1111, %v1109
  %v1582 = vpack.c.b16 %v1112, %v1110
  %v1583 = vpack.c.b16 %v1115, %v1113
  %v1584 = vpack.c.b16 %v1116, %v1114
  %v1585 = vpack.c.b16 %v1119, %v1117
  %v1586 = vpack.c.b16 %v1120, %v1118
  %v1587 = vpack.c.b16 %v1123, %v1121
  %v1588 = vpack.c.b16 %v1124, %v1122
  %v1589 = vpack.c.b16 %v1127, %v1125
  %v1590 = vpack.c.b16 %v1128, %v1126
  %v1591 = vpack.c.b16 %v1131, %v1129
  %v1592 = vpack.c.b16 %v1132, %v1130
  %v1593 = vpack.c.b16 %v1135, %v1133
  %v1594 = vpack.c.b16 %v1136, %v1134
  %v1595 = vpack.c.b16 %v1139, %v1137
  %v1596 = vpack.c.b16 %v1140, %v1138
  %v1597 = vpack.c.b16 %v1143, %v1141
  %v1598 = vpack.c.b16 %v1144, %v1142
  %v1599 = vpack.c.b16 %v1147, %v1145
  %v1600 = vpack.c.b16 %v1148, %v1146
  %v1601 = vpack.c.b16 %v1151, %v1149
  %v1602 = vpack.c.b16 %v1152, %v1150
  %v1603 = vpack.c.b16 %v1155, %v1153
  %v1604 = vpack.c.b16 %v1156, %v1154
  %v1605 = vpack.c.b16 %v1159, %v1157
  %v1606 = vpack.c.b16 %v1160, %v1158
  %v1607 = vpack.c.b16 %v1163, %v1161
  %v1608 = vpack.c.b16 %v1164, %v1162
  %v1609 = vpack.c.b16 %v1167, %v1165
  %v1610 = vpack.c.b16 %v1168, %v1166
  %v1611 = vpack.c.b16 %v1171, %v1169
  %v1612 = vpack.c.b16 %v1172, %v1170
  %v1613 = vpack.c.b16 %v1175, %v1173
  %v1614 = vpack.c.b16 %v1176, %v1174
  %v1615 = vpack.c.b16 %v1179, %v1177
  %v1616 = vpack.c.b16 %v1180, %v1178
  %v1617 = vpack.c.b16 %v1183, %v1181
  %v1618 = vpack.c.b16 %v1184, %v1182
  %v1619 = vpack.c.b16 %v1187, %v1185
  %v1620 = vpack.c.b16 %v1188, %v1186
  %v1621 = vpack.c.b16 %v1191, %v1189
  %v1622 = vpack.c.b16 %v1192, %v1190
  %v1623 = vpack.c.b16 %v1195, %v1193
  %v1624 = vpack.c.b16 %v1196, %v1194
  %v1625 = vpack.c.b16 %v1199, %v1197
  %v1626 = vpack.c.b16 %v1200, %v1198
  %v1627 = vpack.c.b16 %v1203, %v1201
  %v1628 = vpack.c.b16 %v1204, %v1202
  %v1629 = vpack.c.b16 %v1207, %v1205
  %v1630 = vpack.c.b16 %v1208, %v1206
  %v1631 = vpack.c.b16 %v1211, %v1209
  %v1632 = vpack.c.b16 %v1212, %v1210
  %v1633 = vpack.c.b16 %v1215, %v1213
  %v1634 = vpack.c.b16 %v1216, %v1214
  %v1635 = vpack.c.b16 %v1219, %v1217
  %v1636 = vpack.c.b16 %v1220, %v1218
  %v1637 = vpack.c.b16 %v1223, %v1221
  %v1638 = vpack.c.b16 %v1224, %v1222
  %v1639 = vpack.c.b16 %v1227, %v1225
  %v1640 = vpack.c.b16 %v1228, %v1226
  %v1641 = vpack.c.b16 %v1231, %v1229
  %v1642 = vpack.c.b16 %v1232, %v1230
  %v1643 = vpack.c.b16 %v1235, %v1233
  %v1644 = vpack.c.b16 %v1236, %v1234
  %v1645 = vpack.c.b16 %v1239, %v1237
  %v1646 = vpack.c.b16 %v1240, %v1238
  %v1647 = vpack.c.b16 %v1243, %v1241
  %v1648 = vpack.c.b16 %v1244, %v1242
  %v1649 = vpack.c.b16 %v1247, %v1245
  %v1650 = vpack.c.b16 %v1248, %v1246
  %v1651 = vpack.c.b16 %v1251, %v1249
  %v1652 = vpack.c.b16 %v1252, %v1250
  %v1653 = vpack.c.b16 %v1255, %v1253
  %v1654 = vpack.c.b16 %v1256, %v1254
  %v1655 = vpack.c.b16 %v1259, %v1257
  %v1656 = vpack.c.b16 %v1260, %v1258
  %v1657 = vpack.c.b16 %v1263, %v1261
  %v1658 = vpack.c.b16 %v1264, %v1262
  %v1659 = vpack.c.b16 %v1267, %v1265
  %v1660 = vpack.c.b16 %v1268, %v1266
  %v1661 = vpack.c.b16 %v1271, %v1269
  %v1662 = vpack.c.b16 %v1272, %v1270
  %v1663 = vpack.c.b16 %v1275, %v1273
  %v1664 = vpack.c.b16 %v1276, %v1274
  %v1665 = vpack.c.b16 %v1279, %v1277
  %v1666 = vpack.c.b16 %v1280, %v1278
  %v1667 = vpack.c.b16 %v1283, %v1281
  %v1668 = vpack.c.b16 %v1284, %v1282
  %v1669 = vpack.c.b16 %v1287, %v1285
  %v1670 = vpack.c.b16 %v1288, %v1286
  %v1671 = vpack.c.b16 %v1291, %v1289
  %v1672 = vpack.c.b16 %v1292, %v1290
  %v1673 = vpack.c.b16 %v1295, %v1293
  %v1674 = vpack.c.b16 %v1296, %v1294
  %v1675 = vpack.c.b16 %v1299, %v1297
  %v1676 = vpack.c.b16 %v1300, %v1298
  %v1677 = vpack.c.b16 %v1303, %v1301
  %v1678 = vpack.c.b16 %v1304, %v1302
  %v1679 = vpack.c.b16 %v1307, %v1305
  %v1680 = vpack.c.b16 %v1308, %v1306
  %v1681 = vpack.c.b16 %v1311, %v1309
  %v1682 = vpack.c.b16 %v1312, %v1310
  %v1683 = vpack.c.b16 %v1315, %v1313
  %v1684 = vpack.c.b16 %v1316, %v1314
  %v1685 = vpack.c.b16 %v1319, %v1317
  %v1686 = vpack.c.b16 %v1320, %v1318
  %v1687 = vpack.c.b16 %v1323, %v1321
  %v1688 = vpack.c.b16 %v1324, %v1322
  %v1689 = vpack.c.b16 %v1327, %v1325
  %v1690 = vpack.c.b16 %v1328, %v1326
  %v1691 = vpack.c.b16 %v1331, %v1329
  %v1692 = vpack.c.b16 %v1332, %v1330
  %v1693 = vpack.c.b16 %v1335, %v1333
  %v1694 = vpack.c.b16 %v1336, %v1334
  %v1695 = vpack.c.b16 %v1339, %v1337
  %v1696 = vpack.c.b16 %v1340, %v1338
  %v1697 = vpack.c.b16 %v1343, %v1341
  %v1698 = vpack.c.b16 %v1344, %v1342
  %v1699 = vpack.c.b16 %v1347, %v1345
  %v1700 = vpack.c.b16 %v1348, %v1346
  %v1701 = vpack.c.b16 %v1351, %v1349
  %v1702 = vpack.c.b16 %v1352, %v1350
  %v1703 = vpack.c.b16 %v1355, %v1353
  %v1704 = vpack.c.b16 %v1356, %v1354
  %v1705 = vpack.c.b16 %v1359, %v1357
  %v1706 = vpack.c.b16 %v1360, %v1358
  %v1707 = vpack.c.b16 %v1363, %v1361
  %v1708 = vpack.c.b16 %v1364, %v1362
  %v1709 = vpack.c.b16 %v1367, %v1365
  %v1710 = vpack.c.b16 %v1368, %v1366
  %v1711 = vpack.c.b16 %v1371, %v1369
  %v1712 = vpack.c.b16 %v1372, %v1370
  %v1713 = vpack.c.b16 %v1375, %v1373
  %v1714 = vpack.c.b16 %v1376, %v1374
  %v1715 = vpack.c.b16 %v1379, %v1377
  %v1716 = vpack.c.b16 %v1380, %v1378
  %v1717 = vpack.c.b16 %v1383, %v1381
  %v1718 = vpack.c.b16 %v1384, %v1382
  %v1719 = vpack.c.b16 %v1387, %v1385
  %v1720 = vpack.c.b16 %v1388, %v1386
  %v1721 = vpack.c.b16 %v1391, %v1389
  %v1722 = vpack.c.b16 %v1392, %v1390
  %v1723 = vpack.c.b16 %v1395, %v1393
  %v1724 = vpack.c.b16 %v1396, %v1394
  %v1725 = vpack.c.b16 %v1399, %v1397
  %v1726 = vpack.c.b16 %v1400, %v1398
  %v1727 = vpack.c.b16 %v1403, %v1401
  %v1728 = vpack.c.b16 %v1404, %v1402
  %vm2053 = vcmask 261120
  %v2055 = vsel %vm2053, %v102, 0
  %2057 = vmatpush.bf16.msra.mxu0 %v1419
  %2058 = vmatpush.bf16.msra.mxu0 %v1417
  %2059 = vmatpush.bf16.msra.mxu0 %v1415
  %2060 = vmatpush.bf16.msra.mxu0 %v1413
  %2061 = vmatpush.bf16.msra.mxu0 %v1411
  %2062 = vmatpush.bf16.msra.mxu0 %v1409
  %2063 = vmatpush.bf16.msra.mxu0 %v1407
  %2064 = vmatpush.bf16.msra.mxu0 %v1405
  %2065 = vmatmul.bf16.gmra.mxu0 %v82
  %v2066 = vpop.f32.mrf.mxu0
  %v2067 = vadd.f32 %v429, %v2066
  %v2068 = vpop.f32.mrf.mxu0
  %2069 = vdwg.mxu0
  %2070 = vmatpush.bf16.msra.mxu0 %v1435
  %2071 = vmatpush.bf16.msra.mxu0 %v1433
  %2072 = vmatpush.bf16.msra.mxu0 %v1431
  %2073 = vmatpush.bf16.msra.mxu0 %v1429
  %2074 = vmatpush.bf16.msra.mxu0 %v1427
  %2075 = vmatpush.bf16.msra.mxu0 %v1425
  %2076 = vmatpush.bf16.msra.mxu0 %v1423
  %2077 = vmatpush.bf16.msra.mxu0 %v1421
  %2078 = vmatmul.bf16.gmra.mxu0 %v83
  %v2079 = vpop.f32.mrf.mxu0
  %v2080 = vadd.f32 %v2067, %v2079
  %v2081 = vpop.f32.mrf.mxu0
  %2082 = vdwg.mxu0
  %2083 = vmatpush.bf16.msra.mxu0 %v1451
  %2084 = vmatpush.bf16.msra.mxu0 %v1449
  %2085 = vmatpush.bf16.msra.mxu0 %v1447
  %2086 = vmatpush.bf16.msra.mxu0 %v1445
  %2087 = vmatpush.bf16.msra.mxu0 %v1443
  %2088 = vmatpush.bf16.msra.mxu0 %v1441
  %2089 = vmatpush.bf16.msra.mxu0 %v1439
  %2090 = vmatpush.bf16.msra.mxu0 %v1437
  %2091 = vmatmul.bf16.gmra.mxu0 %v84
  %v2092 = vpop.f32.mrf.mxu0
  %v2093 = vadd.f32 %v2080, %v2092
  %v2094 = vpop.f32.mrf.mxu0
  %2095 = vdwg.mxu0
  %2096 = vmatpush.bf16.msra.mxu0 %v1467
  %2097 = vmatpush.bf16.msra.mxu0 %v1465
  %2098 = vmatpush.bf16.msra.mxu0 %v1463
  %2099 = vmatpush.bf16.msra.mxu0 %v1461
  %2100 = vmatpush.bf16.msra.mxu0 %v1459
  %2101 = vmatpush.bf16.msra.mxu0 %v1457
  %2102 = vmatpush.bf16.msra.mxu0 %v1455
  %2103 = vmatpush.bf16.msra.mxu0 %v1453
  %2104 = vmatmul.bf16.gmra.mxu0 %v85
  %v2105 = vpop.f32.mrf.mxu0
  %v2106 = vadd.f32 %v2093, %v2105
  %v2107 = vpop.f32.mrf.mxu0
  %2108 = vdwg.mxu0
  %2109 = vmatpush.bf16.msra.mxu0 %v1483
  %2110 = vmatpush.bf16.msra.mxu0 %v1481
  %2111 = vmatpush.bf16.msra.mxu0 %v1479
  %2112 = vmatpush.bf16.msra.mxu0 %v1477
  %2113 = vmatpush.bf16.msra.mxu0 %v1475
  %2114 = vmatpush.bf16.msra.mxu0 %v1473
  %2115 = vmatpush.bf16.msra.mxu0 %v1471
  %2116 = vmatpush.bf16.msra.mxu0 %v1469
  %2117 = vmatmul.bf16.gmra.mxu0 %v86
  %v2118 = vpop.f32.mrf.mxu0
  %v2119 = vadd.f32 %v2106, %v2118
  %v2120 = vpop.f32.mrf.mxu0
  %2121 = vdwg.mxu0
  %2122 = vmatpush.bf16.msra.mxu0 %v1499
  %2123 = vmatpush.bf16.msra.mxu0 %v1497
  %2124 = vmatpush.bf16.msra.mxu0 %v1495
  %2125 = vmatpush.bf16.msra.mxu0 %v1493
  %2126 = vmatpush.bf16.msra.mxu0 %v1491
  %2127 = vmatpush.bf16.msra.mxu0 %v1489
  %2128 = vmatpush.bf16.msra.mxu0 %v1487
  %2129 = vmatpush.bf16.msra.mxu0 %v1485
  %2130 = vmatmul.bf16.gmra.mxu0 %v87
  %v2131 = vpop.f32.mrf.mxu0
  %v2132 = vadd.f32 %v2119, %v2131
  %v2133 = vpop.f32.mrf.mxu0
  %2134 = vdwg.mxu0
  %2135 = vmatpush.bf16.msra.mxu0 %v1515
  %2136 = vmatpush.bf16.msra.mxu0 %v1513
  %2137 = vmatpush.bf16.msra.mxu0 %v1511
  %2138 = vmatpush.bf16.msra.mxu0 %v1509
  %2139 = vmatpush.bf16.msra.mxu0 %v1507
  %2140 = vmatpush.bf16.msra.mxu0 %v1505
  %2141 = vmatpush.bf16.msra.mxu0 %v1503
  %2142 = vmatpush.bf16.msra.mxu0 %v1501
  %2143 = vmatmul.bf16.gmra.mxu0 %v88
  %v2144 = vpop.f32.mrf.mxu0
  %v2145 = vadd.f32 %v2132, %v2144
  %v2146 = vpop.f32.mrf.mxu0
  %2147 = vdwg.mxu0
  %2148 = vmatpush.bf16.msra.mxu0 %v1531
  %2149 = vmatpush.bf16.msra.mxu0 %v1529
  %2150 = vmatpush.bf16.msra.mxu0 %v1527
  %2151 = vmatpush.bf16.msra.mxu0 %v1525
  %2152 = vmatpush.bf16.msra.mxu0 %v1523
  %2153 = vmatpush.bf16.msra.mxu0 %v1521
  %2154 = vmatpush.bf16.msra.mxu0 %v1519
  %2155 = vmatpush.bf16.msra.mxu0 %v1517
  %2156 = vmatmul.bf16.gmra.mxu0 %v89
  %v2157 = vpop.f32.mrf.mxu0
  %v2158 = vadd.f32 %v2145, %v2157
  %v2159 = vpop.f32.mrf.mxu0
  %2160 = vdwg.mxu0
  %2161 = vmatpush.bf16.msra.mxu0 %v1547
  %2162 = vmatpush.bf16.msra.mxu0 %v1545
  %2163 = vmatpush.bf16.msra.mxu0 %v1543
  %2164 = vmatpush.bf16.msra.mxu0 %v1541
  %2165 = vmatpush.bf16.msra.mxu0 %v1539
  %2166 = vmatpush.bf16.msra.mxu0 %v1537
  %2167 = vmatpush.bf16.msra.mxu0 %v1535
  %2168 = vmatpush.bf16.msra.mxu0 %v1533
  %2169 = vmatmul.bf16.gmra.mxu0 %v90
  %v2170 = vpop.f32.mrf.mxu0
  %v2171 = vadd.f32 %v2158, %v2170
  %v2172 = vpop.f32.mrf.mxu0
  %2173 = vdwg.mxu0
  %2174 = vmatpush.bf16.msra.mxu0 %v1563
  %2175 = vmatpush.bf16.msra.mxu0 %v1561
  %2176 = vmatpush.bf16.msra.mxu0 %v1559
  %2177 = vmatpush.bf16.msra.mxu0 %v1557
  %2178 = vmatpush.bf16.msra.mxu0 %v1555
  %2179 = vmatpush.bf16.msra.mxu0 %v1553
  %2180 = vmatpush.bf16.msra.mxu0 %v1551
  %2181 = vmatpush.bf16.msra.mxu0 %v1549
  %2182 = vmatmul.bf16.gmra.mxu0 %v91
  %v2183 = vpop.f32.mrf.mxu0
  %v2184 = vadd.f32 %v2171, %v2183
  %v2185 = vpop.f32.mrf.mxu0
  %2186 = vdwg.mxu0
  %2187 = vmatpush.bf16.msra.mxu0 %v1579
  %2188 = vmatpush.bf16.msra.mxu0 %v1577
  %2189 = vmatpush.bf16.msra.mxu0 %v1575
  %2190 = vmatpush.bf16.msra.mxu0 %v1573
  %2191 = vmatpush.bf16.msra.mxu0 %v1571
  %2192 = vmatpush.bf16.msra.mxu0 %v1569
  %2193 = vmatpush.bf16.msra.mxu0 %v1567
  %2194 = vmatpush.bf16.msra.mxu0 %v1565
  %2195 = vmatmul.bf16.gmra.mxu0 %v92
  %v2196 = vpop.f32.mrf.mxu0
  %v2197 = vadd.f32 %v2184, %v2196
  %v2198 = vpop.f32.mrf.mxu0
  %2199 = vdwg.mxu0
  %2200 = vmatpush.bf16.msra.mxu0 %v1595
  %2201 = vmatpush.bf16.msra.mxu0 %v1593
  %2202 = vmatpush.bf16.msra.mxu0 %v1591
  %2203 = vmatpush.bf16.msra.mxu0 %v1589
  %2204 = vmatpush.bf16.msra.mxu0 %v1587
  %2205 = vmatpush.bf16.msra.mxu0 %v1585
  %2206 = vmatpush.bf16.msra.mxu0 %v1583
  %2207 = vmatpush.bf16.msra.mxu0 %v1581
  %2208 = vmatmul.bf16.gmra.mxu0 %v93
  %v2209 = vpop.f32.mrf.mxu0
  %v2210 = vadd.f32 %v2197, %v2209
  %v2211 = vpop.f32.mrf.mxu0
  %2212 = vdwg.mxu0
  %2213 = vmatpush.bf16.msra.mxu0 %v1611
  %2214 = vmatpush.bf16.msra.mxu0 %v1609
  %2215 = vmatpush.bf16.msra.mxu0 %v1607
  %2216 = vmatpush.bf16.msra.mxu0 %v1605
  %2217 = vmatpush.bf16.msra.mxu0 %v1603
  %2218 = vmatpush.bf16.msra.mxu0 %v1601
  %2219 = vmatpush.bf16.msra.mxu0 %v1599
  %2220 = vmatpush.bf16.msra.mxu0 %v1597
  %2221 = vmatmul.bf16.gmra.mxu0 %v94
  %v2222 = vpop.f32.mrf.mxu0
  %v2223 = vadd.f32 %v2210, %v2222
  %v2224 = vpop.f32.mrf.mxu0
  %2225 = vdwg.mxu0
  %2226 = vmatpush.bf16.msra.mxu0 %v1627
  %2227 = vmatpush.bf16.msra.mxu0 %v1625
  %2228 = vmatpush.bf16.msra.mxu0 %v1623
  %2229 = vmatpush.bf16.msra.mxu0 %v1621
  %2230 = vmatpush.bf16.msra.mxu0 %v1619
  %2231 = vmatpush.bf16.msra.mxu0 %v1617
  %2232 = vmatpush.bf16.msra.mxu0 %v1615
  %2233 = vmatpush.bf16.msra.mxu0 %v1613
  %2234 = vmatmul.bf16.gmra.mxu0 %v95
  %v2235 = vpop.f32.mrf.mxu0
  %v2236 = vadd.f32 %v2223, %v2235
  %v2237 = vpop.f32.mrf.mxu0
  %2238 = vdwg.mxu0
  %2239 = vmatpush.bf16.msra.mxu0 %v1643
  %2240 = vmatpush.bf16.msra.mxu0 %v1641
  %2241 = vmatpush.bf16.msra.mxu0 %v1639
  %2242 = vmatpush.bf16.msra.mxu0 %v1637
  %2243 = vmatpush.bf16.msra.mxu0 %v1635
  %2244 = vmatpush.bf16.msra.mxu0 %v1633
  %2245 = vmatpush.bf16.msra.mxu0 %v1631
  %2246 = vmatpush.bf16.msra.mxu0 %v1629
  %2247 = vmatmul.bf16.gmra.mxu0 %v96
  %v2248 = vpop.f32.mrf.mxu0
  %v2249 = vadd.f32 %v2236, %v2248
  %v2250 = vpop.f32.mrf.mxu0
  %2251 = vdwg.mxu0
  %2252 = vmatpush.bf16.msra.mxu0 %v1659
  %2253 = vmatpush.bf16.msra.mxu0 %v1657
  %2254 = vmatpush.bf16.msra.mxu0 %v1655
  %2255 = vmatpush.bf16.msra.mxu0 %v1653
  %2256 = vmatpush.bf16.msra.mxu0 %v1651
  %2257 = vmatpush.bf16.msra.mxu0 %v1649
  %2258 = vmatpush.bf16.msra.mxu0 %v1647
  %2259 = vmatpush.bf16.msra.mxu0 %v1645
  %2260 = vmatmul.bf16.gmra.mxu0 %v97
  %v2261 = vpop.f32.mrf.mxu0
  %v2262 = vadd.f32 %v2249, %v2261
  %v2263 = vpop.f32.mrf.mxu0
  %2264 = vdwg.mxu0
  %2265 = vmatpush.bf16.msra.mxu0 %v1675
  %2266 = vmatpush.bf16.msra.mxu0 %v1673
  %2267 = vmatpush.bf16.msra.mxu0 %v1671
  %2268 = vmatpush.bf16.msra.mxu0 %v1669
  %2269 = vmatpush.bf16.msra.mxu0 %v1667
  %2270 = vmatpush.bf16.msra.mxu0 %v1665
  %2271 = vmatpush.bf16.msra.mxu0 %v1663
  %2272 = vmatpush.bf16.msra.mxu0 %v1661
  %2273 = vmatmul.bf16.gmra.mxu0 %v98
  %v2274 = vpop.f32.mrf.mxu0
  %v2275 = vadd.f32 %v2262, %v2274
  %v2276 = vpop.f32.mrf.mxu0
  %2277 = vdwg.mxu0
  %2278 = vmatpush.bf16.msra.mxu0 %v1691
  %2279 = vmatpush.bf16.msra.mxu0 %v1689
  %2280 = vmatpush.bf16.msra.mxu0 %v1687
  %2281 = vmatpush.bf16.msra.mxu0 %v1685
  %2282 = vmatpush.bf16.msra.mxu0 %v1683
  %2283 = vmatpush.bf16.msra.mxu0 %v1681
  %2284 = vmatpush.bf16.msra.mxu0 %v1679
  %2285 = vmatpush.bf16.msra.mxu0 %v1677
  %2286 = vmatmul.bf16.gmra.mxu0 %v99
  %v2287 = vpop.f32.mrf.mxu0
  %v2288 = vadd.f32 %v2275, %v2287
  %v2289 = vpop.f32.mrf.mxu0
  %2290 = vdwg.mxu0
  %2291 = vmatpush.bf16.msra.mxu0 %v1707
  %2292 = vmatpush.bf16.msra.mxu0 %v1705
  %2293 = vmatpush.bf16.msra.mxu0 %v1703
  %2294 = vmatpush.bf16.msra.mxu0 %v1701
  %2295 = vmatpush.bf16.msra.mxu0 %v1699
  %2296 = vmatpush.bf16.msra.mxu0 %v1697
  %2297 = vmatpush.bf16.msra.mxu0 %v1695
  %2298 = vmatpush.bf16.msra.mxu0 %v1693
  %2299 = vmatmul.bf16.gmra.mxu0 %v100
  %v2300 = vpop.f32.mrf.mxu0
  %v2301 = vadd.f32 %v2288, %v2300
  %v2302 = vpop.f32.mrf.mxu0
  %2303 = vdwg.mxu0
  %2304 = vmatpush.bf16.msra.mxu0 %v1723
  %2305 = vmatpush.bf16.msra.mxu0 %v1721
  %2306 = vmatpush.bf16.msra.mxu0 %v1719
  %2307 = vmatpush.bf16.msra.mxu0 %v1717
  %2308 = vmatpush.bf16.msra.mxu0 %v1715
  %2309 = vmatpush.bf16.msra.mxu0 %v1713
  %2310 = vmatpush.bf16.msra.mxu0 %v1711
  %2311 = vmatpush.bf16.msra.mxu0 %v1709
  %2312 = vmatmul.bf16.gmra.mxu0 %v101
  %v2313 = vpop.f32.mrf.mxu0
  %v2314 = vadd.f32 %v2301, %v2313
  %v2315 = vpop.f32.mrf.mxu0
  %2316 = vdwg.mxu0
  %2317 = vmatpush.bf16.msra.mxu0 0
  %2318 = vmatpush.bf16.msra.mxu0 0
  %2319 = vmatpush.bf16.msra.mxu0 0
  %2320 = vmatpush.bf16.msra.mxu0 0
  %2321 = vmatpush.bf16.msra.mxu0 0
  %2322 = vmatpush.bf16.msra.mxu0 0
  %2323 = vmatpush.bf16.msra.mxu0 %v1727
  %2324 = vmatpush.bf16.msra.mxu0 %v1725
  %2325 = vmatmul.bf16.gmra.mxu0 %v2055
  %v2326 = vpop.f32.mrf.mxu0
  %v2327 = vadd.f32 %v2314, %v2326
  %v2328 = vpop.f32.mrf.mxu0
  %2329 = vdwg.mxu0
  %2330 = vmatpush.bf16.msra.mxu0 %v1420
  %2331 = vmatpush.bf16.msra.mxu0 %v1418
  %2332 = vmatpush.bf16.msra.mxu0 %v1416
  %2333 = vmatpush.bf16.msra.mxu0 %v1414
  %2334 = vmatpush.bf16.msra.mxu0 %v1412
  %2335 = vmatpush.bf16.msra.mxu0 %v1410
  %2336 = vmatpush.bf16.msra.mxu0 %v1408
  %2337 = vmatpush.bf16.msra.mxu0 %v1406
  %2338 = vmatmul.bf16.gmra.mxu0 %v82
  %v2339 = vpop.f32.mrf.mxu0
  %v2340 = vadd.f32 %v430, %v2339
  %v2341 = vpop.f32.mrf.mxu0
  %2342 = vdwg.mxu0
  %2343 = vmatpush.bf16.msra.mxu0 %v1436
  %2344 = vmatpush.bf16.msra.mxu0 %v1434
  %2345 = vmatpush.bf16.msra.mxu0 %v1432
  %2346 = vmatpush.bf16.msra.mxu0 %v1430
  %2347 = vmatpush.bf16.msra.mxu0 %v1428
  %2348 = vmatpush.bf16.msra.mxu0 %v1426
  %2349 = vmatpush.bf16.msra.mxu0 %v1424
  %2350 = vmatpush.bf16.msra.mxu0 %v1422
  %2351 = vmatmul.bf16.gmra.mxu0 %v83
  %v2352 = vpop.f32.mrf.mxu0
  %v2353 = vadd.f32 %v2340, %v2352
  %v2354 = vpop.f32.mrf.mxu0
  %2355 = vdwg.mxu0
  %2356 = vmatpush.bf16.msra.mxu0 %v1452
  %2357 = vmatpush.bf16.msra.mxu0 %v1450
  %2358 = vmatpush.bf16.msra.mxu0 %v1448
  %2359 = vmatpush.bf16.msra.mxu0 %v1446
  %2360 = vmatpush.bf16.msra.mxu0 %v1444
  %2361 = vmatpush.bf16.msra.mxu0 %v1442
  %2362 = vmatpush.bf16.msra.mxu0 %v1440
  %2363 = vmatpush.bf16.msra.mxu0 %v1438
  %2364 = vmatmul.bf16.gmra.mxu0 %v84
  %v2365 = vpop.f32.mrf.mxu0
  %v2366 = vadd.f32 %v2353, %v2365
  %v2367 = vpop.f32.mrf.mxu0
  %2368 = vdwg.mxu0
  %2369 = vmatpush.bf16.msra.mxu0 %v1468
  %2370 = vmatpush.bf16.msra.mxu0 %v1466
  %2371 = vmatpush.bf16.msra.mxu0 %v1464
  %2372 = vmatpush.bf16.msra.mxu0 %v1462
  %2373 = vmatpush.bf16.msra.mxu0 %v1460
  %2374 = vmatpush.bf16.msra.mxu0 %v1458
  %2375 = vmatpush.bf16.msra.mxu0 %v1456
  %2376 = vmatpush.bf16.msra.mxu0 %v1454
  %2377 = vmatmul.bf16.gmra.mxu0 %v85
  %v2378 = vpop.f32.mrf.mxu0
  %v2379 = vadd.f32 %v2366, %v2378
  %v2380 = vpop.f32.mrf.mxu0
  %2381 = vdwg.mxu0
  %2382 = vmatpush.bf16.msra.mxu0 %v1484
  %2383 = vmatpush.bf16.msra.mxu0 %v1482
  %2384 = vmatpush.bf16.msra.mxu0 %v1480
  %2385 = vmatpush.bf16.msra.mxu0 %v1478
  %2386 = vmatpush.bf16.msra.mxu0 %v1476
  %2387 = vmatpush.bf16.msra.mxu0 %v1474
  %2388 = vmatpush.bf16.msra.mxu0 %v1472
  %2389 = vmatpush.bf16.msra.mxu0 %v1470
  %2390 = vmatmul.bf16.gmra.mxu0 %v86
  %v2391 = vpop.f32.mrf.mxu0
  %v2392 = vadd.f32 %v2379, %v2391
  %v2393 = vpop.f32.mrf.mxu0
  %2394 = vdwg.mxu0
  %2395 = vmatpush.bf16.msra.mxu0 %v1500
  %2396 = vmatpush.bf16.msra.mxu0 %v1498
  %2397 = vmatpush.bf16.msra.mxu0 %v1496
  %2398 = vmatpush.bf16.msra.mxu0 %v1494
  %2399 = vmatpush.bf16.msra.mxu0 %v1492
  %2400 = vmatpush.bf16.msra.mxu0 %v1490
  %2401 = vmatpush.bf16.msra.mxu0 %v1488
  %2402 = vmatpush.bf16.msra.mxu0 %v1486
  %2403 = vmatmul.bf16.gmra.mxu0 %v87
  %v2404 = vpop.f32.mrf.mxu0
  %v2405 = vadd.f32 %v2392, %v2404
  %v2406 = vpop.f32.mrf.mxu0
  %2407 = vdwg.mxu0
  %2408 = vmatpush.bf16.msra.mxu0 %v1516
  %2409 = vmatpush.bf16.msra.mxu0 %v1514
  %2410 = vmatpush.bf16.msra.mxu0 %v1512
  %2411 = vmatpush.bf16.msra.mxu0 %v1510
  %2412 = vmatpush.bf16.msra.mxu0 %v1508
  %2413 = vmatpush.bf16.msra.mxu0 %v1506
  %2414 = vmatpush.bf16.msra.mxu0 %v1504
  %2415 = vmatpush.bf16.msra.mxu0 %v1502
  %2416 = vmatmul.bf16.gmra.mxu0 %v88
  %v2417 = vpop.f32.mrf.mxu0
  %v2418 = vadd.f32 %v2405, %v2417
  %v2419 = vpop.f32.mrf.mxu0
  %2420 = vdwg.mxu0
  %2421 = vmatpush.bf16.msra.mxu0 %v1532
  %2422 = vmatpush.bf16.msra.mxu0 %v1530
  %2423 = vmatpush.bf16.msra.mxu0 %v1528
  %2424 = vmatpush.bf16.msra.mxu0 %v1526
  %2425 = vmatpush.bf16.msra.mxu0 %v1524
  %2426 = vmatpush.bf16.msra.mxu0 %v1522
  %2427 = vmatpush.bf16.msra.mxu0 %v1520
  %2428 = vmatpush.bf16.msra.mxu0 %v1518
  %2429 = vmatmul.bf16.gmra.mxu0 %v89
  %v2430 = vpop.f32.mrf.mxu0
  %v2431 = vadd.f32 %v2418, %v2430
  %v2432 = vpop.f32.mrf.mxu0
  %2433 = vdwg.mxu0
  %2434 = vmatpush.bf16.msra.mxu0 %v1548
  %2435 = vmatpush.bf16.msra.mxu0 %v1546
  %2436 = vmatpush.bf16.msra.mxu0 %v1544
  %2437 = vmatpush.bf16.msra.mxu0 %v1542
  %2438 = vmatpush.bf16.msra.mxu0 %v1540
  %2439 = vmatpush.bf16.msra.mxu0 %v1538
  %2440 = vmatpush.bf16.msra.mxu0 %v1536
  %2441 = vmatpush.bf16.msra.mxu0 %v1534
  %2442 = vmatmul.bf16.gmra.mxu0 %v90
  %v2443 = vpop.f32.mrf.mxu0
  %v2444 = vadd.f32 %v2431, %v2443
  %v2445 = vpop.f32.mrf.mxu0
  %2446 = vdwg.mxu0
  %2447 = vmatpush.bf16.msra.mxu0 %v1564
  %2448 = vmatpush.bf16.msra.mxu0 %v1562
  %2449 = vmatpush.bf16.msra.mxu0 %v1560
  %2450 = vmatpush.bf16.msra.mxu0 %v1558
  %2451 = vmatpush.bf16.msra.mxu0 %v1556
  %2452 = vmatpush.bf16.msra.mxu0 %v1554
  %2453 = vmatpush.bf16.msra.mxu0 %v1552
  %2454 = vmatpush.bf16.msra.mxu0 %v1550
  %2455 = vmatmul.bf16.gmra.mxu0 %v91
  %v2456 = vpop.f32.mrf.mxu0
  %v2457 = vadd.f32 %v2444, %v2456
  %v2458 = vpop.f32.mrf.mxu0
  %2459 = vdwg.mxu0
  %2460 = vmatpush.bf16.msra.mxu0 %v1580
  %2461 = vmatpush.bf16.msra.mxu0 %v1578
  %2462 = vmatpush.bf16.msra.mxu0 %v1576
  %2463 = vmatpush.bf16.msra.mxu0 %v1574
  %2464 = vmatpush.bf16.msra.mxu0 %v1572
  %2465 = vmatpush.bf16.msra.mxu0 %v1570
  %2466 = vmatpush.bf16.msra.mxu0 %v1568
  %2467 = vmatpush.bf16.msra.mxu0 %v1566
  %2468 = vmatmul.bf16.gmra.mxu0 %v92
  %v2469 = vpop.f32.mrf.mxu0
  %v2470 = vadd.f32 %v2457, %v2469
  %v2471 = vpop.f32.mrf.mxu0
  %2472 = vdwg.mxu0
  %2473 = vmatpush.bf16.msra.mxu0 %v1596
  %2474 = vmatpush.bf16.msra.mxu0 %v1594
  %2475 = vmatpush.bf16.msra.mxu0 %v1592
  %2476 = vmatpush.bf16.msra.mxu0 %v1590
  %2477 = vmatpush.bf16.msra.mxu0 %v1588
  %2478 = vmatpush.bf16.msra.mxu0 %v1586
  %2479 = vmatpush.bf16.msra.mxu0 %v1584
  %2480 = vmatpush.bf16.msra.mxu0 %v1582
  %2481 = vmatmul.bf16.gmra.mxu0 %v93
  %v2482 = vpop.f32.mrf.mxu0
  %v2483 = vadd.f32 %v2470, %v2482
  %v2484 = vpop.f32.mrf.mxu0
  %2485 = vdwg.mxu0
  %2486 = vmatpush.bf16.msra.mxu0 %v1612
  %2487 = vmatpush.bf16.msra.mxu0 %v1610
  %2488 = vmatpush.bf16.msra.mxu0 %v1608
  %2489 = vmatpush.bf16.msra.mxu0 %v1606
  %2490 = vmatpush.bf16.msra.mxu0 %v1604
  %2491 = vmatpush.bf16.msra.mxu0 %v1602
  %2492 = vmatpush.bf16.msra.mxu0 %v1600
  %2493 = vmatpush.bf16.msra.mxu0 %v1598
  %2494 = vmatmul.bf16.gmra.mxu0 %v94
  %v2495 = vpop.f32.mrf.mxu0
  %v2496 = vadd.f32 %v2483, %v2495
  %v2497 = vpop.f32.mrf.mxu0
  %2498 = vdwg.mxu0
  %2499 = vmatpush.bf16.msra.mxu0 %v1628
  %2500 = vmatpush.bf16.msra.mxu0 %v1626
  %2501 = vmatpush.bf16.msra.mxu0 %v1624
  %2502 = vmatpush.bf16.msra.mxu0 %v1622
  %2503 = vmatpush.bf16.msra.mxu0 %v1620
  %2504 = vmatpush.bf16.msra.mxu0 %v1618
  %2505 = vmatpush.bf16.msra.mxu0 %v1616
  %2506 = vmatpush.bf16.msra.mxu0 %v1614
  %2507 = vmatmul.bf16.gmra.mxu0 %v95
  %v2508 = vpop.f32.mrf.mxu0
  %v2509 = vadd.f32 %v2496, %v2508
  %v2510 = vpop.f32.mrf.mxu0
  %2511 = vdwg.mxu0
  %2512 = vmatpush.bf16.msra.mxu0 %v1644
  %2513 = vmatpush.bf16.msra.mxu0 %v1642
  %2514 = vmatpush.bf16.msra.mxu0 %v1640
  %2515 = vmatpush.bf16.msra.mxu0 %v1638
  %2516 = vmatpush.bf16.msra.mxu0 %v1636
  %2517 = vmatpush.bf16.msra.mxu0 %v1634
  %2518 = vmatpush.bf16.msra.mxu0 %v1632
  %2519 = vmatpush.bf16.msra.mxu0 %v1630
  %2520 = vmatmul.bf16.gmra.mxu0 %v96
  %v2521 = vpop.f32.mrf.mxu0
  %v2522 = vadd.f32 %v2509, %v2521
  %v2523 = vpop.f32.mrf.mxu0
  %2524 = vdwg.mxu0
  %2525 = vmatpush.bf16.msra.mxu0 %v1660
  %2526 = vmatpush.bf16.msra.mxu0 %v1658
  %2527 = vmatpush.bf16.msra.mxu0 %v1656
  %2528 = vmatpush.bf16.msra.mxu0 %v1654
  %2529 = vmatpush.bf16.msra.mxu0 %v1652
  %2530 = vmatpush.bf16.msra.mxu0 %v1650
  %2531 = vmatpush.bf16.msra.mxu0 %v1648
  %2532 = vmatpush.bf16.msra.mxu0 %v1646
  %2533 = vmatmul.bf16.gmra.mxu0 %v97
  %v2534 = vpop.f32.mrf.mxu0
  %v2535 = vadd.f32 %v2522, %v2534
  %v2536 = vpop.f32.mrf.mxu0
  %2537 = vdwg.mxu0
  %2538 = vmatpush.bf16.msra.mxu0 %v1676
  %2539 = vmatpush.bf16.msra.mxu0 %v1674
  %2540 = vmatpush.bf16.msra.mxu0 %v1672
  %2541 = vmatpush.bf16.msra.mxu0 %v1670
  %2542 = vmatpush.bf16.msra.mxu0 %v1668
  %2543 = vmatpush.bf16.msra.mxu0 %v1666
  %2544 = vmatpush.bf16.msra.mxu0 %v1664
  %2545 = vmatpush.bf16.msra.mxu0 %v1662
  %2546 = vmatmul.bf16.gmra.mxu0 %v98
  %v2547 = vpop.f32.mrf.mxu0
  %v2548 = vadd.f32 %v2535, %v2547
  %v2549 = vpop.f32.mrf.mxu0
  %2550 = vdwg.mxu0
  %2551 = vmatpush.bf16.msra.mxu0 %v1692
  %2552 = vmatpush.bf16.msra.mxu0 %v1690
  %2553 = vmatpush.bf16.msra.mxu0 %v1688
  %2554 = vmatpush.bf16.msra.mxu0 %v1686
  %2555 = vmatpush.bf16.msra.mxu0 %v1684
  %2556 = vmatpush.bf16.msra.mxu0 %v1682
  %2557 = vmatpush.bf16.msra.mxu0 %v1680
  %2558 = vmatpush.bf16.msra.mxu0 %v1678
  %2559 = vmatmul.bf16.gmra.mxu0 %v99
  %v2560 = vpop.f32.mrf.mxu0
  %v2561 = vadd.f32 %v2548, %v2560
  %v2562 = vpop.f32.mrf.mxu0
  %2563 = vdwg.mxu0
  %2564 = vmatpush.bf16.msra.mxu0 %v1708
  %2565 = vmatpush.bf16.msra.mxu0 %v1706
  %2566 = vmatpush.bf16.msra.mxu0 %v1704
  %2567 = vmatpush.bf16.msra.mxu0 %v1702
  %2568 = vmatpush.bf16.msra.mxu0 %v1700
  %2569 = vmatpush.bf16.msra.mxu0 %v1698
  %2570 = vmatpush.bf16.msra.mxu0 %v1696
  %2571 = vmatpush.bf16.msra.mxu0 %v1694
  %2572 = vmatmul.bf16.gmra.mxu0 %v100
  %v2573 = vpop.f32.mrf.mxu0
  %v2574 = vadd.f32 %v2561, %v2573
  %v2575 = vpop.f32.mrf.mxu0
  %2576 = vdwg.mxu0
  %2577 = vmatpush.bf16.msra.mxu0 %v1724
  %2578 = vmatpush.bf16.msra.mxu0 %v1722
  %2579 = vmatpush.bf16.msra.mxu0 %v1720
  %2580 = vmatpush.bf16.msra.mxu0 %v1718
  %2581 = vmatpush.bf16.msra.mxu0 %v1716
  %2582 = vmatpush.bf16.msra.mxu0 %v1714
  %2583 = vmatpush.bf16.msra.mxu0 %v1712
  %2584 = vmatpush.bf16.msra.mxu0 %v1710
  %2585 = vmatmul.bf16.gmra.mxu0 %v101
  %v2586 = vpop.f32.mrf.mxu0
  %v2587 = vadd.f32 %v2574, %v2586
  %v2588 = vpop.f32.mrf.mxu0
  %2589 = vdwg.mxu0
  %2590 = vmatpush.bf16.msra.mxu0 0
  %2591 = vmatpush.bf16.msra.mxu0 0
  %2592 = vmatpush.bf16.msra.mxu0 0
  %2593 = vmatpush.bf16.msra.mxu0 0
  %2594 = vmatpush.bf16.msra.mxu0 0
  %2595 = vmatpush.bf16.msra.mxu0 0
  %2596 = vmatpush.bf16.msra.mxu0 %v1728
  %2597 = vmatpush.bf16.msra.mxu0 %v1726
  %2598 = vmatmul.bf16.gmra.mxu0 %v2055
  %v2599 = vpop.f32.mrf.mxu0
  %v2600 = vadd.f32 %v2587, %v2599
  %v2601 = vpop.f32.mrf.mxu0
  %2602 = vdwg.mxu0
  %v2603 = vmax.f32 %v2327, 0.0
  %v2604 = vmax.f32 %v2600, 0.0
  %v2605 = vpack.c.bf16 %v2603, %v2603
  %v2606 = vpack.c.bf16 %v2604, %v2604
  %v2607 = vld [vmem:[%s3] sm:$0xf]
  %v2608 = vld [vmem:[%s3 + $0x4] sm:$0xf]
  %v2609 = vld [vmem:[%s3 + $0x8] sm:$0xf]
  %v2610 = vld [vmem:[%s3 + $0xc] sm:$0xf]
  %v2611 = vld [vmem:[%s3 + $0x10] sm:$0xf]
  %v2612 = vld [vmem:[%s3 + $0x14] sm:$0xf]
  %v2613 = vld [vmem:[%s3 + $0x18] sm:$0xf]
  %v2614 = vld [vmem:[%s3 + $0x1c] sm:$0xf]
  %v2615 = vld [vmem:[%s3 + $0x20] sm:$0xf]
  %v2616 = vld [vmem:[%s3 + $0x24] sm:$0xf]
  %v2617 = vld [vmem:[%s3 + $0x28] sm:$0xf]
  %v2618 = vld [vmem:[%s3 + $0x2c] sm:$0xf]
  %v2619 = vld [vmem:[%s3 + $0x30] sm:$0xf]
  %v2620 = vld [vmem:[%s3 + $0x34] sm:$0xf]
  %v2621 = vld [vmem:[%s3 + $0x38] sm:$0xf]
  %v2622 = vld [vmem:[%s3 + $0x3c] sm:$0xf]
  %v2623 = vld [vmem:[%s3 + $0x40] sm:$0xf]
  %v2624 = vld [vmem:[%s3 + $0x44] sm:$0xf]
  %v2625 = vld [vmem:[%s3 + $0x48] sm:$0xf]
  %v2626 = vld [vmem:[%s3 + $0x4c] sm:$0xf]
  %v2627 = vld [vmem:[%s3 + $0x50] sm:$0xf]
  %v2628 = vld [vmem:[%s3 + $0x54] sm:$0xf]
  %v2629 = vld [vmem:[%s3 + $0x58] sm:$0xf]
  %v2630 = vld [vmem:[%s3 + $0x5c] sm:$0xf]
  %v2631 = vld [vmem:[%s3 + $0x60] sm:$0xf]
  %v2632 = vld [vmem:[%s3 + $0x64] sm:$0xf]
  %v2633 = vld [vmem:[%s3 + $0x68] sm:$0xf]
  %v2634 = vld [vmem:[%s3 + $0x6c] sm:$0xf]
  %v2635 = vld [vmem:[%s3 + $0x70] sm:$0xf]
  %v2636 = vld [vmem:[%s3 + $0x74] sm:$0xf]
  %v2637 = vld [vmem:[%s3 + $0x78] sm:$0xf]
  %v2638 = vld [vmem:[%s3 + $0x7c] sm:$0xf]
  %v2639 = vld [vmem:[%s4] sm:$0x1]
  %v2641 = vperm.slane %v2639, 0
  %v2675 = vunpack.c.l.b16 %v2607
  %v2676 = vunpack.c.l.b16 %v2608
  %v2677 = vunpack.c.l.b16 %v2609
  %v2678 = vunpack.c.l.b16 %v2610
  %v2679 = vunpack.c.l.b16 %v2611
  %v2680 = vunpack.c.l.b16 %v2612
  %v2681 = vunpack.c.l.b16 %v2613
  %v2682 = vunpack.c.l.b16 %v2614
  %v2683 = vunpack.c.l.b16 %v2615
  %v2684 = vunpack.c.l.b16 %v2616
  %v2685 = vunpack.c.l.b16 %v2617
  %v2686 = vunpack.c.l.b16 %v2618
  %v2687 = vunpack.c.l.b16 %v2619
  %v2688 = vunpack.c.l.b16 %v2620
  %v2689 = vunpack.c.l.b16 %v2621
  %v2690 = vunpack.c.l.b16 %v2622
  %v2691 = vunpack.c.l.b16 %v2623
  %v2692 = vunpack.c.l.b16 %v2624
  %v2693 = vunpack.c.l.b16 %v2625
  %v2694 = vunpack.c.l.b16 %v2626
  %v2695 = vunpack.c.l.b16 %v2627
  %v2696 = vunpack.c.l.b16 %v2628
  %v2697 = vunpack.c.l.b16 %v2629
  %v2698 = vunpack.c.l.b16 %v2630
  %v2699 = vunpack.c.l.b16 %v2631
  %v2700 = vunpack.c.l.b16 %v2632
  %v2701 = vunpack.c.l.b16 %v2633
  %v2702 = vunpack.c.l.b16 %v2634
  %v2703 = vunpack.c.l.b16 %v2635
  %v2704 = vunpack.c.l.b16 %v2636
  %v2705 = vunpack.c.l.b16 %v2637
  %v2706 = vunpack.c.l.b16 %v2638
  %v2707 = vpack.c.b16 %v2676, %v2675
  %v2708 = vpack.c.b16 %v2678, %v2677
  %v2709 = vpack.c.b16 %v2680, %v2679
  %v2710 = vpack.c.b16 %v2682, %v2681
  %v2711 = vpack.c.b16 %v2684, %v2683
  %v2712 = vpack.c.b16 %v2686, %v2685
  %v2713 = vpack.c.b16 %v2688, %v2687
  %v2714 = vpack.c.b16 %v2690, %v2689
  %v2715 = vpack.c.b16 %v2692, %v2691
  %v2716 = vpack.c.b16 %v2694, %v2693
  %v2717 = vpack.c.b16 %v2696, %v2695
  %v2718 = vpack.c.b16 %v2698, %v2697
  %v2719 = vpack.c.b16 %v2700, %v2699
  %v2720 = vpack.c.b16 %v2702, %v2701
  %v2721 = vpack.c.b16 %v2704, %v2703
  %v2722 = vpack.c.b16 %v2706, %v2705
  %2739 = vmatpush.bf16.msra.mxu0 %v2714
  %2740 = vmatpush.bf16.msra.mxu0 %v2713
  %2741 = vmatpush.bf16.msra.mxu0 %v2712
  %2742 = vmatpush.bf16.msra.mxu0 %v2711
  %2743 = vmatpush.bf16.msra.mxu0 %v2710
  %2744 = vmatpush.bf16.msra.mxu0 %v2709
  %2745 = vmatpush.bf16.msra.mxu0 %v2708
  %2746 = vmatpush.bf16.msra.mxu0 %v2707
  %2747 = vmatmul.bf16.gmra.mxu0 %v2605
  %v2748 = vpop.f32.mrf.mxu0
  %v2749 = vadd.f32 %v2641, %v2748
  %v2750 = vpop.f32.mrf.mxu0
  %2751 = vdwg.mxu0
  %2752 = vmatpush.bf16.msra.mxu0 %v2722
  %2753 = vmatpush.bf16.msra.mxu0 %v2721
  %2754 = vmatpush.bf16.msra.mxu0 %v2720
  %2755 = vmatpush.bf16.msra.mxu0 %v2719
  %2756 = vmatpush.bf16.msra.mxu0 %v2718
  %2757 = vmatpush.bf16.msra.mxu0 %v2717
  %2758 = vmatpush.bf16.msra.mxu0 %v2716
  %2759 = vmatpush.bf16.msra.mxu0 %v2715
  %2760 = vmatmul.bf16.gmra.mxu0 %v2606
  %v2761 = vpop.f32.mrf.mxu0
  %v2762 = vadd.f32 %v2749, %v2761
  %v2763 = vpop.f32.mrf.mxu0
  %2764 = vdwg.mxu0
  %vm2765 = vcmask 50176
  %2766 = vst.msk [vmem:[%s5] sm:$0x3] %vm2765, %v2762
  // Predicated region
  $region22: #{ppg_dqn_forward.5} parent=0 // pred_check
    _
  $region23: #{ppg_dqn_forward.5} parent=0 // pred_check_branch
    %2768 = sbr.rel (0) target = $region25
  $region24: #{ppg_dqn_forward.5} parent=0 // pred_region
    _
  $region25: #{ppg_dqn_forward.5} parent=0 // pred_fallthru
    _
  // Predicated region
  $region26: #{ppg_dqn_forward.5} parent=0 // pred_check
    _
  $region27: #{ppg_dqn_forward.5} parent=0 // pred_check_branch
    %2770 = sbr.rel (0) target = $region29
  $region28: #{ppg_dqn_forward.5} parent=0 // pred_region
    _
  $region29: #{ppg_dqn_forward.5} parent=0 // pred_fallthru
    _

</llo_original>
